<compile_context>
chip_gen: v7x
topology: tpu7x:2x2x1
jax: 0.10.0
libtpu: 0.0.40
codegen_flags: <defaults>
</compile_context>

<pallas_src>
import functools

import jax
import jax.numpy as jnp
from jax import lax
from jax.experimental import pallas as pl
from jax.experimental.pallas import tpu as pltpu

_PADL = 8  # left halo width (packed cols) -> interior starts sublane-aligned


def _vmem_limit_bytes():
    """Generation-aware scoped-VMEM request (~85% of physical capacity)."""
    cap = 128 * 1024 * 1024
    try:
        info_cap = int(pltpu.get_tpu_info().vmem_capacity_bytes)
        if info_cap > 0:
            cap = info_cap
    except Exception:
        pass
    return int(cap * 0.85)


def _pick_strip(n):
    for s in (8, 4, 2, 1):
        if n % s == 0:
            return s
    return 1


def _round_up(x, m):
    return ((x + m - 1) // m) * m


# -----------------------------------------------------------------------------
# Fused kernel: upconv (k=2,s=2) matmul + crop/concat/pad staging + two
# 3x3 SAME convs + ReLUs, all in a width-packed layout (parity folded into C).
# -----------------------------------------------------------------------------
def _fused_up_block_kernel(x_ref, br_ref, wup_ref, bup_ref,
                           w1m_ref, w1e_ref, b1_ref,
                           w2m_ref, w2e_ref, b2_ref,
                           o_ref, cat_pad, mid_pad, *, hstrip, strip):
    # Per-grid-step shapes (all width-packed, channels parity-major):
    #   x_ref   : (1, Hx, Wx, Cin)
    #   br_ref  : (1, H2, Wx, 2*Cbr)
    #   wup_ref : (Cin, 4*Cup)          columns ordered (dy, dx, o)
    #   w*m_ref : (2, 3, 2*Csrc, Cdst)  [out parity, py, (e0|e1) src block, dst]
    #   w*e_ref : (2, 3, Csrc, Cdst)    [0]=left tap (parity 0), [1]=right (parity 1)
    #   o_ref   : (1, H2, Wx, 2*Cout)
    #   cat_pad : (H2+2, Wxp, 2*Cc)     VMEM scratch, SAME-padded
    #   mid_pad : (H2+2, Wxp, 2*Cmid)
    _, Hx, Wx, Cin = x_ref.shape
    H2 = br_ref.shape[1]
    Cbr = br_ref.shape[3] // 2
    Cup = wup_ref.shape[1] // 4
    Cc = Cup + Cbr
    Cmid = b1_ref.shape[1]
    Cout = b2_ref.shape[1]
    Hp, Wxp, _ = cat_pad.shape
    P = _PADL
    cdt = cat_pad.dtype

    # ---- zero the halo bands (redone every step: megacore-"parallel" safe) ----
    for pad, c in ((cat_pad, 2 * Cc), (mid_pad, 2 * Cmid)):
        pad[0:1, :, :] = jnp.zeros((1, Wxp, c), cdt)
        pad[Hp - 1:Hp, :, :] = jnp.zeros((1, Wxp, c), cdt)
        pad[:, 0:P, :] = jnp.zeros((Hp, P, c), cdt)
        pad[:, P + Wx:Wxp, :] = jnp.zeros((Hp, Wxp - P - Wx, c), cdt)

    # ---- fused ConvTranspose2d(k=2,s=2) + crop/concat staging (strip-wise) ----
    wup = wup_ref[...]            # (Cin, 4*Cup)
    bup = bup_ref[...]            # (1, 4*Cup) f32

    def up_body(i, carry):
        h0 = pl.multiple_of(i * hstrip, hstrip)
        xb = x_ref[0, pl.ds(h0, hstrip), :, :].reshape(hstrip * Wx, Cin)
        y = jnp.dot(xb, wup, preferred_element_type=jnp.float32) + bup
        # columns are (dy, dx, o); dx is the output-column parity, so each dy
        # half is already a width-packed row of `up` -- no spatial relayout.
        y0 = y[:, 0:2 * Cup].reshape(hstrip, Wx, 2 * Cup)         # rows 2h+0
        y1 = y[:, 2 * Cup:4 * Cup].reshape(hstrip, Wx, 2 * Cup)   # rows 2h+1
        up_p = jnp.stack([y0, y1], axis=1).reshape(2 * hstrip, Wx, 2 * Cup)
        brb = br_ref[0, pl.ds(2 * h0, 2 * hstrip), :, :]
        rows = pl.ds(1 + 2 * h0, 2 * hstrip)
        # parity-major channel layout: [up e=0 | br e=0 | up e=1 | br e=1]
        cat_pad[rows, P:P + Wx, 0:Cup] = up_p[:, :, 0:Cup].astype(cdt)
        cat_pad[rows, P:P + Wx, Cup:Cc] = brb[:, :, 0:Cbr]
        cat_pad[rows, P:P + Wx, Cc:Cc + Cup] = up_p[:, :, Cup:2 * Cup].astype(cdt)
        cat_pad[rows, P:P + Wx, Cc + Cup:2 * Cc] = brb[:, :, Cbr:2 * Cbr]
        return carry

    lax.fori_loop(0, Hx // hstrip, up_body, 0)

    # ---- width-packed 3x3 SAME conv + ReLU (both output parities per strip) ----
    def conv_strip(src_pad, wm_ref, we_ref, b_ref, csrc, cdst, r0):
        b = b_ref[...]                                       # (1, cdst) f32
        acc0 = jnp.zeros((strip * Wx, cdst), jnp.float32)    # even output cols
        acc1 = jnp.zeros((strip * Wx, cdst), jnp.float32)    # odd output cols
        for py in range(3):
            rows = pl.ds(r0 + py, strip)
            mid = src_pad[rows, P:P + Wx, :].reshape(strip * Wx, 2 * csrc)
            left = src_pad[rows, P - 1:P - 1 + Wx, csrc:2 * csrc].reshape(
                strip * Wx, csrc)
            right = src_pad[rows, P + 1:P + 1 + Wx, 0:csrc].reshape(
                strip * Wx, csrc)
            acc0 = acc0 + jnp.dot(mid, wm_ref[0, py],
                                  preferred_element_type=jnp.float32)
            acc0 = acc0 + jnp.dot(left, we_ref[0, py],
                                  preferred_element_type=jnp.float32)
            acc1 = acc1 + jnp.dot(mid, wm_ref[1, py],
                                  preferred_element_type=jnp.float32)
            acc1 = acc1 + jnp.dot(right, we_ref[1, py],
                                  preferred_element_type=jnp.float32)
        h0 = jnp.maximum(acc0 + b, 0.0).reshape(strip, Wx, cdst)
        h1 = jnp.maximum(acc1 + b, 0.0).reshape(strip, Wx, cdst)
        return h0, h1

    n_strips = H2 // strip

    def conv1_body(i, carry):
        r0 = pl.multiple_of(i * strip, strip)
        h0, h1 = conv_strip(cat_pad, w1m_ref, w1e_ref, b1_ref, Cc, Cmid, r0)
        rows = pl.ds(1 + r0, strip)
        mid_pad[rows, P:P + Wx, 0:Cmid] = h0.astype(cdt)
        mid_pad[rows, P:P + Wx, Cmid:2 * Cmid] = h1.astype(cdt)
        return carry

    lax.fori_loop(0, n_strips, conv1_body, 0)

    def conv2_body(i, carry):
        r0 = pl.multiple_of(i * strip, strip)
        h0, h1 = conv_strip(mid_pad, w2m_ref, w2e_ref, b2_ref, Cmid, Cout, r0)
        rows = pl.ds(r0, strip)
        o_ref[0, rows, :, 0:Cout] = h0.astype(o_ref.dtype)
        o_ref[0, rows, :, Cout:2 * Cout] = h1.astype(o_ref.dtype)
        return carry

    lax.fori_loop(0, n_strips, conv2_body, 0)


# -----------------------------------------------------------------------------
# Host-side wrapper (NCHW in / NCHW out, like the PyTorch module)
# -----------------------------------------------------------------------------
def _pack_conv_weights(w, cd):
    """HWIO (3,3,Csrc,Cdst) -> width-packed per-parity matmul weights.

    parity-0 output col s=2v :  px=1 -> packed col v / e0, px=2 -> v / e1,
                                px=0 -> packed col v-1 / e1 ("left" edge tap)
    parity-1 output col s=2v+1: px=0 -> v / e0, px=1 -> v / e1,
                                px=2 -> packed col v+1 / e0 ("right" edge tap)
    """
    w_m0 = jnp.concatenate([w[:, 1], w[:, 2]], axis=1)          # (3, 2*Csrc, Cdst)
    w_m1 = jnp.concatenate([w[:, 0], w[:, 1]], axis=1)
    w_mid = jnp.stack([w_m0, w_m1], axis=0).astype(cd)          # (2, 3, 2*Csrc, Cdst)
    w_edge = jnp.stack([w[:, 0], w[:, 2]], axis=0).astype(cd)   # (2, 3, Csrc, Cdst)
    return w_mid, w_edge


def unet_up_block_forward(x_nchw, bridge_nchw, params,
                          compute_dtype=jnp.bfloat16):
    """UNetUpBlock.forward (up_mode='upconv', padding=True, no BN, no residual).

    MXU operands use `compute_dtype` (bf16 by default) with f32 accumulation.
    """
    cd = compute_dtype
    N, Cin, Hx, Wx = x_nchw.shape
    Cup = params["w_up"].shape[1]
    Cbr = bridge_nchw.shape[1]
    Cc = Cup + Cbr
    Cmid = params["w1"].shape[3]
    Cout = params["w2"].shape[3]
    assert params["w1"].shape[2] == Cc, "conv1 in-channels must equal Cup + Cbr"
    H2, W2 = 2 * Hx, 2 * Wx

    # NCHW -> NHWC.  TODO(synk): keep the network NHWC end-to-end.
    x = jnp.transpose(x_nchw, (0, 2, 3, 1)).astype(cd)
    # center-crop the bridge here (fused by XLA with the transpose), then
    # width-pack it: (N, H2, W2, Cbr) -> (N, H2, Wx, 2*Cbr), parity-major.
    Hb, Wb = bridge_nchw.shape[2], bridge_nchw.shape[3]
    oy, ox = (Hb - H2) // 2, (Wb - W2) // 2
    br = jnp.transpose(bridge_nchw[:, :, oy:oy + H2, ox:ox + W2], (0, 2, 3, 1))
    br_p = br.reshape(N, H2, Wx, 2 * Cbr).astype(cd)

    # ConvTranspose2d weight (Cin, Cup, 2, 2) -> (Cin, 4*Cup), columns (dy, dx, o)
    wup = jnp.transpose(params["w_up"], (0, 2, 3, 1)).reshape(Cin, 4 * Cup).astype(cd)
    bup = jnp.tile(params["b_up"], 4).reshape(1, 4 * Cup).astype(jnp.float32)
    w1_mid, w1_edge = _pack_conv_weights(params["w1"], cd)
    w2_mid, w2_edge = _pack_conv_weights(params["w2"], cd)
    b1 = params["b1"].reshape(1, Cmid).astype(jnp.float32)
    b2 = params["b2"].reshape(1, Cout).astype(jnp.float32)

    strip = _pick_strip(H2)
    hstrip = _pick_strip(Hx)
    Wxp = _PADL + _round_up(Wx + 1, 8)      # left halo + interior + >=1 right halo

    kernel = functools.partial(_fused_up_block_kernel, hstrip=hstrip, strip=strip)
    out_p = pl.pallas_call(
        kernel,
        out_shape=jax.ShapeDtypeStruct((N, H2, Wx, 2 * Cout), jnp.float32),
        grid=(N,),
        in_specs=[
            pl.BlockSpec((1, Hx, Wx, Cin), lambda n: (n, 0, 0, 0)),       # x
            pl.BlockSpec((1, H2, Wx, 2 * Cbr), lambda n: (n, 0, 0, 0)),   # bridge
            pl.BlockSpec((Cin, 4 * Cup), lambda n: (0, 0)),               # w_up
            pl.BlockSpec((1, 4 * Cup), lambda n: (0, 0)),                 # b_up
            pl.BlockSpec((2, 3, 2 * Cc, Cmid), lambda n: (0, 0, 0, 0)),   # w1 mid
            pl.BlockSpec((2, 3, Cc, Cmid), lambda n: (0, 0, 0, 0)),       # w1 edge
            pl.BlockSpec((1, Cmid), lambda n: (0, 0)),                    # b1
            pl.BlockSpec((2, 3, 2 * Cmid, Cout), lambda n: (0, 0, 0, 0)), # w2 mid
            pl.BlockSpec((2, 3, Cmid, Cout), lambda n: (0, 0, 0, 0)),     # w2 edge
            pl.BlockSpec((1, Cout), lambda n: (0, 0)),                    # b2
        ],
        out_specs=pl.BlockSpec((1, H2, Wx, 2 * Cout), lambda n: (n, 0, 0, 0)),
        scratch_shapes=[
            pltpu.VMEM((H2 + 2, Wxp, 2 * Cc), cd),    # padded cat (up | bridge)
            pltpu.VMEM((H2 + 2, Wxp, 2 * Cmid), cd),  # padded conv1 activations
        ],
        compiler_params=pltpu.CompilerParams(
            dimension_semantics=("parallel",),        # batch elements independent
            vmem_limit_bytes=_vmem_limit_bytes()),
    )(x, br_p, wup, bup, w1_mid, w1_edge, b1, w2_mid, w2_edge, b2)

    # un-pack width parity (free reshape) and return NCHW
    out = out_p.reshape(N, H2, W2, Cout)
    return jnp.transpose(out, (0, 3, 1, 2))


# -----------------------------------------------------------------------------
# Pure-JAX reference (for correctness check only)
# -----------------------------------------------------------------------------
def _conv3x3_same_ref(x, w, b):
    y = lax.conv_general_dilated(x, w, (1, 1), "SAME",
                                 dimension_numbers=("NHWC", "HWIO", "NHWC"))
    return y + b


def reference_forward(x_nchw, bridge_nchw, params):
    x = jnp.transpose(x_nchw, (0, 2, 3, 1))
    bridge = jnp.transpose(bridge_nchw, (0, 2, 3, 1))
    w_t, b_t = params["w_up"], params["b_up"]
    N, H, W, _ = x.shape
    Cout = w_t.shape[1]
    up = jnp.einsum("nhwc,coyx->nhywxo", x, w_t).reshape(N, 2 * H, 2 * W, Cout) + b_t
    dy = (bridge.shape[1] - 2 * H) // 2
    dx = (bridge.shape[2] - 2 * W) // 2
    crop1 = bridge[:, dy:dy + 2 * H, dx:dx + 2 * W, :]
    cat = jnp.concatenate([up, crop1], axis=-1)
    h1 = jnp.maximum(_conv3x3_same_ref(cat, params["w1"], params["b1"]), 0.0)
    h2 = jnp.maximum(_conv3x3_same_ref(h1, params["w2"], params["b2"]), 0.0)
    return jnp.transpose(h2, (0, 3, 1, 2))


if __name__ == "__main__":
    key = jax.random.PRNGKey(0)
    ks = jax.random.split(key, 8)

    in_size, out_size = 8, 4          # bridge carries in_size - out_size channels
    N, Hx, Wx = 2, 8, 8               # x spatial 8x8 -> up / output 16x16
    x = jax.random.normal(ks[0], (N, in_size, Hx, Wx), jnp.float32)
    bridge = jax.random.normal(ks[1], (N, in_size - out_size, 18, 18), jnp.float32)

    params = {
        # ConvTranspose2d(in_size, out_size, 2, 2): weight (Cin, Cout, 2, 2)
        "w_up": 0.1 * jax.random.normal(ks[2], (in_size, out_size, 2, 2), jnp.float32),
        "b_up": 0.1 * jax.random.normal(ks[3], (out_size,), jnp.float32),
        # Conv2d(in_size, out_size, 3, pad=1) / Conv2d(out, out, 3, pad=1), HWIO
        "w1": 0.1 * jax.random.normal(ks[4], (3, 3, in_size, out_size), jnp.float32),
        "b1": 0.1 * jax.random.normal(ks[5], (out_size,), jnp.float32),
        "w2": 0.1 * jax.random.normal(ks[6], (3, 3, out_size, out_size), jnp.float32),
        "b2": 0.1 * jax.random.normal(ks[7], (out_size,), jnp.float32),
    }

    ref = reference_forward(x, bridge, params)

    # f32 compute path: tight check against the pure-JAX reference.
    fwd_f32 = jax.jit(functools.partial(unet_up_block_forward,
                                        compute_dtype=jnp.float32))
    out_f32 = jax.block_until_ready(fwd_f32(x, bridge, params))
    assert out_f32.shape == (N, out_size, 2 * Hx, 2 * Wx), out_f32.shape
    assert jnp.allclose(out_f32, ref, atol=1e-4, rtol=1e-4), float(
        jnp.max(jnp.abs(out_f32 - ref)))

    # bf16 MXU-operand path (production default): bf16-level tolerance.
    fwd_bf16 = jax.jit(functools.partial(unet_up_block_forward,
                                         compute_dtype=jnp.bfloat16))
    out_bf16 = jax.block_until_ready(fwd_bf16(x, bridge, params))
    assert out_bf16.shape == (N, out_size, 2 * Hx, 2 * Wx), out_bf16.shape
    assert jnp.allclose(out_bf16, ref, atol=1e-1, rtol=1e-1), float(
        jnp.max(jnp.abs(out_bf16 - ref)))

    print("KERNEL_OK")
</pallas_src>

<mosaic_0001>
module attributes {stable_mosaic.version = 11 : i64} {
  func.func @_fused_up_block_kernel(%arg0: i32, %arg1: memref<1x8x8x8xf32, #tpu.memory_space<vmem>>, %arg2: memref<1x16x8x8xf32, #tpu.memory_space<vmem>>, %arg3: memref<8x16xf32, #tpu.memory_space<vmem>>, %arg4: memref<1x16xf32, #tpu.memory_space<vmem>>, %arg5: memref<2x3x16x4xf32, #tpu.memory_space<vmem>>, %arg6: memref<2x3x8x4xf32, #tpu.memory_space<vmem>>, %arg7: memref<1x4xf32, #tpu.memory_space<vmem>>, %arg8: memref<2x3x8x4xf32, #tpu.memory_space<vmem>>, %arg9: memref<2x3x4x4xf32, #tpu.memory_space<vmem>>, %arg10: memref<1x4xf32, #tpu.memory_space<vmem>>, %arg11: memref<1x16x8x8xf32, #tpu.memory_space<vmem>>, %arg12: memref<18x24x16xf32, #tpu.memory_space<vmem>>, %arg13: memref<18x24x8xf32, #tpu.memory_space<vmem>>) attributes {dimension_semantics = [#tpu.dimension_semantics<parallel>], iteration_bounds = array<i64: 2>, scalar_prefetch = 0 : i64, scratch_operands = 2 : i64, tpu.core_type = #tpu.core_type<tc>, window_params = [{transform_indices = @transform_0, window_bounds = array<i64: 1, 8, 8, 8>}, {transform_indices = @transform_1, window_bounds = array<i64: 1, 16, 8, 8>}, {pipeline_mode = #tpu.pipeline_mode<synchronous>, transform_indices = @transform_2, window_bounds = array<i64: 8, 16>}, {pipeline_mode = #tpu.pipeline_mode<synchronous>, transform_indices = @transform_3, window_bounds = array<i64: 1, 16>}, {pipeline_mode = #tpu.pipeline_mode<synchronous>, transform_indices = @transform_4, window_bounds = array<i64: 2, 3, 16, 4>}, {pipeline_mode = #tpu.pipeline_mode<synchronous>, transform_indices = @transform_5, window_bounds = array<i64: 2, 3, 8, 4>}, {pipeline_mode = #tpu.pipeline_mode<synchronous>, transform_indices = @transform_6, window_bounds = array<i64: 1, 4>}, {pipeline_mode = #tpu.pipeline_mode<synchronous>, transform_indices = @transform_7, window_bounds = array<i64: 2, 3, 8, 4>}, {pipeline_mode = #tpu.pipeline_mode<synchronous>, transform_indices = @transform_8, window_bounds = array<i64: 2, 3, 4, 4>}, {pipeline_mode = #tpu.pipeline_mode<synchronous>, transform_indices = @transform_9, window_bounds = array<i64: 1, 4>}, {transform_indices = @transform_10, window_bounds = array<i64: 1, 16, 8, 8>}]} {
    %cst = arith.constant 0.000000e+00 : f32
    %0 = vector.broadcast %cst : f32 to vector<1x24x16xf32>
    %c0 = arith.constant 0 : index
    %c0_0 = arith.constant 0 : index
    %c0_1 = arith.constant 0 : index
    %1 = vector.load %arg12[%c0, %c0_0, %c0_1] : memref<18x24x16xf32, #tpu.memory_space<vmem>>, vector<1x24x16xf32>
    tpu.vector_store %arg12[%c0, %c0_0, %c0_1], %0 {strides = array<i32>} : memref<18x24x16xf32, #tpu.memory_space<vmem>>, vector<1x24x16xf32>,
    %cst_2 = arith.constant 0.000000e+00 : f32
    %2 = vector.broadcast %cst_2 : f32 to vector<1x24x16xf32>
    %c17 = arith.constant 17 : index
    %c0_3 = arith.constant 0 : index
    %c0_4 = arith.constant 0 : index
    %3 = vector.load %arg12[%c17, %c0_3, %c0_4] : memref<18x24x16xf32, #tpu.memory_space<vmem>>, vector<1x24x16xf32>
    tpu.vector_store %arg12[%c17, %c0_3, %c0_4], %2 {strides = array<i32>} : memref<18x24x16xf32, #tpu.memory_space<vmem>>, vector<1x24x16xf32>,
    %cst_5 = arith.constant 0.000000e+00 : f32
    %4 = vector.broadcast %cst_5 : f32 to vector<18x8x16xf32>
    %c0_6 = arith.constant 0 : index
    %c0_7 = arith.constant 0 : index
    %c0_8 = arith.constant 0 : index
    %5 = vector.load %arg12[%c0_6, %c0_7, %c0_8] : memref<18x24x16xf32, #tpu.memory_space<vmem>>, vector<18x8x16xf32>
    tpu.vector_store %arg12[%c0_6, %c0_7, %c0_8], %4 {strides = array<i32>} : memref<18x24x16xf32, #tpu.memory_space<vmem>>, vector<18x8x16xf32>,
    %cst_9 = arith.constant 0.000000e+00 : f32
    %6 = vector.broadcast %cst_9 : f32 to vector<18x8x16xf32>
    %c0_10 = arith.constant 0 : index
    %c16 = arith.constant 16 : index
    %c0_11 = arith.constant 0 : index
    %7 = vector.load %arg12[%c0_10, %c16, %c0_11] : memref<18x24x16xf32, #tpu.memory_space<vmem>>, vector<18x8x16xf32>
    tpu.vector_store %arg12[%c0_10, %c16, %c0_11], %6 {strides = array<i32>} : memref<18x24x16xf32, #tpu.memory_space<vmem>>, vector<18x8x16xf32>,
    %cst_12 = arith.constant 0.000000e+00 : f32
    %8 = vector.broadcast %cst_12 : f32 to vector<1x24x8xf32>
    %c0_13 = arith.constant 0 : index
    %c0_14 = arith.constant 0 : index
    %c0_15 = arith.constant 0 : index
    %9 = vector.load %arg13[%c0_13, %c0_14, %c0_15] : memref<18x24x8xf32, #tpu.memory_space<vmem>>, vector<1x24x8xf32>
    tpu.vector_store %arg13[%c0_13, %c0_14, %c0_15], %8 {strides = array<i32>} : memref<18x24x8xf32, #tpu.memory_space<vmem>>, vector<1x24x8xf32>,
    %cst_16 = arith.constant 0.000000e+00 : f32
    %10 = vector.broadcast %cst_16 : f32 to vector<1x24x8xf32>
    %c17_17 = arith.constant 17 : index
    %c0_18 = arith.constant 0 : index
    %c0_19 = arith.constant 0 : index
    %11 = vector.load %arg13[%c17_17, %c0_18, %c0_19] : memref<18x24x8xf32, #tpu.memory_space<vmem>>, vector<1x24x8xf32>
    tpu.vector_store %arg13[%c17_17, %c0_18, %c0_19], %10 {strides = array<i32>} : memref<18x24x8xf32, #tpu.memory_space<vmem>>, vector<1x24x8xf32>,
    %cst_20 = arith.constant 0.000000e+00 : f32
    %12 = vector.broadcast %cst_20 : f32 to vector<18x8x8xf32>
    %c0_21 = arith.constant 0 : index
    %c0_22 = arith.constant 0 : index
    %c0_23 = arith.constant 0 : index
    %13 = vector.load %arg13[%c0_21, %c0_22, %c0_23] : memref<18x24x8xf32, #tpu.memory_space<vmem>>, vector<18x8x8xf32>
    tpu.vector_store %arg13[%c0_21, %c0_22, %c0_23], %12 {strides = array<i32>} : memref<18x24x8xf32, #tpu.memory_space<vmem>>, vector<18x8x8xf32>,
    %cst_24 = arith.constant 0.000000e+00 : f32
    %14 = vector.broadcast %cst_24 : f32 to vector<18x8x8xf32>
    %c0_25 = arith.constant 0 : index
    %c16_26 = arith.constant 16 : index
    %c0_27 = arith.constant 0 : index
    %15 = vector.load %arg13[%c0_25, %c16_26, %c0_27] : memref<18x24x8xf32, #tpu.memory_space<vmem>>, vector<18x8x8xf32>
    tpu.vector_store %arg13[%c0_25, %c16_26, %c0_27], %14 {strides = array<i32>} : memref<18x24x8xf32, #tpu.memory_space<vmem>>, vector<18x8x8xf32>,
    %c0_28 = arith.constant 0 : index
    %c0_29 = arith.constant 0 : index
    %16 = vector.load %arg3[%c0_28, %c0_29] : memref<8x16xf32, #tpu.memory_space<vmem>>, vector<8x16xf32>
    %c0_30 = arith.constant 0 : index
    %c0_31 = arith.constant 0 : index
    %17 = vector.load %arg4[%c0_30, %c0_31] : memref<1x16xf32, #tpu.memory_space<vmem>>, vector<1x16xf32>
    %c0_i32 = arith.constant 0 : i32
    %c8_i32 = arith.constant 8 : i32
    %18 = arith.muli %c0_i32, %c8_i32 : i32
    %19 = tpu.assume_multiple %18, 8 : i32
    %c0_32 = arith.constant 0 : index
    %20 = arith.index_cast %19 : i32 to index
    %c0_33 = arith.constant 0 : index
    %c0_34 = arith.constant 0 : index
    %21 = vector.load %arg1[%c0_32, %20, %c0_33, %c0_34] : memref<1x8x8x8xf32, #tpu.memory_space<vmem>>, vector<1x8x8x8xf32>
    %22 = vector.shape_cast %21 : vector<1x8x8x8xf32> to vector<8x8x8xf32>
    %23 = vector.shape_cast %22 : vector<8x8x8xf32> to vector<64x8xf32>
    %cst_35 = arith.constant dense<0.000000e+00> : vector<64x16xf32>
    %24 = tpu.matmul %23, %16, %cst_35 {dimension_numbers = #tpu.dot_dimension_numbers<[1], [0], [0], [1], [0, 0, 1, 1], [], []>} : vector<64x8xf32>, vector<8x16xf32>, vector<64x16xf32> -> vector<64x16xf32>
    %25 = vector.broadcast %17 : vector<1x16xf32> to vector<64x16xf32>
    %26 = arith.addf %24, %25 : vector<64x16xf32>
    %27 = vector.extract_strided_slice %26 {offsets = [0, 0], sizes = [64, 8], strides = [1, 1]} : vector<64x16xf32> to vector<64x8xf32>
    %28 = vector.shape_cast %27 : vector<64x8xf32> to vector<8x8x8xf32>
    %29 = vector.extract_strided_slice %26 {offsets = [0, 8], sizes = [64, 8], strides = [1, 1]} : vector<64x16xf32> to vector<64x8xf32>
    %30 = vector.shape_cast %29 : vector<64x8xf32> to vector<8x8x8xf32>
    %31 = vector.shape_cast %28 : vector<8x8x8xf32> to vector<8x1x8x8xf32>
    %32 = vector.shape_cast %30 : vector<8x8x8xf32> to vector<8x1x8x8xf32>
    %33 = tpu.concatenate %31, %32 in 1 : vector<8x1x8x8xf32>, vector<8x1x8x8xf32> -> vector<8x2x8x8xf32>
    %34 = vector.shape_cast %33 : vector<8x2x8x8xf32> to vector<16x8x8xf32>
    %c2_i32 = arith.constant 2 : i32
    %35 = arith.muli %c2_i32, %19 : i32
    %c0_36 = arith.constant 0 : index
    %36 = arith.index_cast %35 : i32 to index
    %c0_37 = arith.constant 0 : index
    %c0_38 = arith.constant 0 : index
    %37 = vector.load %arg2[%c0_36, %36, %c0_37, %c0_38] : memref<1x16x8x8xf32, #tpu.memory_space<vmem>>, vector<1x16x8x8xf32>
    %38 = vector.shape_cast %37 : vector<1x16x8x8xf32> to vector<16x8x8xf32>
    %c2_i32_39 = arith.constant 2 : i32
    %39 = arith.muli %c2_i32_39, %19 : i32
    %c1_i32 = arith.constant 1 : i32
    %40 = arith.addi %c1_i32, %39 : i32
    %41 = vector.extract_strided_slice %34 {offsets = [0, 0, 0], sizes = [16, 8, 4], strides = [1, 1, 1]} : vector<16x8x8xf32> to vector<16x8x4xf32>
    %42 = arith.index_cast %40 : i32 to index
    %c8 = arith.constant 8 : index
    %c0_40 = arith.constant 0 : index
    %43 = vector.load %arg12[%42, %c8, %c0_40] : memref<18x24x16xf32, #tpu.memory_space<vmem>>, vector<16x8x4xf32>
    tpu.vector_store %arg12[%42, %c8, %c0_40], %41 {strides = array<i32>} : memref<18x24x16xf32, #tpu.memory_space<vmem>>, vector<16x8x4xf32>,
    %44 = vector.extract_strided_slice %38 {offsets = [0, 0, 0], sizes = [16, 8, 4], strides = [1, 1, 1]} : vector<16x8x8xf32> to vector<16x8x4xf32>
    %45 = arith.index_cast %40 : i32 to index
    %c8_41 = arith.constant 8 : index
    %c4 = arith.constant 4 : index
    %46 = vector.load %arg12[%45, %c8_41, %c4] : memref<18x24x16xf32, #tpu.memory_space<vmem>>, vector<16x8x4xf32>
    tpu.vector_store %arg12[%45, %c8_41, %c4], %44 {strides = array<i32>} : memref<18x24x16xf32, #tpu.memory_space<vmem>>, vector<16x8x4xf32>,
    %47 = vector.extract_strided_slice %34 {offsets = [0, 0, 4], sizes = [16, 8, 4], strides = [1, 1, 1]} : vector<16x8x8xf32> to vector<16x8x4xf32>
    %48 = arith.index_cast %40 : i32 to index
    %c8_42 = arith.constant 8 : index
    %c8_43 = arith.constant 8 : index
    %49 = vector.load %arg12[%48, %c8_42, %c8_43] : memref<18x24x16xf32, #tpu.memory_space<vmem>>, vector<16x8x4xf32>
    tpu.vector_store %arg12[%48, %c8_42, %c8_43], %47 {strides = array<i32>} : memref<18x24x16xf32, #tpu.memory_space<vmem>>, vector<16x8x4xf32>,
    %50 = vector.extract_strided_slice %38 {offsets = [0, 0, 4], sizes = [16, 8, 4], strides = [1, 1, 1]} : vector<16x8x8xf32> to vector<16x8x4xf32>
    %51 = arith.index_cast %40 : i32 to index
    %c8_44 = arith.constant 8 : index
    %c12 = arith.constant 12 : index
    %52 = vector.load %arg12[%51, %c8_44, %c12] : memref<18x24x16xf32, #tpu.memory_space<vmem>>, vector<16x8x4xf32>
    tpu.vector_store %arg12[%51, %c8_44, %c12], %50 {strides = array<i32>} : memref<18x24x16xf32, #tpu.memory_space<vmem>>, vector<16x8x4xf32>,
    %c1_i32_45 = arith.constant 1 : i32
    %c0_i32_46 = arith.constant 0 : i32
    %c2_i32_47 = arith.constant 2 : i32
    %53 = arith.addi %c0_i32_46, %c2_i32_47 : i32
    %c1_i32_48 = arith.constant 1 : i32
    scf.for %arg14 = %c0_i32_46 to %53 step %c1_i32_48  : i32 {
      %c8_i32_54 = arith.constant 8 : i32
      %55 = arith.muli %arg14, %c8_i32_54 : i32
      %56 = tpu.assume_multiple %55, 8 : i32
      %c0_55 = arith.constant 0 : index
      %c0_56 = arith.constant 0 : index
      %57 = vector.load %arg7[%c0_55, %c0_56] : memref<1x4xf32, #tpu.memory_space<vmem>>, vector<1x4xf32>
      %cst_57 = arith.constant 0.000000e+00 : f32
      %58 = vector.broadcast %cst_57 : f32 to vector<64x4xf32>
      %cst_58 = arith.constant 0.000000e+00 : f32
      %59 = vector.broadcast %cst_58 : f32 to vector<64x4xf32>
      %c0_i32_59 = arith.constant 0 : i32
      %60 = arith.addi %56, %c0_i32_59 : i32
      %61 = arith.index_cast %60 : i32 to index
      %c8_60 = arith.constant 8 : index
      %c0_61 = arith.constant 0 : index
      %62 = vector.load %arg12[%61, %c8_60, %c0_61] : memref<18x24x16xf32, #tpu.memory_space<vmem>>, vector<8x8x16xf32>
      %63 = vector.shape_cast %62 : vector<8x8x16xf32> to vector<64x16xf32>
      %64 = arith.index_cast %60 : i32 to index
      %c7 = arith.constant 7 : index
      %c8_62 = arith.constant 8 : index
      %65 = vector.load %arg12[%64, %c7, %c8_62] : memref<18x24x16xf32, #tpu.memory_space<vmem>>, vector<8x8x8xf32>
      %66 = vector.shape_cast %65 : vector<8x8x8xf32> to vector<64x8xf32>
      %67 = arith.index_cast %60 : i32 to index
      %c9 = arith.constant 9 : index
      %c0_63 = arith.constant 0 : index
      %68 = vector.load %arg12[%67, %c9, %c0_63] : memref<18x24x16xf32, #tpu.memory_space<vmem>>, vector<8x8x8xf32>
      %69 = vector.shape_cast %68 : vector<8x8x8xf32> to vector<64x8xf32>
      %c0_64 = arith.constant 0 : index
      %c0_65 = arith.constant 0 : index
      %c0_66 = arith.constant 0 : index
      %c0_67 = arith.constant 0 : index
      %70 = vector.load %arg5[%c0_64, %c0_65, %c0_66, %c0_67] : memref<2x3x16x4xf32, #tpu.memory_space<vmem>>, vector<1x1x16x4xf32>
      %71 = vector.shape_cast %70 : vector<1x1x16x4xf32> to vector<16x4xf32>
      %cst_68 = arith.constant dense<0.000000e+00> : vector<64x4xf32>
      %72 = tpu.matmul %63, %71, %cst_68 {dimension_numbers = #tpu.dot_dimension_numbers<[1], [0], [0], [1], [0, 0, 1, 1], [], []>} : vector<64x16xf32>, vector<16x4xf32>, vector<64x4xf32> -> vector<64x4xf32>
      %73 = arith.addf %58, %72 : vector<64x4xf32>
      %c0_69 = arith.constant 0 : index
      %c0_70 = arith.constant 0 : index
      %c0_71 = arith.constant 0 : index
      %c0_72 = arith.constant 0 : index
      %74 = vector.load %arg6[%c0_69, %c0_70, %c0_71, %c0_72] : memref<2x3x8x4xf32, #tpu.memory_space<vmem>>, vector<1x1x8x4xf32>
      %75 = vector.shape_cast %74 : vector<1x1x8x4xf32> to vector<8x4xf32>
      %cst_73 = arith.constant dense<0.000000e+00> : vector<64x4xf32>
      %76 = tpu.matmul %66, %75, %cst_73 {dimension_numbers = #tpu.dot_dimension_numbers<[1], [0], [0], [1], [0, 0, 1, 1], [], []>} : vector<64x8xf32>, vector<8x4xf32>, vector<64x4xf32> -> vector<64x4xf32>
      %77 = arith.addf %73, %76 : vector<64x4xf32>
      %c1 = arith.constant 1 : index
      %c0_74 = arith.constant 0 : index
      %c0_75 = arith.constant 0 : index
      %c0_76 = arith.constant 0 : index
      %78 = vector.load %arg5[%c1, %c0_74, %c0_75, %c0_76] : memref<2x3x16x4xf32, #tpu.memory_space<vmem>>, vector<1x1x16x4xf32>
      %79 = vector.shape_cast %78 : vector<1x1x16x4xf32> to vector<16x4xf32>
      %cst_77 = arith.constant dense<0.000000e+00> : vector<64x4xf32>
      %80 = tpu.matmul %63, %79, %cst_77 {dimension_numbers = #tpu.dot_dimension_numbers<[1], [0], [0], [1], [0, 0, 1, 1], [], []>} : vector<64x16xf32>, vector<16x4xf32>, vector<64x4xf32> -> vector<64x4xf32>
      %81 = arith.addf %59, %80 : vector<64x4xf32>
      %c1_78 = arith.constant 1 : index
      %c0_79 = arith.constant 0 : index
      %c0_80 = arith.constant 0 : index
      %c0_81 = arith.constant 0 : index
      %82 = vector.load %arg6[%c1_78, %c0_79, %c0_80, %c0_81] : memref<2x3x8x4xf32, #tpu.memory_space<vmem>>, vector<1x1x8x4xf32>
      %83 = vector.shape_cast %82 : vector<1x1x8x4xf32> to vector<8x4xf32>
      %cst_82 = arith.constant dense<0.000000e+00> : vector<64x4xf32>
      %84 = tpu.matmul %69, %83, %cst_82 {dimension_numbers = #tpu.dot_dimension_numbers<[1], [0], [0], [1], [0, 0, 1, 1], [], []>} : vector<64x8xf32>, vector<8x4xf32>, vector<64x4xf32> -> vector<64x4xf32>
      %85 = arith.addf %81, %84 : vector<64x4xf32>
      %c1_i32_83 = arith.constant 1 : i32
      %86 = arith.addi %56, %c1_i32_83 : i32
      %87 = arith.index_cast %86 : i32 to index
      %c8_84 = arith.constant 8 : index
      %c0_85 = arith.constant 0 : index
      %88 = vector.load %arg12[%87, %c8_84, %c0_85] : memref<18x24x16xf32, #tpu.memory_space<vmem>>, vector<8x8x16xf32>
      %89 = vector.shape_cast %88 : vector<8x8x16xf32> to vector<64x16xf32>
      %90 = arith.index_cast %86 : i32 to index
      %c7_86 = arith.constant 7 : index
      %c8_87 = arith.constant 8 : index
      %91 = vector.load %arg12[%90, %c7_86, %c8_87] : memref<18x24x16xf32, #tpu.memory_space<vmem>>, vector<8x8x8xf32>
      %92 = vector.shape_cast %91 : vector<8x8x8xf32> to vector<64x8xf32>
      %93 = arith.index_cast %86 : i32 to index
      %c9_88 = arith.constant 9 : index
      %c0_89 = arith.constant 0 : index
      %94 = vector.load %arg12[%93, %c9_88, %c0_89] : memref<18x24x16xf32, #tpu.memory_space<vmem>>, vector<8x8x8xf32>
      %95 = vector.shape_cast %94 : vector<8x8x8xf32> to vector<64x8xf32>
      %c0_90 = arith.constant 0 : index
      %c1_91 = arith.constant 1 : index
      %c0_92 = arith.constant 0 : index
      %c0_93 = arith.constant 0 : index
      %96 = vector.load %arg5[%c0_90, %c1_91, %c0_92, %c0_93] : memref<2x3x16x4xf32, #tpu.memory_space<vmem>>, vector<1x1x16x4xf32>
      %97 = vector.shape_cast %96 : vector<1x1x16x4xf32> to vector<16x4xf32>
      %cst_94 = arith.constant dense<0.000000e+00> : vector<64x4xf32>
      %98 = tpu.matmul %89, %97, %cst_94 {dimension_numbers = #tpu.dot_dimension_numbers<[1], [0], [0], [1], [0, 0, 1, 1], [], []>} : vector<64x16xf32>, vector<16x4xf32>, vector<64x4xf32> -> vector<64x4xf32>
      %99 = arith.addf %77, %98 : vector<64x4xf32>
      %c0_95 = arith.constant 0 : index
      %c1_96 = arith.constant 1 : index
      %c0_97 = arith.constant 0 : index
      %c0_98 = arith.constant 0 : index
      %100 = vector.load %arg6[%c0_95, %c1_96, %c0_97, %c0_98] : memref<2x3x8x4xf32, #tpu.memory_space<vmem>>, vector<1x1x8x4xf32>
      %101 = vector.shape_cast %100 : vector<1x1x8x4xf32> to vector<8x4xf32>
      %cst_99 = arith.constant dense<0.000000e+00> : vector<64x4xf32>
      %102 = tpu.matmul %92, %101, %cst_99 {dimension_numbers = #tpu.dot_dimension_numbers<[1], [0], [0], [1], [0, 0, 1, 1], [], []>} : vector<64x8xf32>, vector<8x4xf32>, vector<64x4xf32> -> vector<64x4xf32>
      %103 = arith.addf %99, %102 : vector<64x4xf32>
      %c1_100 = arith.constant 1 : index
      %c1_101 = arith.constant 1 : index
      %c0_102 = arith.constant 0 : index
      %c0_103 = arith.constant 0 : index
      %104 = vector.load %arg5[%c1_100, %c1_101, %c0_102, %c0_103] : memref<2x3x16x4xf32, #tpu.memory_space<vmem>>, vector<1x1x16x4xf32>
      %105 = vector.shape_cast %104 : vector<1x1x16x4xf32> to vector<16x4xf32>
      %cst_104 = arith.constant dense<0.000000e+00> : vector<64x4xf32>
      %106 = tpu.matmul %89, %105, %cst_104 {dimension_numbers = #tpu.dot_dimension_numbers<[1], [0], [0], [1], [0, 0, 1, 1], [], []>} : vector<64x16xf32>, vector<16x4xf32>, vector<64x4xf32> -> vector<64x4xf32>
      %107 = arith.addf %85, %106 : vector<64x4xf32>
      %c1_105 = arith.constant 1 : index
      %c1_106 = arith.constant 1 : index
      %c0_107 = arith.constant 0 : index
      %c0_108 = arith.constant 0 : index
      %108 = vector.load %arg6[%c1_105, %c1_106, %c0_107, %c0_108] : memref<2x3x8x4xf32, #tpu.memory_space<vmem>>, vector<1x1x8x4xf32>
      %109 = vector.shape_cast %108 : vector<1x1x8x4xf32> to vector<8x4xf32>
      %cst_109 = arith.constant dense<0.000000e+00> : vector<64x4xf32>
      %110 = tpu.matmul %95, %109, %cst_109 {dimension_numbers = #tpu.dot_dimension_numbers<[1], [0], [0], [1], [0, 0, 1, 1], [], []>} : vector<64x8xf32>, vector<8x4xf32>, vector<64x4xf32> -> vector<64x4xf32>
      %111 = arith.addf %107, %110 : vector<64x4xf32>
      %c2_i32_110 = arith.constant 2 : i32
      %112 = arith.addi %56, %c2_i32_110 : i32
      %113 = arith.index_cast %112 : i32 to index
      %c8_111 = arith.constant 8 : index
      %c0_112 = arith.constant 0 : index
      %114 = vector.load %arg12[%113, %c8_111, %c0_112] : memref<18x24x16xf32, #tpu.memory_space<vmem>>, vector<8x8x16xf32>
      %115 = vector.shape_cast %114 : vector<8x8x16xf32> to vector<64x16xf32>
      %116 = arith.index_cast %112 : i32 to index
      %c7_113 = arith.constant 7 : index
      %c8_114 = arith.constant 8 : index
      %117 = vector.load %arg12[%116, %c7_113, %c8_114] : memref<18x24x16xf32, #tpu.memory_space<vmem>>, vector<8x8x8xf32>
      %118 = vector.shape_cast %117 : vector<8x8x8xf32> to vector<64x8xf32>
      %119 = arith.index_cast %112 : i32 to index
      %c9_115 = arith.constant 9 : index
      %c0_116 = arith.constant 0 : index
      %120 = vector.load %arg12[%119, %c9_115, %c0_116] : memref<18x24x16xf32, #tpu.memory_space<vmem>>, vector<8x8x8xf32>
      %121 = vector.shape_cast %120 : vector<8x8x8xf32> to vector<64x8xf32>
      %c0_117 = arith.constant 0 : index
      %c2 = arith.constant 2 : index
      %c0_118 = arith.constant 0 : index
      %c0_119 = arith.constant 0 : index
      %122 = vector.load %arg5[%c0_117, %c2, %c0_118, %c0_119] : memref<2x3x16x4xf32, #tpu.memory_space<vmem>>, vector<1x1x16x4xf32>
      %123 = vector.shape_cast %122 : vector<1x1x16x4xf32> to vector<16x4xf32>
      %cst_120 = arith.constant dense<0.000000e+00> : vector<64x4xf32>
      %124 = tpu.matmul %115, %123, %cst_120 {dimension_numbers = #tpu.dot_dimension_numbers<[1], [0], [0], [1], [0, 0, 1, 1], [], []>} : vector<64x16xf32>, vector<16x4xf32>, vector<64x4xf32> -> vector<64x4xf32>
      %125 = arith.addf %103, %124 : vector<64x4xf32>
      %c0_121 = arith.constant 0 : index
      %c2_122 = arith.constant 2 : index
      %c0_123 = arith.constant 0 : index
      %c0_124 = arith.constant 0 : index
      %126 = vector.load %arg6[%c0_121, %c2_122, %c0_123, %c0_124] : memref<2x3x8x4xf32, #tpu.memory_space<vmem>>, vector<1x1x8x4xf32>
      %127 = vector.shape_cast %126 : vector<1x1x8x4xf32> to vector<8x4xf32>
      %cst_125 = arith.constant dense<0.000000e+00> : vector<64x4xf32>
      %128 = tpu.matmul %118, %127, %cst_125 {dimension_numbers = #tpu.dot_dimension_numbers<[1], [0], [0], [1], [0, 0, 1, 1], [], []>} : vector<64x8xf32>, vector<8x4xf32>, vector<64x4xf32> -> vector<64x4xf32>
      %129 = arith.addf %125, %128 : vector<64x4xf32>
      %c1_126 = arith.constant 1 : index
      %c2_127 = arith.constant 2 : index
      %c0_128 = arith.constant 0 : index
      %c0_129 = arith.constant 0 : index
      %130 = vector.load %arg5[%c1_126, %c2_127, %c0_128, %c0_129] : memref<2x3x16x4xf32, #tpu.memory_space<vmem>>, vector<1x1x16x4xf32>
      %131 = vector.shape_cast %130 : vector<1x1x16x4xf32> to vector<16x4xf32>
      %cst_130 = arith.constant dense<0.000000e+00> : vector<64x4xf32>
      %132 = tpu.matmul %115, %131, %cst_130 {dimension_numbers = #tpu.dot_dimension_numbers<[1], [0], [0], [1], [0, 0, 1, 1], [], []>} : vector<64x16xf32>, vector<16x4xf32>, vector<64x4xf32> -> vector<64x4xf32>
      %133 = arith.addf %111, %132 : vector<64x4xf32>
      %c1_131 = arith.constant 1 : index
      %c2_132 = arith.constant 2 : index
      %c0_133 = arith.constant 0 : index
      %c0_134 = arith.constant 0 : index
      %134 = vector.load %arg6[%c1_131, %c2_132, %c0_133, %c0_134] : memref<2x3x8x4xf32, #tpu.memory_space<vmem>>, vector<1x1x8x4xf32>
      %135 = vector.shape_cast %134 : vector<1x1x8x4xf32> to vector<8x4xf32>
      %cst_135 = arith.constant dense<0.000000e+00> : vector<64x4xf32>
      %136 = tpu.matmul %121, %135, %cst_135 {dimension_numbers = #tpu.dot_dimension_numbers<[1], [0], [0], [1], [0, 0, 1, 1], [], []>} : vector<64x8xf32>, vector<8x4xf32>, vector<64x4xf32> -> vector<64x4xf32>
      %137 = arith.addf %133, %136 : vector<64x4xf32>
      %138 = vector.broadcast %57 : vector<1x4xf32> to vector<64x4xf32>
      %139 = arith.addf %129, %138 : vector<64x4xf32>
      %cst_136 = arith.constant 0.000000e+00 : f32
      %140 = vector.broadcast %cst_136 : f32 to vector<64x4xf32>
      %141 = arith.maximumf %139, %140 : vector<64x4xf32>
      %142 = vector.shape_cast %141 : vector<64x4xf32> to vector<8x8x4xf32>
      %143 = vector.broadcast %57 : vector<1x4xf32> to vector<64x4xf32>
      %144 = arith.addf %137, %143 : vector<64x4xf32>
      %cst_137 = arith.constant 0.000000e+00 : f32
      %145 = vector.broadcast %cst_137 : f32 to vector<64x4xf32>
      %146 = arith.maximumf %144, %145 : vector<64x4xf32>
      %147 = vector.shape_cast %146 : vector<64x4xf32> to vector<8x8x4xf32>
      %c1_i32_138 = arith.constant 1 : i32
      %148 = arith.addi %c1_i32_138, %56 : i32
      %149 = arith.index_cast %148 : i32 to index
      %c8_139 = arith.constant 8 : index
      %c0_140 = arith.constant 0 : index
      %150 = vector.load %arg13[%149, %c8_139, %c0_140] : memref<18x24x8xf32, #tpu.memory_space<vmem>>, vector<8x8x4xf32>
      tpu.vector_store %arg13[%149, %c8_139, %c0_140], %142 {strides = array<i32>} : memref<18x24x8xf32, #tpu.memory_space<vmem>>, vector<8x8x4xf32>,
      %151 = arith.index_cast %148 : i32 to index
      %c8_141 = arith.constant 8 : index
      %c4_142 = arith.constant 4 : index
      %152 = vector.load %arg13[%151, %c8_141, %c4_142] : memref<18x24x8xf32, #tpu.memory_space<vmem>>, vector<8x8x4xf32>
      tpu.vector_store %arg13[%151, %c8_141, %c4_142], %147 {strides = array<i32>} : memref<18x24x8xf32, #tpu.memory_space<vmem>>, vector<8x8x4xf32>,
    }
    %c2_i32_49 = arith.constant 2 : i32
    %c0_i32_50 = arith.constant 0 : i32
    %c2_i32_51 = arith.constant 2 : i32
    %54 = arith.addi %c0_i32_50, %c2_i32_51 : i32
    %c1_i32_52 = arith.constant 1 : i32
    scf.for %arg14 = %c0_i32_50 to %54 step %c1_i32_52  : i32 {
      %c8_i32_54 = arith.constant 8 : i32
      %55 = arith.muli %arg14, %c8_i32_54 : i32
      %56 = tpu.assume_multiple %55, 8 : i32
      %c0_55 = arith.constant 0 : index
      %c0_56 = arith.constant 0 : index
      %57 = vector.load %arg10[%c0_55, %c0_56] : memref<1x4xf32, #tpu.memory_space<vmem>>, vector<1x4xf32>
      %cst_57 = arith.constant 0.000000e+00 : f32
      %58 = vector.broadcast %cst_57 : f32 to vector<64x4xf32>
      %cst_58 = arith.constant 0.000000e+00 : f32
      %59 = vector.broadcast %cst_58 : f32 to vector<64x4xf32>
      %c0_i32_59 = arith.constant 0 : i32
      %60 = arith.addi %56, %c0_i32_59 : i32
      %61 = arith.index_cast %60 : i32 to index
      %c8_60 = arith.constant 8 : index
      %c0_61 = arith.constant 0 : index
      %62 = vector.load %arg13[%61, %c8_60, %c0_61] : memref<18x24x8xf32, #tpu.memory_space<vmem>>, vector<8x8x8xf32>
      %63 = vector.shape_cast %62 : vector<8x8x8xf32> to vector<64x8xf32>
      %64 = arith.index_cast %60 : i32 to index
      %c7 = arith.constant 7 : index
      %c4_62 = arith.constant 4 : index
      %65 = vector.load %arg13[%64, %c7, %c4_62] : memref<18x24x8xf32, #tpu.memory_space<vmem>>, vector<8x8x4xf32>
      %66 = vector.shape_cast %65 : vector<8x8x4xf32> to vector<64x4xf32>
      %67 = arith.index_cast %60 : i32 to index
      %c9 = arith.constant 9 : index
      %c0_63 = arith.constant 0 : index
      %68 = vector.load %arg13[%67, %c9, %c0_63] : memref<18x24x8xf32, #tpu.memory_space<vmem>>, vector<8x8x4xf32>
      %69 = vector.shape_cast %68 : vector<8x8x4xf32> to vector<64x4xf32>
      %c0_64 = arith.constant 0 : index
      %c0_65 = arith.constant 0 : index
      %c0_66 = arith.constant 0 : index
      %c0_67 = arith.constant 0 : index
      %70 = vector.load %arg8[%c0_64, %c0_65, %c0_66, %c0_67] : memref<2x3x8x4xf32, #tpu.memory_space<vmem>>, vector<1x1x8x4xf32>
      %71 = vector.shape_cast %70 : vector<1x1x8x4xf32> to vector<8x4xf32>
      %cst_68 = arith.constant dense<0.000000e+00> : vector<64x4xf32>
      %72 = tpu.matmul %63, %71, %cst_68 {dimension_numbers = #tpu.dot_dimension_numbers<[1], [0], [0], [1], [0, 0, 1, 1], [], []>} : vector<64x8xf32>, vector<8x4xf32>, vector<64x4xf32> -> vector<64x4xf32>
      %73 = arith.addf %58, %72 : vector<64x4xf32>
      %c0_69 = arith.constant 0 : index
      %c0_70 = arith.constant 0 : index
      %c0_71 = arith.constant 0 : index
      %c0_72 = arith.constant 0 : index
      %74 = vector.load %arg9[%c0_69, %c0_70, %c0_71, %c0_72] : memref<2x3x4x4xf32, #tpu.memory_space<vmem>>, vector<1x1x4x4xf32>
      %75 = vector.shape_cast %74 : vector<1x1x4x4xf32> to vector<4x4xf32>
      %cst_73 = arith.constant dense<0.000000e+00> : vector<64x4xf32>
      %76 = tpu.matmul %66, %75, %cst_73 {dimension_numbers = #tpu.dot_dimension_numbers<[1], [0], [0], [1], [0, 0, 1, 1], [], []>} : vector<64x4xf32>, vector<4x4xf32>, vector<64x4xf32> -> vector<64x4xf32>
      %77 = arith.addf %73, %76 : vector<64x4xf32>
      %c1 = arith.constant 1 : index
      %c0_74 = arith.constant 0 : index
      %c0_75 = arith.constant 0 : index
      %c0_76 = arith.constant 0 : index
      %78 = vector.load %arg8[%c1, %c0_74, %c0_75, %c0_76] : memref<2x3x8x4xf32, #tpu.memory_space<vmem>>, vector<1x1x8x4xf32>
      %79 = vector.shape_cast %78 : vector<1x1x8x4xf32> to vector<8x4xf32>
      %cst_77 = arith.constant dense<0.000000e+00> : vector<64x4xf32>
      %80 = tpu.matmul %63, %79, %cst_77 {dimension_numbers = #tpu.dot_dimension_numbers<[1], [0], [0], [1], [0, 0, 1, 1], [], []>} : vector<64x8xf32>, vector<8x4xf32>, vector<64x4xf32> -> vector<64x4xf32>
      %81 = arith.addf %59, %80 : vector<64x4xf32>
      %c1_78 = arith.constant 1 : index
      %c0_79 = arith.constant 0 : index
      %c0_80 = arith.constant 0 : index
      %c0_81 = arith.constant 0 : index
      %82 = vector.load %arg9[%c1_78, %c0_79, %c0_80, %c0_81] : memref<2x3x4x4xf32, #tpu.memory_space<vmem>>, vector<1x1x4x4xf32>
      %83 = vector.shape_cast %82 : vector<1x1x4x4xf32> to vector<4x4xf32>
      %cst_82 = arith.constant dense<0.000000e+00> : vector<64x4xf32>
      %84 = tpu.matmul %69, %83, %cst_82 {dimension_numbers = #tpu.dot_dimension_numbers<[1], [0], [0], [1], [0, 0, 1, 1], [], []>} : vector<64x4xf32>, vector<4x4xf32>, vector<64x4xf32> -> vector<64x4xf32>
      %85 = arith.addf %81, %84 : vector<64x4xf32>
      %c1_i32_83 = arith.constant 1 : i32
      %86 = arith.addi %56, %c1_i32_83 : i32
      %87 = arith.index_cast %86 : i32 to index
      %c8_84 = arith.constant 8 : index
      %c0_85 = arith.constant 0 : index
      %88 = vector.load %arg13[%87, %c8_84, %c0_85] : memref<18x24x8xf32, #tpu.memory_space<vmem>>, vector<8x8x8xf32>
      %89 = vector.shape_cast %88 : vector<8x8x8xf32> to vector<64x8xf32>
      %90 = arith.index_cast %86 : i32 to index
      %c7_86 = arith.constant 7 : index
      %c4_87 = arith.constant 4 : index
      %91 = vector.load %arg13[%90, %c7_86, %c4_87] : memref<18x24x8xf32, #tpu.memory_space<vmem>>, vector<8x8x4xf32>
      %92 = vector.shape_cast %91 : vector<8x8x4xf32> to vector<64x4xf32>
      %93 = arith.index_cast %86 : i32 to index
      %c9_88 = arith.constant 9 : index
      %c0_89 = arith.constant 0 : index
      %94 = vector.load %arg13[%93, %c9_88, %c0_89] : memref<18x24x8xf32, #tpu.memory_space<vmem>>, vector<8x8x4xf32>
      %95 = vector.shape_cast %94 : vector<8x8x4xf32> to vector<64x4xf32>
      %c0_90 = arith.constant 0 : index
      %c1_91 = arith.constant 1 : index
      %c0_92 = arith.constant 0 : index
      %c0_93 = arith.constant 0 : index
      %96 = vector.load %arg8[%c0_90, %c1_91, %c0_92, %c0_93] : memref<2x3x8x4xf32, #tpu.memory_space<vmem>>, vector<1x1x8x4xf32>
      %97 = vector.shape_cast %96 : vector<1x1x8x4xf32> to vector<8x4xf32>
      %cst_94 = arith.constant dense<0.000000e+00> : vector<64x4xf32>
      %98 = tpu.matmul %89, %97, %cst_94 {dimension_numbers = #tpu.dot_dimension_numbers<[1], [0], [0], [1], [0, 0, 1, 1], [], []>} : vector<64x8xf32>, vector<8x4xf32>, vector<64x4xf32> -> vector<64x4xf32>
      %99 = arith.addf %77, %98 : vector<64x4xf32>
      %c0_95 = arith.constant 0 : index
      %c1_96 = arith.constant 1 : index
      %c0_97 = arith.constant 0 : index
      %c0_98 = arith.constant 0 : index
      %100 = vector.load %arg9[%c0_95, %c1_96, %c0_97, %c0_98] : memref<2x3x4x4xf32, #tpu.memory_space<vmem>>, vector<1x1x4x4xf32>
      %101 = vector.shape_cast %100 : vector<1x1x4x4xf32> to vector<4x4xf32>
      %cst_99 = arith.constant dense<0.000000e+00> : vector<64x4xf32>
      %102 = tpu.matmul %92, %101, %cst_99 {dimension_numbers = #tpu.dot_dimension_numbers<[1], [0], [0], [1], [0, 0, 1, 1], [], []>} : vector<64x4xf32>, vector<4x4xf32>, vector<64x4xf32> -> vector<64x4xf32>
      %103 = arith.addf %99, %102 : vector<64x4xf32>
      %c1_100 = arith.constant 1 : index
      %c1_101 = arith.constant 1 : index
      %c0_102 = arith.constant 0 : index
      %c0_103 = arith.constant 0 : index
      %104 = vector.load %arg8[%c1_100, %c1_101, %c0_102, %c0_103] : memref<2x3x8x4xf32, #tpu.memory_space<vmem>>, vector<1x1x8x4xf32>
      %105 = vector.shape_cast %104 : vector<1x1x8x4xf32> to vector<8x4xf32>
      %cst_104 = arith.constant dense<0.000000e+00> : vector<64x4xf32>
      %106 = tpu.matmul %89, %105, %cst_104 {dimension_numbers = #tpu.dot_dimension_numbers<[1], [0], [0], [1], [0, 0, 1, 1], [], []>} : vector<64x8xf32>, vector<8x4xf32>, vector<64x4xf32> -> vector<64x4xf32>
      %107 = arith.addf %85, %106 : vector<64x4xf32>
      %c1_105 = arith.constant 1 : index
      %c1_106 = arith.constant 1 : index
      %c0_107 = arith.constant 0 : index
      %c0_108 = arith.constant 0 : index
      %108 = vector.load %arg9[%c1_105, %c1_106, %c0_107, %c0_108] : memref<2x3x4x4xf32, #tpu.memory_space<vmem>>, vector<1x1x4x4xf32>
      %109 = vector.shape_cast %108 : vector<1x1x4x4xf32> to vector<4x4xf32>
      %cst_109 = arith.constant dense<0.000000e+00> : vector<64x4xf32>
      %110 = tpu.matmul %95, %109, %cst_109 {dimension_numbers = #tpu.dot_dimension_numbers<[1], [0], [0], [1], [0, 0, 1, 1], [], []>} : vector<64x4xf32>, vector<4x4xf32>, vector<64x4xf32> -> vector<64x4xf32>
      %111 = arith.addf %107, %110 : vector<64x4xf32>
      %c2_i32_110 = arith.constant 2 : i32
      %112 = arith.addi %56, %c2_i32_110 : i32
      %113 = arith.index_cast %112 : i32 to index
      %c8_111 = arith.constant 8 : index
      %c0_112 = arith.constant 0 : index
      %114 = vector.load %arg13[%113, %c8_111, %c0_112] : memref<18x24x8xf32, #tpu.memory_space<vmem>>, vector<8x8x8xf32>
      %115 = vector.shape_cast %114 : vector<8x8x8xf32> to vector<64x8xf32>
      %116 = arith.index_cast %112 : i32 to index
      %c7_113 = arith.constant 7 : index
      %c4_114 = arith.constant 4 : index
      %117 = vector.load %arg13[%116, %c7_113, %c4_114] : memref<18x24x8xf32, #tpu.memory_space<vmem>>, vector<8x8x4xf32>
      %118 = vector.shape_cast %117 : vector<8x8x4xf32> to vector<64x4xf32>
      %119 = arith.index_cast %112 : i32 to index
      %c9_115 = arith.constant 9 : index
      %c0_116 = arith.constant 0 : index
      %120 = vector.load %arg13[%119, %c9_115, %c0_116] : memref<18x24x8xf32, #tpu.memory_space<vmem>>, vector<8x8x4xf32>
      %121 = vector.shape_cast %120 : vector<8x8x4xf32> to vector<64x4xf32>
      %c0_117 = arith.constant 0 : index
      %c2 = arith.constant 2 : index
      %c0_118 = arith.constant 0 : index
      %c0_119 = arith.constant 0 : index
      %122 = vector.load %arg8[%c0_117, %c2, %c0_118, %c0_119] : memref<2x3x8x4xf32, #tpu.memory_space<vmem>>, vector<1x1x8x4xf32>
      %123 = vector.shape_cast %122 : vector<1x1x8x4xf32> to vector<8x4xf32>
      %cst_120 = arith.constant dense<0.000000e+00> : vector<64x4xf32>
      %124 = tpu.matmul %115, %123, %cst_120 {dimension_numbers = #tpu.dot_dimension_numbers<[1], [0], [0], [1], [0, 0, 1, 1], [], []>} : vector<64x8xf32>, vector<8x4xf32>, vector<64x4xf32> -> vector<64x4xf32>
      %125 = arith.addf %103, %124 : vector<64x4xf32>
      %c0_121 = arith.constant 0 : index
      %c2_122 = arith.constant 2 : index
      %c0_123 = arith.constant 0 : index
      %c0_124 = arith.constant 0 : index
      %126 = vector.load %arg9[%c0_121, %c2_122, %c0_123, %c0_124] : memref<2x3x4x4xf32, #tpu.memory_space<vmem>>, vector<1x1x4x4xf32>
      %127 = vector.shape_cast %126 : vector<1x1x4x4xf32> to vector<4x4xf32>
      %cst_125 = arith.constant dense<0.000000e+00> : vector<64x4xf32>
      %128 = tpu.matmul %118, %127, %cst_125 {dimension_numbers = #tpu.dot_dimension_numbers<[1], [0], [0], [1], [0, 0, 1, 1], [], []>} : vector<64x4xf32>, vector<4x4xf32>, vector<64x4xf32> -> vector<64x4xf32>
      %129 = arith.addf %125, %128 : vector<64x4xf32>
      %c1_126 = arith.constant 1 : index
      %c2_127 = arith.constant 2 : index
      %c0_128 = arith.constant 0 : index
      %c0_129 = arith.constant 0 : index
      %130 = vector.load %arg8[%c1_126, %c2_127, %c0_128, %c0_129] : memref<2x3x8x4xf32, #tpu.memory_space<vmem>>, vector<1x1x8x4xf32>
      %131 = vector.shape_cast %130 : vector<1x1x8x4xf32> to vector<8x4xf32>
      %cst_130 = arith.constant dense<0.000000e+00> : vector<64x4xf32>
      %132 = tpu.matmul %115, %131, %cst_130 {dimension_numbers = #tpu.dot_dimension_numbers<[1], [0], [0], [1], [0, 0, 1, 1], [], []>} : vector<64x8xf32>, vector<8x4xf32>, vector<64x4xf32> -> vector<64x4xf32>
      %133 = arith.addf %111, %132 : vector<64x4xf32>
      %c1_131 = arith.constant 1 : index
      %c2_132 = arith.constant 2 : index
      %c0_133 = arith.constant 0 : index
      %c0_134 = arith.constant 0 : index
      %134 = vector.load %arg9[%c1_131, %c2_132, %c0_133, %c0_134] : memref<2x3x4x4xf32, #tpu.memory_space<vmem>>, vector<1x1x4x4xf32>
      %135 = vector.shape_cast %134 : vector<1x1x4x4xf32> to vector<4x4xf32>
      %cst_135 = arith.constant dense<0.000000e+00> : vector<64x4xf32>
      %136 = tpu.matmul %121, %135, %cst_135 {dimension_numbers = #tpu.dot_dimension_numbers<[1], [0], [0], [1], [0, 0, 1, 1], [], []>} : vector<64x4xf32>, vector<4x4xf32>, vector<64x4xf32> -> vector<64x4xf32>
      %137 = arith.addf %133, %136 : vector<64x4xf32>
      %138 = vector.broadcast %57 : vector<1x4xf32> to vector<64x4xf32>
      %139 = arith.addf %129, %138 : vector<64x4xf32>
      %cst_136 = arith.constant 0.000000e+00 : f32
      %140 = vector.broadcast %cst_136 : f32 to vector<64x4xf32>
      %141 = arith.maximumf %139, %140 : vector<64x4xf32>
      %142 = vector.shape_cast %141 : vector<64x4xf32> to vector<8x8x4xf32>
      %143 = vector.broadcast %57 : vector<1x4xf32> to vector<64x4xf32>
      %144 = arith.addf %137, %143 : vector<64x4xf32>
      %cst_137 = arith.constant 0.000000e+00 : f32
      %145 = vector.broadcast %cst_137 : f32 to vector<64x4xf32>
      %146 = arith.maximumf %144, %145 : vector<64x4xf32>
      %147 = vector.shape_cast %146 : vector<64x4xf32> to vector<8x8x4xf32>
      %c0_138 = arith.constant 0 : index
      %148 = arith.index_cast %56 : i32 to index
      %c0_139 = arith.constant 0 : index
      %c0_140 = arith.constant 0 : index
      %149 = vector.load %arg11[%c0_138, %148, %c0_139, %c0_140] : memref<1x16x8x8xf32, #tpu.memory_space<vmem>>, vector<1x8x8x4xf32>
      %150 = vector.shape_cast %149 : vector<1x8x8x4xf32> to vector<8x8x4xf32>
      %151 = vector.shape_cast %142 : vector<8x8x4xf32> to vector<1x8x8x4xf32>
      tpu.vector_store %arg11[%c0_138, %148, %c0_139, %c0_140], %151 {strides = array<i32>} : memref<1x16x8x8xf32, #tpu.memory_space<vmem>>, vector<1x8x8x4xf32>,
      %c0_141 = arith.constant 0 : index
      %152 = arith.index_cast %56 : i32 to index
      %c0_142 = arith.constant 0 : index
      %c4_143 = arith.constant 4 : index
      %153 = vector.load %arg11[%c0_141, %152, %c0_142, %c4_143] : memref<1x16x8x8xf32, #tpu.memory_space<vmem>>, vector<1x8x8x4xf32>
      %154 = vector.shape_cast %153 : vector<1x8x8x4xf32> to vector<8x8x4xf32>
      %155 = vector.shape_cast %147 : vector<8x8x4xf32> to vector<1x8x8x4xf32>
      tpu.vector_store %arg11[%c0_141, %152, %c0_142, %c4_143], %155 {strides = array<i32>} : memref<1x16x8x8xf32, #tpu.memory_space<vmem>>, vector<1x8x8x4xf32>,
    }
    %c2_i32_53 = arith.constant 2 : i32
    return
  }
  func.func @transform_0(%arg0: i32) -> (i32, i32, i32, i32) {
    %c0_i32 = arith.constant 0 : i32
    %c0_i32_0 = arith.constant 0 : i32
    %c0_i32_1 = arith.constant 0 : i32
    %c0_i32_2 = arith.constant 0 : i32
    return %arg0, %c0_i32, %c0_i32_0, %c0_i32_1 : i32, i32, i32, i32
  }
  func.func @transform_1(%arg0: i32) -> (i32, i32, i32, i32) {
    %c0_i32 = arith.constant 0 : i32
    %c0_i32_0 = arith.constant 0 : i32
    %c0_i32_1 = arith.constant 0 : i32
    %c0_i32_2 = arith.constant 0 : i32
    return %arg0, %c0_i32, %c0_i32_0, %c0_i32_1 : i32, i32, i32, i32
  }
  func.func @transform_2(%arg0: i32) -> (i32, i32) {
    %c0_i32 = arith.constant 0 : i32
    %c0_i32_0 = arith.constant 0 : i32
    %c0_i32_1 = arith.constant 0 : i32
    return %c0_i32, %c0_i32_0 : i32, i32
  }
  func.func @transform_3(%arg0: i32) -> (i32, i32) {
    %c0_i32 = arith.constant 0 : i32
    %c0_i32_0 = arith.constant 0 : i32
    %c0_i32_1 = arith.constant 0 : i32
    return %c0_i32, %c0_i32_0 : i32, i32
  }
  func.func @transform_4(%arg0: i32) -> (i32, i32, i32, i32) {
    %c0_i32 = arith.constant 0 : i32
    %c0_i32_0 = arith.constant 0 : i32
    %c0_i32_1 = arith.constant 0 : i32
    %c0_i32_2 = arith.constant 0 : i32
    %c0_i32_3 = arith.constant 0 : i32
    return %c0_i32, %c0_i32_0, %c0_i32_1, %c0_i32_2 : i32, i32, i32, i32
  }
  func.func @transform_5(%arg0: i32) -> (i32, i32, i32, i32) {
    %c0_i32 = arith.constant 0 : i32
    %c0_i32_0 = arith.constant 0 : i32
    %c0_i32_1 = arith.constant 0 : i32
    %c0_i32_2 = arith.constant 0 : i32
    %c0_i32_3 = arith.constant 0 : i32
    return %c0_i32, %c0_i32_0, %c0_i32_1, %c0_i32_2 : i32, i32, i32, i32
  }
  func.func @transform_6(%arg0: i32) -> (i32, i32) {
    %c0_i32 = arith.constant 0 : i32
    %c0_i32_0 = arith.constant 0 : i32
    %c0_i32_1 = arith.constant 0 : i32
    return %c0_i32, %c0_i32_0 : i32, i32
  }
  func.func @transform_7(%arg0: i32) -> (i32, i32, i32, i32) {
    %c0_i32 = arith.constant 0 : i32
    %c0_i32_0 = arith.constant 0 : i32
    %c0_i32_1 = arith.constant 0 : i32
    %c0_i32_2 = arith.constant 0 : i32
    %c0_i32_3 = arith.constant 0 : i32
    return %c0_i32, %c0_i32_0, %c0_i32_1, %c0_i32_2 : i32, i32, i32, i32
  }
  func.func @transform_8(%arg0: i32) -> (i32, i32, i32, i32) {
    %c0_i32 = arith.constant 0 : i32
    %c0_i32_0 = arith.constant 0 : i32
    %c0_i32_1 = arith.constant 0 : i32
    %c0_i32_2 = arith.constant 0 : i32
    %c0_i32_3 = arith.constant 0 : i32
    return %c0_i32, %c0_i32_0, %c0_i32_1, %c0_i32_2 : i32, i32, i32, i32
  }
  func.func @transform_9(%arg0: i32) -> (i32, i32) {
    %c0_i32 = arith.constant 0 : i32
    %c0_i32_0 = arith.constant 0 : i32
    %c0_i32_1 = arith.constant 0 : i32
    return %c0_i32, %c0_i32_0 : i32, i32
  }
  func.func @transform_10(%arg0: i32) -> (i32, i32, i32, i32) {
    %c0_i32 = arith.constant 0 : i32
    %c0_i32_0 = arith.constant 0 : i32
    %c0_i32_1 = arith.constant 0 : i32
    %c0_i32_2 = arith.constant 0 : i32
    return %arg0, %c0_i32, %c0_i32_0, %c0_i32_1 : i32, i32, i32, i32
  }
}

</mosaic_0001>

<llo_original>
// kernel: tile.8
$region0: #{tile.8}
  #allocation0 [shape = 's32[1]{0}', space=sflag, size = 0x4, scoped, tag = 'scoped memory for tile.8']
  %s0 = inlined_call_operand.vmem [shape: f32[4], index: 0, kind: input, shape index: {}]
  %s1 = inlined_call_operand.vmem [shape: f32[4,4], index: 1, kind: output, shape index: {}]
  // Predicated region
  $region2: #{tile.8} parent=0 // pred_check
    _
  $region3: #{tile.8} parent=0 // pred_check_branch
    %3 = sbr.rel (0) target = $region5
  $region4: #{tile.8} parent=0 // pred_region
    _
  $region5: #{tile.8} parent=0 // pred_fallthru
    _
  %v4 = vld [vmem:[%s0] ss:$0 sm:$0xff]
  %5 = vst [vmem:[%s1] sm:$0xf] %v4

// kernel: tile.9
$region0: #{tile.9}
  %s0 = inlined_call_operand.vmem [shape: f32[4,4], index: 0, kind: input, shape index: {}]
  %s1 = inlined_call_operand.hbm [shape: f32[1,16], index: 1, kind: output, shape index: {}]
  $region1: #{tile.9} parent=0
    #allocation0 [shape = 'u8[512]{0}', space=vmem, size = 0x400, scoped, tag = 'operand span for operand 1']
    #allocation1 [shape = 's32[1]{0}', space=sflag, size = 0x4, scoped, tag = 'scoped memory for tile.9']
    #allocation2 [shape = 'u8[4096]{0}', space=vmem, size = 0x1000, scoped, tag = 'scoped mem for output reshape']
    #allocation3 [shape = 'u8[4096]{0}', space=vmem, size = 0x1000, scoped, tag = 'scoped mem for input reshape']
    %2 = vsyncpa [#allocation1], 0
    %s4 = sshllo.u32 0, 4
    %v5 = vld [vmem:[%s0] sm:%s4]
    %6 = vst [vmem:[#allocation3] sm:%s4] %v5
    %v7 = vld [vmem:[#allocation3] sm:$0x1]
    %vm8 = vcmask 31744
    %9 = vst.msk [vmem:[#allocation2] sm:$0x1] %vm8, %v7
    %s10 = scalar_lea.vmem [#allocation3], 3
    %v11 = vld [vmem:[%s10] sm:$0x1]
    %12 = vrot.lane.b32.xlu0 %v11, 12
    %v13 = vpop.permute.xlu0 %12
    %vm14 = vcmask 130144
    %15 = vst.msk [vmem:[#allocation2] sm:$0x1] %vm14, %v13
    %s16 = scalar_lea.vmem [#allocation3], 2
    %v17 = vld [vmem:[%s16] sm:$0x1]
    %18 = vrot.lane.b32.xlu0 %v17, 8
    %v19 = vpop.permute.xlu0 %18
    %vm20 = vcmask 97344
    %21 = vst.msk [vmem:[#allocation2] sm:$0x1] %vm20, %v19
    %s22 = scalar_lea.vmem [#allocation3], 1
    %v23 = vld [vmem:[%s22] sm:$0x1]
    %24 = vrot.lane.b32.xlu0 %v23, 4
    %v25 = vpop.permute.xlu0 %24
    %vm26 = vcmask 64544
    %27 = vst.msk [vmem:[#allocation2] sm:$0x1] %vm26, %v25
    %s29 = sshllo.u32 0, 1
    %v31 = vld [vmem:[#allocation2] sm:%s29]
    %s32 = sshllo.u32 0, 1
    %33 = vst [vmem:[#allocation0] sm:%s32] %v31
    %s35 = ssub.s32 16, 16
    %36 = vsyncadd [#allocation1], %s35
    %s38 = sshll.u32 [#allocation0], 4
    %s39 = int_to_ptr.vmem [resolvable:$true] %s38
    %41 = dma.vmem_to_hbm [thread:$0]  %s39, 16, %s1, [#allocation1]
    %42 = dma.done [#allocation1], 16
    %43 = vsyncpa [#allocation1], 1

// kernel: unet_up_block_forward.1
$region0: #{unet_up_block_forward.1}
  #allocation0 [shape = 'u32[]', space=smem, size = 0x4, offset = 0x4, fixed_abs, tag = 'smem constant byte address 0x4 - core index']
  #allocation1 [shape = 'u32[144,128]{1,0:T(1,128)}', space=vmem, size = 0x12000, scoped, tag = 'internal scratch']
  #allocation2 [shape = 'f32[18,24,16]{2,1,0:T(8,128)}', space=vmem, size = 0x36000, scoped, tag = 'scratch operand']
  #allocation3 [shape = 'f32[18,24,8]{2,1,0:T(8,128)}', space=vmem, size = 0x36000, scoped, tag = 'scratch operand']
  %s0 = inlined_call_operand.hbm [shape: f32[2,8,8,8], index: 0, kind: input, shape index: {}]
  %s1 = inlined_call_operand.hbm [shape: f32[2,16,8,8], index: 1, kind: input, shape index: {}]
  %s2 = inlined_call_operand.hbm [shape: f32[8,16], index: 2, kind: input, shape index: {}]
  %s3 = inlined_call_operand.hbm [shape: f32[1,16], index: 3, kind: input, shape index: {}]
  %s4 = inlined_call_operand.hbm [shape: f32[2,3,16,4], index: 4, kind: input, shape index: {}]
  %s5 = inlined_call_operand.hbm [shape: f32[2,3,8,4], index: 5, kind: input, shape index: {}]
  %s6 = inlined_call_operand.hbm [shape: f32[1,4], index: 6, kind: input, shape index: {}]
  %s7 = inlined_call_operand.hbm [shape: f32[2,3,8,4], index: 7, kind: input, shape index: {}]
  %s8 = inlined_call_operand.hbm [shape: f32[2,3,4,4], index: 8, kind: input, shape index: {}]
  %s9 = inlined_call_operand.hbm [shape: f32[1,4], index: 9, kind: input, shape index: {}]
  %s10 = inlined_call_operand.hbm [shape: f32[2,16,8,8], index: 10, kind: output, shape index: {}]
  %s11 = sld [smem:[#allocation0]]
  $region127: #{unet_up_block_forward.1} parent=0
    _
  %s13 = ssub.s32 1, %s11
  %s14 = scalar_select 0, %s13, %s11
  $region1: #{unet_up_block_forward.1} parent=0
    #allocation4 [shape = 'u8[65536]{0}', space=vmem, size = 0x10000, scoped, tag = 'input window, operand 0']
    #allocation5 [shape = 's32[2]{0}', space=sflag, size = 0x8, scoped, tag = 'scoped memory for unet_up_block_forward.1']
    #allocation6 [shape = 's32[2]{0}', space=sflag, size = 0x8, scoped, tag = 'scoped memory for unet_up_block_forward.1']
    #allocation7 [shape = 'u8[131072]{0}', space=vmem, size = 0x20000, scoped, tag = 'input window, operand 1']
    #allocation8 [shape = 's32[2]{0}', space=sflag, size = 0x8, scoped, tag = 'scoped memory for unet_up_block_forward.1']
    #allocation9 [shape = 'u8[4096]{0}', space=vmem, size = 0x1000, scoped, tag = 'input window, operand 2, single buffered']
    #allocation10 [shape = 'u8[512]{0}', space=vmem, size = 0x400, scoped, tag = 'input window, operand 3, single buffered']
    #allocation11 [shape = 's32[1]{0}', space=sflag, size = 0x4, scoped, tag = 'scoped memory for unet_up_block_forward.1']
    #allocation12 [shape = 'u8[49152]{0}', space=vmem, size = 0xc000, scoped, tag = 'input window, operand 4, single buffered']
    #allocation13 [shape = 'u8[24576]{0}', space=vmem, size = 0x6000, scoped, tag = 'input window, operand 5, single buffered']
    #allocation14 [shape = 's32[1]{0}', space=sflag, size = 0x4, scoped, tag = 'scoped memory for unet_up_block_forward.1']
    #allocation15 [shape = 'u8[512]{0}', space=vmem, size = 0x400, scoped, tag = 'input window, operand 6, single buffered']
    #allocation16 [shape = 'u8[24576]{0}', space=vmem, size = 0x6000, scoped, tag = 'input window, operand 7, single buffered']
    #allocation17 [shape = 's32[1]{0}', space=sflag, size = 0x4, scoped, tag = 'scoped memory for unet_up_block_forward.1']
    #allocation18 [shape = 'u8[12288]{0}', space=vmem, size = 0x3000, scoped, tag = 'input window, operand 8, single buffered']
    #allocation19 [shape = 'u8[512]{0}', space=vmem, size = 0x400, scoped, tag = 'input window, operand 9, single buffered']
    #allocation20 [shape = 's32[1]{0}', space=sflag, size = 0x4, scoped, tag = 'scoped memory for unet_up_block_forward.1']
    #allocation21 [shape = 'u8[131072]{0}', space=vmem, size = 0x20000, scoped, tag = 'output window, operand 0']
    %15 = vsyncpa [#allocation5], 0
    %s16 = scalar_lea.sflag [#allocation5], 1
    %17 = vsyncpa %s16, 0
    %18 = vsyncpa [#allocation8], 0
    %s19 = scalar_lea.sflag [#allocation8], 1
    %20 = vsyncpa %s19, 0
    %21 = vsyncpa [#allocation11], 0
    %22 = vsyncpa [#allocation14], 0
    %23 = vsyncpa [#allocation17], 0
    %24 = vsyncpa [#allocation20], 0
    %25 = vsyncpa [#allocation6], 0
    %s26 = scalar_lea.sflag [#allocation6], 1
    %27 = vsyncpa %s26, 0
    loop: start=0, step=1, limit=4
    $region2: #{unet_up_block_forward.1} parent=1 // loop_pre_header
      _
    $region3: #{unet_up_block_forward.1} parent=1 // loop_header
      %s29 = sphi 0, %s33
      %p30 = scmp.ge.s32.totalorder %s29, 4
      %s39 = sphi 0, %s41
      %s42 = sphi 0, %s39
      %s43 = sphi 0, %s42
      %s59 = sphi 0, %s43
      %s65 = sphi 0, %s67
      %s68 = sphi 0, %s65
      %s69 = sphi 0, %s68
      %s85 = sphi 0, %s69
      %s89 = sphi 0, %s89
      %s91 = sphi 0, %s89
      %s92 = sphi 0, %s91
      %s106 = sphi 0, %s92
      %s110 = sphi 0, %s110
      %s112 = sphi 0, %s110
      %s113 = sphi 0, %s112
      %s127 = sphi 0, %s113
      %s131 = sphi 0, %s131
      %s133 = sphi 0, %s131
      %s134 = sphi 0, %s133
      %s148 = sphi 0, %s134
      %s152 = sphi 0, %s152
      %s154 = sphi 0, %s152
      %s155 = sphi 0, %s154
      %s169 = sphi 0, %s155
      %s173 = sphi 0, %s173
      %s175 = sphi 0, %s173
      %s176 = sphi 0, %s175
      %s190 = sphi 0, %s176
      %s194 = sphi 0, %s194
      %s196 = sphi 0, %s194
      %s197 = sphi 0, %s196
      %s211 = sphi 0, %s197
      %s215 = sphi 0, %s215
      %s217 = sphi 0, %s215
      %s218 = sphi 0, %s217
      %s232 = sphi 0, %s218
      %s236 = sphi 0, %s236
      %s238 = sphi 0, %s236
      %s239 = sphi 0, %s238
      %s253 = sphi 0, %s239
      %s259 = sphi 0, %s261
      %s262 = sphi 0, %s259
      %s263 = sphi 0, %s262
      %s279 = sphi 0, %s263
    $region4: #{unet_up_block_forward.1} parent=1 // loop_header_branch
      %32 = sbr.rel (%p30) target = $region8
    $region5: #{unet_up_block_forward.1} parent=1 // loop_body
      %s34 = ssub.s32 %s29, 1
      %s35 = ssub.s32 %s29, 2
      %s36 = sadd.s32 %s29, 1
      %s37 = ssub.s32 %s29, %s36
      %p38 = scmp.eq.s32.totalorder %s37, 0
      %s40 = sadd.s32 %s39, 1
      %s41 = scalar_select %p38, %s39, %s40
      %p44 = pneg %p38
      %p45 = scmp.eq.s32.totalorder %s29, 1
      %p46 = por %p44, %p45
      %p47 = scmp.ne.s32.totalorder %s39, %s42
      %p48 = scmp.eq.s32.totalorder %s29, 0
      %p49 = por %p47, %p48
      %p50 = scmp.ne.s32.totalorder %s39, %s42
      %p51 = scmp.eq.s32.totalorder %s34, 1
      %p52 = por %p50, %p51
      %p53 = scmp.ne.s32.totalorder %s42, %s43
      %p54 = scmp.eq.s32.totalorder %s34, 0
      %p55 = por %p53, %p54
      %p56 = scmp.ne.s32.totalorder %s42, %s43
      %p57 = scmp.eq.s32.totalorder %s35, 1
      %p58 = por %p56, %p57
      %p60 = scmp.ne.s32.totalorder %s43, %s59
      %p61 = scmp.eq.s32.totalorder %s35, 0
      %p62 = por %p60, %p61
      %s63 = ssub.s32 %s29, %s36
      %p64 = scmp.eq.s32.totalorder %s63, 0
      %s66 = sadd.s32 %s65, 1
      %s67 = scalar_select %p64, %s65, %s66
      %p70 = pneg %p64
      %p71 = scmp.eq.s32.totalorder %s29, 1
      %p72 = por %p70, %p71
      %p73 = scmp.ne.s32.totalorder %s65, %s68
      %p74 = scmp.eq.s32.totalorder %s29, 0
      %p75 = por %p73, %p74
      %p76 = scmp.ne.s32.totalorder %s65, %s68
      %p77 = scmp.eq.s32.totalorder %s34, 1
      %p78 = por %p76, %p77
      %p79 = scmp.ne.s32.totalorder %s68, %s69
      %p80 = scmp.eq.s32.totalorder %s34, 0
      %p81 = por %p79, %p80
      %p82 = scmp.ne.s32.totalorder %s68, %s69
      %p83 = scmp.eq.s32.totalorder %s35, 1
      %p84 = por %p82, %p83
      %p86 = scmp.ne.s32.totalorder %s69, %s85
      %p87 = scmp.eq.s32.totalorder %s35, 0
      %p88 = por %p86, %p87
      %s90 = sadd.s32 %s89, 1
      %p93 = scmp.eq.s32.totalorder %s29, 1
      %p94 = scmp.ne.s32.totalorder %s89, %s91
      %p95 = scmp.eq.s32.totalorder %s29, 0
      %p96 = por %p94, %p95
      %p97 = scmp.ne.s32.totalorder %s89, %s91
      %p98 = scmp.eq.s32.totalorder %s34, 1
      %p99 = por %p97, %p98
      %p100 = scmp.ne.s32.totalorder %s91, %s92
      %p101 = scmp.eq.s32.totalorder %s34, 0
      %p102 = por %p100, %p101
      %p103 = scmp.ne.s32.totalorder %s91, %s92
      %p104 = scmp.eq.s32.totalorder %s35, 1
      %p105 = por %p103, %p104
      %p107 = scmp.ne.s32.totalorder %s92, %s106
      %p108 = scmp.eq.s32.totalorder %s35, 0
      %p109 = por %p107, %p108
      %s111 = sadd.s32 %s110, 1
      %p114 = scmp.eq.s32.totalorder %s29, 1
      %p115 = scmp.ne.s32.totalorder %s110, %s112
      %p116 = scmp.eq.s32.totalorder %s29, 0
      %p117 = por %p115, %p116
      %p118 = scmp.ne.s32.totalorder %s110, %s112
      %p119 = scmp.eq.s32.totalorder %s34, 1
      %p120 = por %p118, %p119
      %p121 = scmp.ne.s32.totalorder %s112, %s113
      %p122 = scmp.eq.s32.totalorder %s34, 0
      %p123 = por %p121, %p122
      %p124 = scmp.ne.s32.totalorder %s112, %s113
      %p125 = scmp.eq.s32.totalorder %s35, 1
      %p126 = por %p124, %p125
      %p128 = scmp.ne.s32.totalorder %s113, %s127
      %p129 = scmp.eq.s32.totalorder %s35, 0
      %p130 = por %p128, %p129
      %s132 = sadd.s32 %s131, 1
      %p135 = scmp.eq.s32.totalorder %s29, 1
      %p136 = scmp.ne.s32.totalorder %s131, %s133
      %p137 = scmp.eq.s32.totalorder %s29, 0
      %p138 = por %p136, %p137
      %p139 = scmp.ne.s32.totalorder %s131, %s133
      %p140 = scmp.eq.s32.totalorder %s34, 1
      %p141 = por %p139, %p140
      %p142 = scmp.ne.s32.totalorder %s133, %s134
      %p143 = scmp.eq.s32.totalorder %s34, 0
      %p144 = por %p142, %p143
      %p145 = scmp.ne.s32.totalorder %s133, %s134
      %p146 = scmp.eq.s32.totalorder %s35, 1
      %p147 = por %p145, %p146
      %p149 = scmp.ne.s32.totalorder %s134, %s148
      %p150 = scmp.eq.s32.totalorder %s35, 0
      %p151 = por %p149, %p150
      %s153 = sadd.s32 %s152, 1
      %p156 = scmp.eq.s32.totalorder %s29, 1
      %p157 = scmp.ne.s32.totalorder %s152, %s154
      %p158 = scmp.eq.s32.totalorder %s29, 0
      %p159 = por %p157, %p158
      %p160 = scmp.ne.s32.totalorder %s152, %s154
      %p161 = scmp.eq.s32.totalorder %s34, 1
      %p162 = por %p160, %p161
      %p163 = scmp.ne.s32.totalorder %s154, %s155
      %p164 = scmp.eq.s32.totalorder %s34, 0
      %p165 = por %p163, %p164
      %p166 = scmp.ne.s32.totalorder %s154, %s155
      %p167 = scmp.eq.s32.totalorder %s35, 1
      %p168 = por %p166, %p167
      %p170 = scmp.ne.s32.totalorder %s155, %s169
      %p171 = scmp.eq.s32.totalorder %s35, 0
      %p172 = por %p170, %p171
      %s174 = sadd.s32 %s173, 1
      %p177 = scmp.eq.s32.totalorder %s29, 1
      %p178 = scmp.ne.s32.totalorder %s173, %s175
      %p179 = scmp.eq.s32.totalorder %s29, 0
      %p180 = por %p178, %p179
      %p181 = scmp.ne.s32.totalorder %s173, %s175
      %p182 = scmp.eq.s32.totalorder %s34, 1
      %p183 = por %p181, %p182
      %p184 = scmp.ne.s32.totalorder %s175, %s176
      %p185 = scmp.eq.s32.totalorder %s34, 0
      %p186 = por %p184, %p185
      %p187 = scmp.ne.s32.totalorder %s175, %s176
      %p188 = scmp.eq.s32.totalorder %s35, 1
      %p189 = por %p187, %p188
      %p191 = scmp.ne.s32.totalorder %s176, %s190
      %p192 = scmp.eq.s32.totalorder %s35, 0
      %p193 = por %p191, %p192
      %s195 = sadd.s32 %s194, 1
      %p198 = scmp.eq.s32.totalorder %s29, 1
      %p199 = scmp.ne.s32.totalorder %s194, %s196
      %p200 = scmp.eq.s32.totalorder %s29, 0
      %p201 = por %p199, %p200
      %p202 = scmp.ne.s32.totalorder %s194, %s196
      %p203 = scmp.eq.s32.totalorder %s34, 1
      %p204 = por %p202, %p203
      %p205 = scmp.ne.s32.totalorder %s196, %s197
      %p206 = scmp.eq.s32.totalorder %s34, 0
      %p207 = por %p205, %p206
      %p208 = scmp.ne.s32.totalorder %s196, %s197
      %p209 = scmp.eq.s32.totalorder %s35, 1
      %p210 = por %p208, %p209
      %p212 = scmp.ne.s32.totalorder %s197, %s211
      %p213 = scmp.eq.s32.totalorder %s35, 0
      %p214 = por %p212, %p213
      %s216 = sadd.s32 %s215, 1
      %p219 = scmp.eq.s32.totalorder %s29, 1
      %p220 = scmp.ne.s32.totalorder %s215, %s217
      %p221 = scmp.eq.s32.totalorder %s29, 0
      %p222 = por %p220, %p221
      %p223 = scmp.ne.s32.totalorder %s215, %s217
      %p224 = scmp.eq.s32.totalorder %s34, 1
      %p225 = por %p223, %p224
      %p226 = scmp.ne.s32.totalorder %s217, %s218
      %p227 = scmp.eq.s32.totalorder %s34, 0
      %p228 = por %p226, %p227
      %p229 = scmp.ne.s32.totalorder %s217, %s218
      %p230 = scmp.eq.s32.totalorder %s35, 1
      %p231 = por %p229, %p230
      %p233 = scmp.ne.s32.totalorder %s218, %s232
      %p234 = scmp.eq.s32.totalorder %s35, 0
      %p235 = por %p233, %p234
      %s237 = sadd.s32 %s236, 1
      %p240 = scmp.eq.s32.totalorder %s29, 1
      %p241 = scmp.ne.s32.totalorder %s236, %s238
      %p242 = scmp.eq.s32.totalorder %s29, 0
      %p243 = por %p241, %p242
      %p244 = scmp.ne.s32.totalorder %s236, %s238
      %p245 = scmp.eq.s32.totalorder %s34, 1
      %p246 = por %p244, %p245
      %p247 = scmp.ne.s32.totalorder %s238, %s239
      %p248 = scmp.eq.s32.totalorder %s34, 0
      %p249 = por %p247, %p248
      %p250 = scmp.ne.s32.totalorder %s238, %s239
      %p251 = scmp.eq.s32.totalorder %s35, 1
      %p252 = por %p250, %p251
      %p254 = scmp.ne.s32.totalorder %s239, %s253
      %p255 = scmp.eq.s32.totalorder %s35, 0
      %p256 = por %p254, %p255
      %s257 = ssub.s32 %s29, %s36
      %p258 = scmp.eq.s32.totalorder %s257, 0
      %s260 = sadd.s32 %s259, 1
      %s261 = scalar_select %p258, %s259, %s260
      %p264 = pneg %p258
      %p265 = scmp.eq.s32.totalorder %s29, 1
      %p266 = por %p264, %p265
      %p267 = scmp.ne.s32.totalorder %s259, %s262
      %p268 = scmp.eq.s32.totalorder %s29, 0
      %p269 = por %p267, %p268
      %p270 = scmp.ne.s32.totalorder %s259, %s262
      %p271 = scmp.eq.s32.totalorder %s34, 1
      %p272 = por %p270, %p271
      %p273 = scmp.ne.s32.totalorder %s262, %s263
      %p274 = scmp.eq.s32.totalorder %s34, 0
      %p275 = por %p273, %p274
      %p276 = scmp.ne.s32.totalorder %s262, %s263
      %p277 = scmp.eq.s32.totalorder %s35, 1
      %p278 = por %p276, %p277
      %p280 = scmp.ne.s32.totalorder %s263, %s279
      %p281 = scmp.eq.s32.totalorder %s35, 0
      %p282 = por %p280, %p281
      %p283 = scmp.le.s32.totalorder 1, %s29
      %p284 = scmp.lt.s32.totalorder %s29, 3
      %p285 = pnand %p283, %p284
      %p286 = pneg %p285
      // Predicated region
      $region9: #{unet_up_block_forward.1} parent=5 // pred_check
        _
      $region10: #{unet_up_block_forward.1} parent=5 // pred_check_branch
        %288 = sbr.rel (%p285) target = $region12
      $region11: #{unet_up_block_forward.1} parent=5 // pred_region
        %s289 = ssub.s32 %s29, 1
        // Predicated region
        $region13: #{unet_up_block_forward.1} parent=11 // pred_check
          %p290 = pneg %p102
        $region14: #{unet_up_block_forward.1} parent=11 // pred_check_branch
          %292 = sbr.rel (%p290) target = $region16
        $region15: #{unet_up_block_forward.1} parent=11 // pred_region
          %s294 = ssub.s32 128, 128
          %295 = vsyncadd [#allocation8], %s294
          %s297 = sshll.u32 [#allocation9], 4
          %s298 = int_to_ptr.vmem [resolvable:$true] %s297
          %300 = dma.hbm_to_vmem [thread:$0]  %s2, 128, %s298, [#allocation8]
        $region16: #{unet_up_block_forward.1} parent=11 // pred_fallthru
          _
        // Predicated region
        $region17: #{unet_up_block_forward.1} parent=11 // pred_check
          %p301 = pneg %p123
        $region18: #{unet_up_block_forward.1} parent=11 // pred_check_branch
          %303 = sbr.rel (%p301) target = $region20
        $region19: #{unet_up_block_forward.1} parent=11 // pred_region
          %s305 = ssub.s32 16, 16
          %306 = vsyncadd [#allocation11], %s305
          %s308 = sshll.u32 [#allocation10], 4
          %s309 = int_to_ptr.vmem [resolvable:$true] %s308
          %311 = dma.hbm_to_vmem [thread:$0]  %s3, 16, %s309, [#allocation11]
        $region20: #{unet_up_block_forward.1} parent=11 // pred_fallthru
          _
        // Predicated region
        $region21: #{unet_up_block_forward.1} parent=11 // pred_check
          %p312 = pneg %p144
        $region22: #{unet_up_block_forward.1} parent=11 // pred_check_branch
          %314 = sbr.rel (%p312) target = $region24
        $region23: #{unet_up_block_forward.1} parent=11 // pred_region
          %s316 = ssub.s32 1536, 1536
          %317 = vsyncadd [#allocation11], %s316
          %s318 = sshll.u32 [#allocation12], 4
          %s319 = int_to_ptr.vmem [resolvable:$true] %s318
          %324 = dma.hbm_to_vmem [thread:$0]  %s4, 1536, %s319, [#allocation11], 128, 128, 8
        $region24: #{unet_up_block_forward.1} parent=11 // pred_fallthru
          _
        // Predicated region
        $region25: #{unet_up_block_forward.1} parent=11 // pred_check
          %p325 = pneg %p165
        $region26: #{unet_up_block_forward.1} parent=11 // pred_check_branch
          %327 = sbr.rel (%p325) target = $region28
        $region27: #{unet_up_block_forward.1} parent=11 // pred_region
          %s329 = ssub.s32 768, 768
          %330 = vsyncadd [#allocation14], %s329
          %s331 = sshll.u32 [#allocation13], 4
          %s332 = int_to_ptr.vmem [resolvable:$true] %s331
          %337 = dma.hbm_to_vmem [thread:$0]  %s5, 768, %s332, [#allocation14], 128, 128, 8
        $region28: #{unet_up_block_forward.1} parent=11 // pred_fallthru
          _
        // Predicated region
        $region29: #{unet_up_block_forward.1} parent=11 // pred_check
          %p338 = pneg %p186
        $region30: #{unet_up_block_forward.1} parent=11 // pred_check_branch
          %340 = sbr.rel (%p338) target = $region32
        $region31: #{unet_up_block_forward.1} parent=11 // pred_region
          %s342 = ssub.s32 16, 16
          %343 = vsyncadd [#allocation14], %s342
          %s345 = sshll.u32 [#allocation15], 4
          %s346 = int_to_ptr.vmem [resolvable:$true] %s345
          %348 = dma.hbm_to_vmem [thread:$0]  %s6, 16, %s346, [#allocation14]
        $region32: #{unet_up_block_forward.1} parent=11 // pred_fallthru
          _
        // Predicated region
        $region33: #{unet_up_block_forward.1} parent=11 // pred_check
          %p349 = pneg %p207
        $region34: #{unet_up_block_forward.1} parent=11 // pred_check_branch
          %351 = sbr.rel (%p349) target = $region36
        $region35: #{unet_up_block_forward.1} parent=11 // pred_region
          %s353 = ssub.s32 768, 768
          %354 = vsyncadd [#allocation17], %s353
          %s355 = sshll.u32 [#allocation16], 4
          %s356 = int_to_ptr.vmem [resolvable:$true] %s355
          %361 = dma.hbm_to_vmem [thread:$0]  %s7, 768, %s356, [#allocation17], 128, 128, 8
        $region36: #{unet_up_block_forward.1} parent=11 // pred_fallthru
          _
        // Predicated region
        $region37: #{unet_up_block_forward.1} parent=11 // pred_check
          %p362 = pneg %p228
        $region38: #{unet_up_block_forward.1} parent=11 // pred_check_branch
          %364 = sbr.rel (%p362) target = $region40
        $region39: #{unet_up_block_forward.1} parent=11 // pred_region
          %s366 = ssub.s32 384, 384
          %367 = vsyncadd [#allocation17], %s366
          %s368 = sshll.u32 [#allocation18], 4
          %s369 = int_to_ptr.vmem [resolvable:$true] %s368
          %374 = dma.hbm_to_vmem [thread:$0]  %s8, 384, %s369, [#allocation17], 64, 64, 4
        $region40: #{unet_up_block_forward.1} parent=11 // pred_fallthru
          _
        // Predicated region
        $region41: #{unet_up_block_forward.1} parent=11 // pred_check
          %p375 = pneg %p249
        $region42: #{unet_up_block_forward.1} parent=11 // pred_check_branch
          %377 = sbr.rel (%p375) target = $region44
        $region43: #{unet_up_block_forward.1} parent=11 // pred_region
          %s379 = ssub.s32 16, 16
          %380 = vsyncadd [#allocation20], %s379
          %s382 = sshll.u32 [#allocation19], 4
          %s383 = int_to_ptr.vmem [resolvable:$true] %s382
          %385 = dma.hbm_to_vmem [thread:$0]  %s9, 16, %s383, [#allocation20]
        $region44: #{unet_up_block_forward.1} parent=11 // pred_fallthru
          _
      $region12: #{unet_up_block_forward.1} parent=5 // pred_fallthru
        _
      %p386 = scmp.lt.s32.totalorder %s29, 2
      // Predicated region
      $region45: #{unet_up_block_forward.1} parent=5 // pred_check
        %p387 = pneg %p386
      $region46: #{unet_up_block_forward.1} parent=5 // pred_check_branch
        %389 = sbr.rel (%p387) target = $region48
      $region47: #{unet_up_block_forward.1} parent=5 // pred_region
        // Predicated region
        $region49: #{unet_up_block_forward.1} parent=47 // pred_check
          %p390 = pneg %p49
        $region50: #{unet_up_block_forward.1} parent=47 // pred_check_branch
          %392 = sbr.rel (%p390) target = $region52
        $region51: #{unet_up_block_forward.1} parent=47 // pred_region
          %s393 = sand.u32 %s39, 1
          %s394 = scalar_lea.sflag [#allocation5], %s393
          %s395 = sand.u32 %s39, 1
          %s396 = smul.addr %s395, 64
          %s397 = scalar_lea.vmem [#allocation4], %s396
          %s399 = ssub.s32 1024, 1024
          %400 = vsyncadd %s394, %s399
          %s401 = smul.addr %s29, 8
          %s402 = smul.addr %s401, 128
          %s403 = scalar_lea.hbm %s0, %s402
          %s404 = sshll.u32 %s397, 4
          %s405 = int_to_ptr.vmem [resolvable:$true] %s404
          %410 = dma.hbm_to_vmem [thread:$0]  %s403, 1024, %s405, %s394, 128, 128, 8
        $region52: #{unet_up_block_forward.1} parent=47 // pred_fallthru
          _
        // Predicated region
        $region53: #{unet_up_block_forward.1} parent=47 // pred_check
          %p411 = pneg %p75
        $region54: #{unet_up_block_forward.1} parent=47 // pred_check_branch
          %413 = sbr.rel (%p411) target = $region56
        $region55: #{unet_up_block_forward.1} parent=47 // pred_region
          %s414 = sand.u32 %s29, 1
          %s415 = scalar_lea.sflag [#allocation8], %s414
          %s416 = sand.u32 %s65, 1
          %s417 = smul.addr %s416, 128
          %s418 = scalar_lea.vmem [#allocation7], %s417
          %s420 = ssub.s32 2048, 2048
          %421 = vsyncadd %s415, %s420
          %s422 = smul.addr %s29, 16
          %s423 = smul.addr %s422, 128
          %s424 = scalar_lea.hbm %s1, %s423
          %s425 = sshll.u32 %s418, 4
          %s426 = int_to_ptr.vmem [resolvable:$true] %s425
          %431 = dma.hbm_to_vmem [thread:$0]  %s424, 2048, %s426, %s415, 128, 128, 8
        $region56: #{unet_up_block_forward.1} parent=47 // pred_fallthru
          _
      $region48: #{unet_up_block_forward.1} parent=5 // pred_fallthru
        _
      %p432 = scmp.le.s32.totalorder 1, %s29
      %p433 = scmp.lt.s32.totalorder %s29, 3
      %p434 = pnand %p432, %p433
      %p435 = pneg %p434
      // Predicated region
      $region57: #{unet_up_block_forward.1} parent=5 // pred_check
        _
      $region58: #{unet_up_block_forward.1} parent=5 // pred_check_branch
        %437 = sbr.rel (%p434) target = $region60
      $region59: #{unet_up_block_forward.1} parent=5 // pred_region
        %s438 = ssub.s32 %s29, 1
        %s439 = sand.u32 %s42, 1
        %s440 = scalar_lea.sflag [#allocation5], %s439
        %s441 = sand.u32 %s42, 1
        %s442 = smul.addr %s441, 64
        %s443 = scalar_lea.vmem [#allocation4], %s442
        // Predicated region
        $region61: #{unet_up_block_forward.1} parent=59 // pred_check
          %p444 = pneg %p55
        $region62: #{unet_up_block_forward.1} parent=59 // pred_check_branch
          %446 = sbr.rel (%p444) target = $region64
        $region63: #{unet_up_block_forward.1} parent=59 // pred_region
          %447 = dma.done %s440, 1024
        $region64: #{unet_up_block_forward.1} parent=59 // pred_fallthru
          _
        %s448 = sand.u32 %s34, 1
        %s449 = scalar_lea.sflag [#allocation8], %s448
        %s450 = sand.u32 %s68, 1
        %s451 = smul.addr %s450, 128
        %s452 = scalar_lea.vmem [#allocation7], %s451
        // Predicated region
        $region65: #{unet_up_block_forward.1} parent=59 // pred_check
          %p453 = pneg %p81
        $region66: #{unet_up_block_forward.1} parent=59 // pred_check_branch
          %455 = sbr.rel (%p453) target = $region68
        $region67: #{unet_up_block_forward.1} parent=59 // pred_region
          %456 = dma.done %s449, 2048
        $region68: #{unet_up_block_forward.1} parent=59 // pred_fallthru
          _
        // Predicated region
        $region69: #{unet_up_block_forward.1} parent=59 // pred_check
          %p457 = pneg %p102
        $region70: #{unet_up_block_forward.1} parent=59 // pred_check_branch
          %459 = sbr.rel (%p457) target = $region72
        $region71: #{unet_up_block_forward.1} parent=59 // pred_region
          %460 = dma.done [#allocation8], 128
        $region72: #{unet_up_block_forward.1} parent=59 // pred_fallthru
          _
        // Predicated region
        $region73: #{unet_up_block_forward.1} parent=59 // pred_check
          %p461 = pneg %p123
        $region74: #{unet_up_block_forward.1} parent=59 // pred_check_branch
          %463 = sbr.rel (%p461) target = $region76
        $region75: #{unet_up_block_forward.1} parent=59 // pred_region
          %464 = dma.done [#allocation11], 16
        $region76: #{unet_up_block_forward.1} parent=59 // pred_fallthru
          _
        // Predicated region
        $region77: #{unet_up_block_forward.1} parent=59 // pred_check
          %p465 = pneg %p144
        $region78: #{unet_up_block_forward.1} parent=59 // pred_check_branch
          %467 = sbr.rel (%p465) target = $region80
        $region79: #{unet_up_block_forward.1} parent=59 // pred_region
          %468 = dma.done [#allocation11], 1536
        $region80: #{unet_up_block_forward.1} parent=59 // pred_fallthru
          _
        // Predicated region
        $region81: #{unet_up_block_forward.1} parent=59 // pred_check
          %p469 = pneg %p165
        $region82: #{unet_up_block_forward.1} parent=59 // pred_check_branch
          %471 = sbr.rel (%p469) target = $region84
        $region83: #{unet_up_block_forward.1} parent=59 // pred_region
          %472 = dma.done [#allocation14], 768
        $region84: #{unet_up_block_forward.1} parent=59 // pred_fallthru
          _
        // Predicated region
        $region85: #{unet_up_block_forward.1} parent=59 // pred_check
          %p473 = pneg %p186
        $region86: #{unet_up_block_forward.1} parent=59 // pred_check_branch
          %475 = sbr.rel (%p473) target = $region88
        $region87: #{unet_up_block_forward.1} parent=59 // pred_region
          %476 = dma.done [#allocation14], 16
        $region88: #{unet_up_block_forward.1} parent=59 // pred_fallthru
          _
        // Predicated region
        $region89: #{unet_up_block_forward.1} parent=59 // pred_check
          %p477 = pneg %p207
        $region90: #{unet_up_block_forward.1} parent=59 // pred_check_branch
          %479 = sbr.rel (%p477) target = $region92
        $region91: #{unet_up_block_forward.1} parent=59 // pred_region
          %480 = dma.done [#allocation17], 768
        $region92: #{unet_up_block_forward.1} parent=59 // pred_fallthru
          _
        // Predicated region
        $region93: #{unet_up_block_forward.1} parent=59 // pred_check
          %p481 = pneg %p228
        $region94: #{unet_up_block_forward.1} parent=59 // pred_check_branch
          %483 = sbr.rel (%p481) target = $region96
        $region95: #{unet_up_block_forward.1} parent=59 // pred_region
          %484 = dma.done [#allocation17], 384
        $region96: #{unet_up_block_forward.1} parent=59 // pred_fallthru
          _
        // Predicated region
        $region97: #{unet_up_block_forward.1} parent=59 // pred_check
          %p485 = pneg %p249
        $region98: #{unet_up_block_forward.1} parent=59 // pred_check_branch
          %487 = sbr.rel (%p485) target = $region100
        $region99: #{unet_up_block_forward.1} parent=59 // pred_region
          %488 = dma.done [#allocation20], 16
        $region100: #{unet_up_block_forward.1} parent=59 // pred_fallthru
          _
        %s489 = sand.u32 %s42, 1
        %s490 = scalar_lea.sflag [#allocation5], %s489
        %s491 = sand.u32 %s42, 1
        %s492 = smul.addr %s491, 64
        %s493 = scalar_lea.vmem [#allocation4], %s492
        %p494 = pneg %p55
        %p495 = pneg %p52
        %s496 = sand.u32 %s34, 1
        %s497 = scalar_lea.sflag [#allocation8], %s496
        %s498 = sand.u32 %s68, 1
        %s499 = smul.addr %s498, 128
        %s500 = scalar_lea.vmem [#allocation7], %s499
        %p501 = pneg %p81
        %p502 = pneg %p78
        %p503 = pneg %p102
        %p504 = pneg %p99
        %p505 = pneg %p123
        %p506 = pneg %p120
        %p507 = pneg %p144
        %p508 = pneg %p141
        %p509 = pneg %p165
        %p510 = pneg %p162
        %p511 = pneg %p186
        %p512 = pneg %p183
        %p513 = pneg %p207
        %p514 = pneg %p204
        %p515 = pneg %p228
        %p516 = pneg %p225
        %p517 = pneg %p249
        %p518 = pneg %p246
        %p519 = pneg %p275
        %p520 = pneg %p272
        %s521 = sand.u32 %s262, 1
        %s522 = scalar_lea.sflag [#allocation6], %s521
        %s523 = sand.u32 %s262, 1
        %s524 = smul.addr %s523, 128
        %s525 = scalar_lea.vmem [#allocation21], %s524
        %vm526 = vcmask 130048
        %527 = vst.msk [vmem:[#allocation2] sm:$0xff] %vm526, 0.0
        %528 = vst.msk [vmem:[#allocation2 + $0x8] sm:$0xff] %vm526, 0.0
        %529 = vst.msk [vmem:[#allocation2 + $0x10] sm:$0xff] %vm526, 0.0
        %s530 = scalar_lea.vmem [#allocation2], 408
        %531 = vst.msk [vmem:[%s530] sm:$0xff] %vm526, 0.0
        %532 = vst.msk [vmem:[%s530 + $0x8] sm:$0xff] %vm526, 0.0
        %533 = vst.msk [vmem:[%s530 + $0x10] sm:$0xff] %vm526, 0.0
        %534 = vst.msk [vmem:[#allocation2] sm:$0xff] %vm526, 0.0
        %535 = vst.msk [vmem:[#allocation2 + $0x18] sm:$0xff] %vm526, 0.0
        %536 = vst.msk [vmem:[#allocation2 + $0x30] sm:$0xff] %vm526, 0.0
        %537 = vst.msk [vmem:[#allocation2 + $0x48] sm:$0xff] %vm526, 0.0
        %538 = vst.msk [vmem:[#allocation2 + $0x60] sm:$0xff] %vm526, 0.0
        %539 = vst.msk [vmem:[#allocation2 + $0x78] sm:$0xff] %vm526, 0.0
        %540 = vst.msk [vmem:[#allocation2 + $0x90] sm:$0xff] %vm526, 0.0
        %541 = vst.msk [vmem:[#allocation2 + $0xa8] sm:$0xff] %vm526, 0.0
        %542 = vst.msk [vmem:[#allocation2 + $0xc0] sm:$0xff] %vm526, 0.0
        %543 = vst.msk [vmem:[#allocation2 + $0xd8] sm:$0xff] %vm526, 0.0
        %544 = vst.msk [vmem:[#allocation2 + $0xf0] sm:$0xff] %vm526, 0.0
        %545 = vst.msk [vmem:[#allocation2 + $0x108] sm:$0xff] %vm526, 0.0
        %546 = vst.msk [vmem:[#allocation2 + $0x120] sm:$0xff] %vm526, 0.0
        %547 = vst.msk [vmem:[#allocation2 + $0x138] sm:$0xff] %vm526, 0.0
        %548 = vst.msk [vmem:[#allocation2 + $0x150] sm:$0xff] %vm526, 0.0
        %549 = vst.msk [vmem:[#allocation2 + $0x168] sm:$0xff] %vm526, 0.0
        %550 = vst.msk [vmem:[#allocation2 + $0x180] sm:$0xff] %vm526, 0.0
        %551 = vst.msk [vmem:[#allocation2 + $0x198] sm:$0xff] %vm526, 0.0
        %552 = vst.msk [vmem:[#allocation2 + $0x10] sm:$0xff] %vm526, 0.0
        %553 = vst.msk [vmem:[#allocation2 + $0x28] sm:$0xff] %vm526, 0.0
        %554 = vst.msk [vmem:[#allocation2 + $0x40] sm:$0xff] %vm526, 0.0
        %555 = vst.msk [vmem:[#allocation2 + $0x58] sm:$0xff] %vm526, 0.0
        %556 = vst.msk [vmem:[#allocation2 + $0x70] sm:$0xff] %vm526, 0.0
        %557 = vst.msk [vmem:[#allocation2 + $0x88] sm:$0xff] %vm526, 0.0
        %558 = vst.msk [vmem:[#allocation2 + $0xa0] sm:$0xff] %vm526, 0.0
        %559 = vst.msk [vmem:[#allocation2 + $0xb8] sm:$0xff] %vm526, 0.0
        %560 = vst.msk [vmem:[#allocation2 + $0xd0] sm:$0xff] %vm526, 0.0
        %561 = vst.msk [vmem:[#allocation2 + $0xe8] sm:$0xff] %vm526, 0.0
        %562 = vst.msk [vmem:[#allocation2 + $0x100] sm:$0xff] %vm526, 0.0
        %563 = vst.msk [vmem:[#allocation2 + $0x118] sm:$0xff] %vm526, 0.0
        %564 = vst.msk [vmem:[#allocation2 + $0x130] sm:$0xff] %vm526, 0.0
        %565 = vst.msk [vmem:[#allocation2 + $0x148] sm:$0xff] %vm526, 0.0
        %566 = vst.msk [vmem:[#allocation2 + $0x160] sm:$0xff] %vm526, 0.0
        %567 = vst.msk [vmem:[#allocation2 + $0x178] sm:$0xff] %vm526, 0.0
        %568 = vst.msk [vmem:[#allocation2 + $0x190] sm:$0xff] %vm526, 0.0
        %569 = vst.msk [vmem:[#allocation2 + $0x1a8] sm:$0xff] %vm526, 0.0
        %vm570 = vcmask 64512
        %571 = vst.msk [vmem:[#allocation3] sm:$0xff] %vm570, 0.0
        %572 = vst.msk [vmem:[#allocation3 + $0x8] sm:$0xff] %vm570, 0.0
        %573 = vst.msk [vmem:[#allocation3 + $0x10] sm:$0xff] %vm570, 0.0
        %s574 = scalar_lea.vmem [#allocation3], 408
        %575 = vst.msk [vmem:[%s574] sm:$0xff] %vm570, 0.0
        %576 = vst.msk [vmem:[%s574 + $0x8] sm:$0xff] %vm570, 0.0
        %577 = vst.msk [vmem:[%s574 + $0x10] sm:$0xff] %vm570, 0.0
        %578 = vst.msk [vmem:[#allocation3] sm:$0xff] %vm570, 0.0
        %579 = vst.msk [vmem:[#allocation3 + $0x18] sm:$0xff] %vm570, 0.0
        %580 = vst.msk [vmem:[#allocation3 + $0x30] sm:$0xff] %vm570, 0.0
        %581 = vst.msk [vmem:[#allocation3 + $0x48] sm:$0xff] %vm570, 0.0
        %582 = vst.msk [vmem:[#allocation3 + $0x60] sm:$0xff] %vm570, 0.0
        %583 = vst.msk [vmem:[#allocation3 + $0x78] sm:$0xff] %vm570, 0.0
        %584 = vst.msk [vmem:[#allocation3 + $0x90] sm:$0xff] %vm570, 0.0
        %585 = vst.msk [vmem:[#allocation3 + $0xa8] sm:$0xff] %vm570, 0.0
        %586 = vst.msk [vmem:[#allocation3 + $0xc0] sm:$0xff] %vm570, 0.0
        %587 = vst.msk [vmem:[#allocation3 + $0xd8] sm:$0xff] %vm570, 0.0
        %588 = vst.msk [vmem:[#allocation3 + $0xf0] sm:$0xff] %vm570, 0.0
        %589 = vst.msk [vmem:[#allocation3 + $0x108] sm:$0xff] %vm570, 0.0
        %590 = vst.msk [vmem:[#allocation3 + $0x120] sm:$0xff] %vm570, 0.0
        %591 = vst.msk [vmem:[#allocation3 + $0x138] sm:$0xff] %vm570, 0.0
        %592 = vst.msk [vmem:[#allocation3 + $0x150] sm:$0xff] %vm570, 0.0
        %593 = vst.msk [vmem:[#allocation3 + $0x168] sm:$0xff] %vm570, 0.0
        %594 = vst.msk [vmem:[#allocation3 + $0x180] sm:$0xff] %vm570, 0.0
        %595 = vst.msk [vmem:[#allocation3 + $0x198] sm:$0xff] %vm570, 0.0
        %596 = vst.msk [vmem:[#allocation3 + $0x10] sm:$0xff] %vm570, 0.0
        %597 = vst.msk [vmem:[#allocation3 + $0x28] sm:$0xff] %vm570, 0.0
        %598 = vst.msk [vmem:[#allocation3 + $0x40] sm:$0xff] %vm570, 0.0
        %599 = vst.msk [vmem:[#allocation3 + $0x58] sm:$0xff] %vm570, 0.0
        %600 = vst.msk [vmem:[#allocation3 + $0x70] sm:$0xff] %vm570, 0.0
        %601 = vst.msk [vmem:[#allocation3 + $0x88] sm:$0xff] %vm570, 0.0
        %602 = vst.msk [vmem:[#allocation3 + $0xa0] sm:$0xff] %vm570, 0.0
        %603 = vst.msk [vmem:[#allocation3 + $0xb8] sm:$0xff] %vm570, 0.0
        %604 = vst.msk [vmem:[#allocation3 + $0xd0] sm:$0xff] %vm570, 0.0
        %605 = vst.msk [vmem:[#allocation3 + $0xe8] sm:$0xff] %vm570, 0.0
        %606 = vst.msk [vmem:[#allocation3 + $0x100] sm:$0xff] %vm570, 0.0
        %607 = vst.msk [vmem:[#allocation3 + $0x118] sm:$0xff] %vm570, 0.0
        %608 = vst.msk [vmem:[#allocation3 + $0x130] sm:$0xff] %vm570, 0.0
        %609 = vst.msk [vmem:[#allocation3 + $0x148] sm:$0xff] %vm570, 0.0
        %610 = vst.msk [vmem:[#allocation3 + $0x160] sm:$0xff] %vm570, 0.0
        %611 = vst.msk [vmem:[#allocation3 + $0x178] sm:$0xff] %vm570, 0.0
        %612 = vst.msk [vmem:[#allocation3 + $0x190] sm:$0xff] %vm570, 0.0
        %613 = vst.msk [vmem:[#allocation3 + $0x1a8] sm:$0xff] %vm570, 0.0
        %v614 = vld [vmem:[#allocation9] sm:$0xff]
        %v615 = vld [vmem:[#allocation10] sm:$0x1]
        %s616 = smul.u32 0, 8
        %s617 = scalar_lea.vmem %s443, %s616 [#allocation4]
        %v618 = vld [vmem:[%s617] sm:$0xff]
        %v619 = vld [vmem:[%s617 + $0x8] sm:$0xff]
        %v620 = vld [vmem:[%s617 + $0x10] sm:$0xff]
        %v621 = vld [vmem:[%s617 + $0x18] sm:$0xff]
        %v622 = vld [vmem:[%s617 + $0x20] sm:$0xff]
        %v623 = vld [vmem:[%s617 + $0x28] sm:$0xff]
        %v624 = vld [vmem:[%s617 + $0x30] sm:$0xff]
        %v625 = vld [vmem:[%s617 + $0x38] sm:$0xff]
        %v627 = vlaneseq
        %v628 = vshrl.u32 %v627, 7
        %v629 = vsub.s32 0, %v628
        %v630 = vrot.slane %v615, %v629
        %v633 = vsel %vm570, %v618, 0
        %v636 = vsel %vm570, %v619, 0
        %v639 = vsel %vm570, %v620, 0
        %v642 = vsel %vm570, %v621, 0
        %v645 = vsel %vm570, %v622, 0
        %v648 = vsel %vm570, %v623, 0
        %v651 = vsel %vm570, %v624, 0
        %v654 = vsel %vm570, %v625, 0
        %656 = vmatprep.subr.mxu0 0.0
        %657 = vmatpush1.msra.mxu0 %v614
        %658 = vmatprep.subr.mxu0 0.0
        %659 = vmatpush1.msra.mxu0 0.0
        %660 = vmatprep.subr.mxu0 0.0
        %661 = vmatpush1.msra.mxu0 0.0
        %662 = vmatprep.subr.mxu0 0.0
        %663 = vmatpush1.msra.mxu0 0.0
        %664 = vmatprep.subr.mxu0 0.0
        %665 = vmatpush1.msra.mxu0 0.0
        %666 = vmatprep.subr.mxu0 0.0
        %667 = vmatpush1.msra.mxu0 0.0
        %668 = vmatprep.subr.mxu0 0.0
        %669 = vmatpush1.msra.mxu0 0.0
        %670 = vmatprep.subr.mxu0 0.0
        %671 = vmatpush1.msra.mxu0 0.0
        %672 = vmatprep.subr.mxu0 0.0
        %673 = vmatpush1.msra.mxu0 0.0
        %674 = vmatprep.subr.mxu0 0.0
        %675 = vmatpush1.msra.mxu0 0.0
        %676 = vmatprep.subr.mxu0 0.0
        %677 = vmatpush1.msra.mxu0 0.0
        %678 = vmatprep.subr.mxu0 0.0
        %679 = vmatpush1.msra.mxu0 0.0
        %680 = vmatprep.subr.mxu0 0.0
        %681 = vmatpush1.msra.mxu0 0.0
        %682 = vmatprep.subr.mxu0 0.0
        %683 = vmatpush1.msra.mxu0 0.0
        %684 = vmatprep.subr.mxu0 0.0
        %685 = vmatpush1.msra.mxu0 0.0
        %686 = vmatprep.subr.mxu0 0.0
        %687 = vmatpush1.msra.mxu0 0.0
        %688 = vmatprep.subr.mxu0 0.0
        %689 = vmatpush1.msra.mxu0 0.0
        %690 = vmatprep.subr.mxu0 0.0
        %691 = vmatpush1.msra.mxu0 0.0
        %692 = vmatprep.subr.mxu0 0.0
        %693 = vmatpush1.msra.mxu0 0.0
        %694 = vmatprep.subr.mxu0 0.0
        %695 = vmatpush1.msra.mxu0 0.0
        %696 = vmatprep.subr.mxu0 0.0
        %697 = vmatpush1.msra.mxu0 0.0
        %698 = vmatprep.subr.mxu0 0.0
        %699 = vmatpush1.msra.mxu0 0.0
        %700 = vmatprep.subr.mxu0 0.0
        %701 = vmatpush1.msra.mxu0 0.0
        %702 = vmatprep.subr.mxu0 0.0
        %703 = vmatpush1.msra.mxu0 0.0
        %704 = vmatprep.subr.mxu0 0.0
        %705 = vmatpush1.msra.mxu0 0.0
        %706 = vmatprep.subr.mxu0 0.0
        %707 = vmatpush1.msra.mxu0 0.0
        %708 = vmatprep.subr.mxu0 0.0
        %709 = vmatpush1.msra.mxu0 0.0
        %710 = vmatprep.subr.mxu0 0.0
        %711 = vmatpush1.msra.mxu0 0.0
        %712 = vmatprep.subr.mxu0 0.0
        %713 = vmatpush1.msra.mxu0 0.0
        %714 = vmatprep.subr.mxu0 0.0
        %715 = vmatpush1.msra.mxu0 0.0
        %716 = vmatprep.subr.mxu0 0.0
        %717 = vmatpush1.msra.mxu0 0.0
        %718 = vmatprep.subr.mxu0 0.0
        %719 = vmatpush1.msra.mxu0 0.0
        %720 = vmatprep.mubr.f32.mxu0 0.0
        %721 = vmatmul.mubr.f32.gmra.mrb[0].mxu0 %v633
        %v722 = vpop.f32.mrb[0].mxu0
        %v723 = vadd.f32 %v630, %v722
        %v724 = vpop.f32.mrb[0].mxu0
        %725 = vmatprep.mubr.f32.mxu0 0.0
        %726 = vmatmul.mubr.f32.gmra.mrb[0].mxu0 %v636
        %v727 = vpop.f32.mrb[0].mxu0
        %v728 = vadd.f32 %v630, %v727
        %v729 = vpop.f32.mrb[0].mxu0
        %730 = vmatprep.mubr.f32.mxu0 0.0
        %731 = vmatmul.mubr.f32.gmra.mrb[0].mxu0 %v639
        %v732 = vpop.f32.mrb[0].mxu0
        %v733 = vadd.f32 %v630, %v732
        %v734 = vpop.f32.mrb[0].mxu0
        %735 = vmatprep.mubr.f32.mxu0 0.0
        %736 = vmatmul.mubr.f32.gmra.mrb[0].mxu0 %v642
        %v737 = vpop.f32.mrb[0].mxu0
        %v738 = vadd.f32 %v630, %v737
        %v739 = vpop.f32.mrb[0].mxu0
        %740 = vmatprep.mubr.f32.mxu0 0.0
        %741 = vmatmul.mubr.f32.gmra.mrb[0].mxu0 %v645
        %v742 = vpop.f32.mrb[0].mxu0
        %v743 = vadd.f32 %v630, %v742
        %v744 = vpop.f32.mrb[0].mxu0
        %745 = vmatprep.mubr.f32.mxu0 0.0
        %746 = vmatmul.mubr.f32.gmra.mrb[0].mxu0 %v648
        %v747 = vpop.f32.mrb[0].mxu0
        %v748 = vadd.f32 %v630, %v747
        %v749 = vpop.f32.mrb[0].mxu0
        %750 = vmatprep.mubr.f32.mxu0 0.0
        %751 = vmatmul.mubr.f32.gmra.mrb[0].mxu0 %v651
        %v752 = vpop.f32.mrb[0].mxu0
        %v753 = vadd.f32 %v630, %v752
        %v754 = vpop.f32.mrb[0].mxu0
        %755 = vmatprep.mubr.f32.mxu0 0.0
        %756 = vmatmul.mubr.f32.gmra.mrb[0].mxu0 %v654
        %v757 = vpop.f32.mrb[0].mxu0
        %v758 = vadd.f32 %v630, %v757
        %v759 = vpop.f32.mrb[0].mxu0
        %760 = vdwg.mxu0
        %769 = vrot.lane.b32.xlu0 %v723, 120
        %v770 = vpop.permute.xlu0 %769
        %771 = vrot.lane.b32.xlu0 %v728, 120
        %v772 = vpop.permute.xlu0 %771
        %773 = vrot.lane.b32.xlu0 %v733, 120
        %v774 = vpop.permute.xlu0 %773
        %775 = vrot.lane.b32.xlu0 %v738, 120
        %v776 = vpop.permute.xlu0 %775
        %777 = vrot.lane.b32.xlu0 %v743, 120
        %v778 = vpop.permute.xlu0 %777
        %779 = vrot.lane.b32.xlu0 %v748, 120
        %v780 = vpop.permute.xlu0 %779
        %781 = vrot.lane.b32.xlu0 %v753, 120
        %v782 = vpop.permute.xlu0 %781
        %783 = vrot.lane.b32.xlu0 %v758, 120
        %v784 = vpop.permute.xlu0 %783
        %s793 = smul.u32 0, 2
        %s794 = smul.u32 %s793, 8
        %s795 = scalar_lea.vmem %s452, %s794 [#allocation7]
        %v796 = vld [vmem:[%s795] sm:$0xff]
        %v797 = vld [vmem:[%s795 + $0x8] sm:$0xff]
        %v798 = vld [vmem:[%s795 + $0x10] sm:$0xff]
        %v799 = vld [vmem:[%s795 + $0x18] sm:$0xff]
        %v800 = vld [vmem:[%s795 + $0x20] sm:$0xff]
        %v801 = vld [vmem:[%s795 + $0x28] sm:$0xff]
        %v802 = vld [vmem:[%s795 + $0x30] sm:$0xff]
        %v803 = vld [vmem:[%s795 + $0x38] sm:$0xff]
        %v804 = vld [vmem:[%s795 + $0x40] sm:$0xff]
        %v805 = vld [vmem:[%s795 + $0x48] sm:$0xff]
        %v806 = vld [vmem:[%s795 + $0x50] sm:$0xff]
        %v807 = vld [vmem:[%s795 + $0x58] sm:$0xff]
        %v808 = vld [vmem:[%s795 + $0x60] sm:$0xff]
        %v809 = vld [vmem:[%s795 + $0x68] sm:$0xff]
        %v810 = vld [vmem:[%s795 + $0x70] sm:$0xff]
        %v811 = vld [vmem:[%s795 + $0x78] sm:$0xff]
        %s812 = sadd.s32 %s793, 1
        %s813 = smul.u32 %s812, 24
        %s814 = scalar_lea.vmem [#allocation2], %s813
        %vm815 = vcmask 31744
        %816 = vst.msk [vmem:[%s814 + $0x8] sm:$0xff] %vm815, %v723
        %817 = vst.msk [vmem:[%s814 + $0x20] sm:$0xff] %vm815, %v770
        %818 = vst.msk [vmem:[%s814 + $0x38] sm:$0xff] %vm815, %v728
        %819 = vst.msk [vmem:[%s814 + $0x50] sm:$0xff] %vm815, %v772
        %820 = vst.msk [vmem:[%s814 + $0x68] sm:$0xff] %vm815, %v733
        %821 = vst.msk [vmem:[%s814 + $0x80] sm:$0xff] %vm815, %v774
        %822 = vst.msk [vmem:[%s814 + $0x98] sm:$0xff] %vm815, %v738
        %823 = vst.msk [vmem:[%s814 + $0xb0] sm:$0xff] %vm815, %v776
        %824 = vst.msk [vmem:[%s814 + $0xc8] sm:$0xff] %vm815, %v743
        %825 = vst.msk [vmem:[%s814 + $0xe0] sm:$0xff] %vm815, %v778
        %826 = vst.msk [vmem:[%s814 + $0xf8] sm:$0xff] %vm815, %v748
        %827 = vst.msk [vmem:[%s814 + $0x110] sm:$0xff] %vm815, %v780
        %828 = vst.msk [vmem:[%s814 + $0x128] sm:$0xff] %vm815, %v753
        %829 = vst.msk [vmem:[%s814 + $0x140] sm:$0xff] %vm815, %v782
        %830 = vst.msk [vmem:[%s814 + $0x158] sm:$0xff] %vm815, %v758
        %831 = vst.msk [vmem:[%s814 + $0x170] sm:$0xff] %vm815, %v784
        %848 = vrot.lane.b32.xlu0 %v796, 4
        %v849 = vpop.permute.xlu0 %848
        %850 = vrot.lane.b32.xlu0 %v797, 4
        %v851 = vpop.permute.xlu0 %850
        %852 = vrot.lane.b32.xlu0 %v798, 4
        %v853 = vpop.permute.xlu0 %852
        %854 = vrot.lane.b32.xlu0 %v799, 4
        %v855 = vpop.permute.xlu0 %854
        %856 = vrot.lane.b32.xlu0 %v800, 4
        %v857 = vpop.permute.xlu0 %856
        %858 = vrot.lane.b32.xlu0 %v801, 4
        %v859 = vpop.permute.xlu0 %858
        %860 = vrot.lane.b32.xlu0 %v802, 4
        %v861 = vpop.permute.xlu0 %860
        %862 = vrot.lane.b32.xlu0 %v803, 4
        %v863 = vpop.permute.xlu0 %862
        %864 = vrot.lane.b32.xlu0 %v804, 4
        %v865 = vpop.permute.xlu0 %864
        %866 = vrot.lane.b32.xlu0 %v805, 4
        %v867 = vpop.permute.xlu0 %866
        %868 = vrot.lane.b32.xlu0 %v806, 4
        %v869 = vpop.permute.xlu0 %868
        %870 = vrot.lane.b32.xlu0 %v807, 4
        %v871 = vpop.permute.xlu0 %870
        %872 = vrot.lane.b32.xlu0 %v808, 4
        %v873 = vpop.permute.xlu0 %872
        %874 = vrot.lane.b32.xlu0 %v809, 4
        %v875 = vpop.permute.xlu0 %874
        %876 = vrot.lane.b32.xlu0 %v810, 4
        %v877 = vpop.permute.xlu0 %876
        %878 = vrot.lane.b32.xlu0 %v811, 4
        %v879 = vpop.permute.xlu0 %878
        %vm896 = vcmask 64544
        %897 = vst.msk [vmem:[%s814 + $0x8] sm:$0xff] %vm896, %v849
        %898 = vst.msk [vmem:[%s814 + $0x20] sm:$0xff] %vm896, %v851
        %899 = vst.msk [vmem:[%s814 + $0x38] sm:$0xff] %vm896, %v853
        %900 = vst.msk [vmem:[%s814 + $0x50] sm:$0xff] %vm896, %v855
        %901 = vst.msk [vmem:[%s814 + $0x68] sm:$0xff] %vm896, %v857
        %902 = vst.msk [vmem:[%s814 + $0x80] sm:$0xff] %vm896, %v859
        %903 = vst.msk [vmem:[%s814 + $0x98] sm:$0xff] %vm896, %v861
        %904 = vst.msk [vmem:[%s814 + $0xb0] sm:$0xff] %vm896, %v863
        %905 = vst.msk [vmem:[%s814 + $0xc8] sm:$0xff] %vm896, %v865
        %906 = vst.msk [vmem:[%s814 + $0xe0] sm:$0xff] %vm896, %v867
        %907 = vst.msk [vmem:[%s814 + $0xf8] sm:$0xff] %vm896, %v869
        %908 = vst.msk [vmem:[%s814 + $0x110] sm:$0xff] %vm896, %v871
        %909 = vst.msk [vmem:[%s814 + $0x128] sm:$0xff] %vm896, %v873
        %910 = vst.msk [vmem:[%s814 + $0x140] sm:$0xff] %vm896, %v875
        %911 = vst.msk [vmem:[%s814 + $0x158] sm:$0xff] %vm896, %v877
        %912 = vst.msk [vmem:[%s814 + $0x170] sm:$0xff] %vm896, %v879
        %913 = vrot.lane.b32.xlu0 %v723, 4
        %v914 = vpop.permute.xlu0 %913
        %915 = vrot.lane.b32.xlu0 %v770, 4
        %v916 = vpop.permute.xlu0 %915
        %917 = vrot.lane.b32.xlu0 %v728, 4
        %v918 = vpop.permute.xlu0 %917
        %919 = vrot.lane.b32.xlu0 %v772, 4
        %v920 = vpop.permute.xlu0 %919
        %921 = vrot.lane.b32.xlu0 %v733, 4
        %v922 = vpop.permute.xlu0 %921
        %923 = vrot.lane.b32.xlu0 %v774, 4
        %v924 = vpop.permute.xlu0 %923
        %925 = vrot.lane.b32.xlu0 %v738, 4
        %v926 = vpop.permute.xlu0 %925
        %927 = vrot.lane.b32.xlu0 %v776, 4
        %v928 = vpop.permute.xlu0 %927
        %929 = vrot.lane.b32.xlu0 %v743, 4
        %v930 = vpop.permute.xlu0 %929
        %931 = vrot.lane.b32.xlu0 %v778, 4
        %v932 = vpop.permute.xlu0 %931
        %933 = vrot.lane.b32.xlu0 %v748, 4
        %v934 = vpop.permute.xlu0 %933
        %935 = vrot.lane.b32.xlu0 %v780, 4
        %v936 = vpop.permute.xlu0 %935
        %937 = vrot.lane.b32.xlu0 %v753, 4
        %v938 = vpop.permute.xlu0 %937
        %939 = vrot.lane.b32.xlu0 %v782, 4
        %v940 = vpop.permute.xlu0 %939
        %941 = vrot.lane.b32.xlu0 %v758, 4
        %v942 = vpop.permute.xlu0 %941
        %943 = vrot.lane.b32.xlu0 %v784, 4
        %v944 = vpop.permute.xlu0 %943
        %vm961 = vcmask 97344
        %962 = vst.msk [vmem:[%s814 + $0x8] sm:$0xff] %vm961, %v914
        %963 = vst.msk [vmem:[%s814 + $0x20] sm:$0xff] %vm961, %v916
        %964 = vst.msk [vmem:[%s814 + $0x38] sm:$0xff] %vm961, %v918
        %965 = vst.msk [vmem:[%s814 + $0x50] sm:$0xff] %vm961, %v920
        %966 = vst.msk [vmem:[%s814 + $0x68] sm:$0xff] %vm961, %v922
        %967 = vst.msk [vmem:[%s814 + $0x80] sm:$0xff] %vm961, %v924
        %968 = vst.msk [vmem:[%s814 + $0x98] sm:$0xff] %vm961, %v926
        %969 = vst.msk [vmem:[%s814 + $0xb0] sm:$0xff] %vm961, %v928
        %970 = vst.msk [vmem:[%s814 + $0xc8] sm:$0xff] %vm961, %v930
        %971 = vst.msk [vmem:[%s814 + $0xe0] sm:$0xff] %vm961, %v932
        %972 = vst.msk [vmem:[%s814 + $0xf8] sm:$0xff] %vm961, %v934
        %973 = vst.msk [vmem:[%s814 + $0x110] sm:$0xff] %vm961, %v936
        %974 = vst.msk [vmem:[%s814 + $0x128] sm:$0xff] %vm961, %v938
        %975 = vst.msk [vmem:[%s814 + $0x140] sm:$0xff] %vm961, %v940
        %976 = vst.msk [vmem:[%s814 + $0x158] sm:$0xff] %vm961, %v942
        %977 = vst.msk [vmem:[%s814 + $0x170] sm:$0xff] %vm961, %v944
        %978 = vrot.lane.b32.xlu0 %v796, 8
        %v979 = vpop.permute.xlu0 %978
        %980 = vrot.lane.b32.xlu0 %v797, 8
        %v981 = vpop.permute.xlu0 %980
        %982 = vrot.lane.b32.xlu0 %v798, 8
        %v983 = vpop.permute.xlu0 %982
        %984 = vrot.lane.b32.xlu0 %v799, 8
        %v985 = vpop.permute.xlu0 %984
        %986 = vrot.lane.b32.xlu0 %v800, 8
        %v987 = vpop.permute.xlu0 %986
        %988 = vrot.lane.b32.xlu0 %v801, 8
        %v989 = vpop.permute.xlu0 %988
        %990 = vrot.lane.b32.xlu0 %v802, 8
        %v991 = vpop.permute.xlu0 %990
        %992 = vrot.lane.b32.xlu0 %v803, 8
        %v993 = vpop.permute.xlu0 %992
        %994 = vrot.lane.b32.xlu0 %v804, 8
        %v995 = vpop.permute.xlu0 %994
        %996 = vrot.lane.b32.xlu0 %v805, 8
        %v997 = vpop.permute.xlu0 %996
        %998 = vrot.lane.b32.xlu0 %v806, 8
        %v999 = vpop.permute.xlu0 %998
        %1000 = vrot.lane.b32.xlu0 %v807, 8
        %v1001 = vpop.permute.xlu0 %1000
        %1002 = vrot.lane.b32.xlu0 %v808, 8
        %v1003 = vpop.permute.xlu0 %1002
        %1004 = vrot.lane.b32.xlu0 %v809, 8
        %v1005 = vpop.permute.xlu0 %1004
        %1006 = vrot.lane.b32.xlu0 %v810, 8
        %v1007 = vpop.permute.xlu0 %1006
        %1008 = vrot.lane.b32.xlu0 %v811, 8
        %v1009 = vpop.permute.xlu0 %1008
        %vm1026 = vcmask 130144
        %1027 = vst.msk [vmem:[%s814 + $0x8] sm:$0xff] %vm1026, %v979
        %1028 = vst.msk [vmem:[%s814 + $0x20] sm:$0xff] %vm1026, %v981
        %1029 = vst.msk [vmem:[%s814 + $0x38] sm:$0xff] %vm1026, %v983
        %1030 = vst.msk [vmem:[%s814 + $0x50] sm:$0xff] %vm1026, %v985
        %1031 = vst.msk [vmem:[%s814 + $0x68] sm:$0xff] %vm1026, %v987
        %1032 = vst.msk [vmem:[%s814 + $0x80] sm:$0xff] %vm1026, %v989
        %1033 = vst.msk [vmem:[%s814 + $0x98] sm:$0xff] %vm1026, %v991
        %1034 = vst.msk [vmem:[%s814 + $0xb0] sm:$0xff] %vm1026, %v993
        %1035 = vst.msk [vmem:[%s814 + $0xc8] sm:$0xff] %vm1026, %v995
        %1036 = vst.msk [vmem:[%s814 + $0xe0] sm:$0xff] %vm1026, %v997
        %1037 = vst.msk [vmem:[%s814 + $0xf8] sm:$0xff] %vm1026, %v999
        %1038 = vst.msk [vmem:[%s814 + $0x110] sm:$0xff] %vm1026, %v1001
        %1039 = vst.msk [vmem:[%s814 + $0x128] sm:$0xff] %vm1026, %v1003
        %1040 = vst.msk [vmem:[%s814 + $0x140] sm:$0xff] %vm1026, %v1005
        %1041 = vst.msk [vmem:[%s814 + $0x158] sm:$0xff] %vm1026, %v1007
        %1042 = vst.msk [vmem:[%s814 + $0x170] sm:$0xff] %vm1026, %v1009
        loop: start=0, step=1, limit=2
        $region101: #{unet_up_block_forward.1} parent=59 // loop_pre_header
          _
        $region102: #{unet_up_block_forward.1} parent=59 // loop_header
          %s1044 = sphi 0, %s1048
          %p1045 = scmp.ge.s32.totalorder %s1044, 2
        $region103: #{unet_up_block_forward.1} parent=59 // loop_header_branch
          %1047 = sbr.rel (%p1045) target = $region107
        $region104: #{unet_up_block_forward.1} parent=59 // loop_body
          %s1049 = smul.u32 %s1044, 8
          %v1050 = vld [vmem:[#allocation15] sm:$0x1]
          %s1051 = smul.u32 %s1049, 24
          %s1052 = scalar_lea.vmem [#allocation2], %s1051
          %v1053 = vld [vmem:[%s1052 + $0x8] sm:$0xff]
          %v1054 = vld [vmem:[%s1052 + $0x20] sm:$0xff]
          %v1055 = vld [vmem:[%s1052 + $0x38] sm:$0xff]
          %v1056 = vld [vmem:[%s1052 + $0x50] sm:$0xff]
          %v1057 = vld [vmem:[%s1052 + $0x68] sm:$0xff]
          %v1058 = vld [vmem:[%s1052 + $0x80] sm:$0xff]
          %v1059 = vld [vmem:[%s1052 + $0x98] sm:$0xff]
          %v1060 = vld [vmem:[%s1052 + $0xb0] sm:$0xff]
          %v1061 = vld [vmem:[%s1052 + $0x7] sm:$0xff]
          %v1062 = vld [vmem:[%s1052 + $0x1f] sm:$0xff]
          %v1063 = vld [vmem:[%s1052 + $0x37] sm:$0xff]
          %v1064 = vld [vmem:[%s1052 + $0x4f] sm:$0xff]
          %v1065 = vld [vmem:[%s1052 + $0x67] sm:$0xff]
          %v1066 = vld [vmem:[%s1052 + $0x7f] sm:$0xff]
          %v1067 = vld [vmem:[%s1052 + $0x97] sm:$0xff]
          %v1068 = vld [vmem:[%s1052 + $0xaf] sm:$0xff]
          %v1069 = vld [vmem:[%s1052 + $0x9] sm:$0xff]
          %v1070 = vld [vmem:[%s1052 + $0x21] sm:$0xff]
          %v1071 = vld [vmem:[%s1052 + $0x39] sm:$0xff]
          %v1072 = vld [vmem:[%s1052 + $0x51] sm:$0xff]
          %v1073 = vld [vmem:[%s1052 + $0x69] sm:$0xff]
          %v1074 = vld [vmem:[%s1052 + $0x81] sm:$0xff]
          %v1075 = vld [vmem:[%s1052 + $0x99] sm:$0xff]
          %v1076 = vld [vmem:[%s1052 + $0xb1] sm:$0xff]
          %v1077 = vld [vmem:[#allocation12] sm:$0xff]
          %v1078 = vld [vmem:[#allocation12 + $0x8] sm:$0xff]
          %v1079 = vld [vmem:[#allocation13] sm:$0xff]
          %1088 = vrot.lane.b32.xlu0 %v1061, 120
          %v1089 = vpop.permute.xlu0 %1088
          %1090 = vrot.lane.b32.xlu0 %v1062, 120
          %v1091 = vpop.permute.xlu0 %1090
          %1092 = vrot.lane.b32.xlu0 %v1063, 120
          %v1093 = vpop.permute.xlu0 %1092
          %1094 = vrot.lane.b32.xlu0 %v1064, 120
          %v1095 = vpop.permute.xlu0 %1094
          %1096 = vrot.lane.b32.xlu0 %v1065, 120
          %v1097 = vpop.permute.xlu0 %1096
          %1098 = vrot.lane.b32.xlu0 %v1066, 120
          %v1099 = vpop.permute.xlu0 %1098
          %1100 = vrot.lane.b32.xlu0 %v1067, 120
          %v1101 = vpop.permute.xlu0 %1100
          %1102 = vrot.lane.b32.xlu0 %v1068, 120
          %v1103 = vpop.permute.xlu0 %1102
          %v1104 = vsel %vm570, %v1089, 0
          %v1106 = vsel %vm570, %v1091, 0
          %v1108 = vsel %vm570, %v1093, 0
          %v1110 = vsel %vm570, %v1095, 0
          %v1112 = vsel %vm570, %v1097, 0
          %v1114 = vsel %vm570, %v1099, 0
          %v1116 = vsel %vm570, %v1101, 0
          %v1118 = vsel %vm570, %v1103, 0
          %1120 = vmatprep.subr.mxu0 0.0
          %1121 = vmatpush1.msra.mxu0 %v1079
          %1122 = vmatprep.subr.mxu0 0.0
          %1123 = vmatpush1.msra.mxu0 0.0
          %1124 = vmatprep.subr.mxu0 0.0
          %1125 = vmatpush1.msra.mxu0 0.0
          %1126 = vmatprep.subr.mxu0 0.0
          %1127 = vmatpush1.msra.mxu0 0.0
          %1128 = vmatprep.subr.mxu0 0.0
          %1129 = vmatpush1.msra.mxu0 0.0
          %1130 = vmatprep.subr.mxu0 0.0
          %1131 = vmatpush1.msra.mxu0 0.0
          %1132 = vmatprep.subr.mxu0 0.0
          %1133 = vmatpush1.msra.mxu0 0.0
          %1134 = vmatprep.subr.mxu0 0.0
          %1135 = vmatpush1.msra.mxu0 0.0
          %1136 = vmatprep.subr.mxu0 0.0
          %1137 = vmatpush1.msra.mxu0 0.0
          %1138 = vmatprep.subr.mxu0 0.0
          %1139 = vmatpush1.msra.mxu0 0.0
          %1140 = vmatprep.subr.mxu0 0.0
          %1141 = vmatpush1.msra.mxu0 0.0
          %1142 = vmatprep.subr.mxu0 0.0
          %1143 = vmatpush1.msra.mxu0 0.0
          %1144 = vmatprep.subr.mxu0 0.0
          %1145 = vmatpush1.msra.mxu0 0.0
          %1146 = vmatprep.subr.mxu0 0.0
          %1147 = vmatpush1.msra.mxu0 0.0
          %1148 = vmatprep.subr.mxu0 0.0
          %1149 = vmatpush1.msra.mxu0 0.0
          %1150 = vmatprep.subr.mxu0 0.0
          %1151 = vmatpush1.msra.mxu0 0.0
          %1152 = vmatprep.subr.mxu0 0.0
          %1153 = vmatpush1.msra.mxu0 0.0
          %1154 = vmatprep.subr.mxu0 0.0
          %1155 = vmatpush1.msra.mxu0 0.0
          %1156 = vmatprep.subr.mxu0 0.0
          %1157 = vmatpush1.msra.mxu0 0.0
          %1158 = vmatprep.subr.mxu0 0.0
          %1159 = vmatpush1.msra.mxu0 0.0
          %1160 = vmatprep.subr.mxu0 0.0
          %1161 = vmatpush1.msra.mxu0 0.0
          %1162 = vmatprep.subr.mxu0 0.0
          %1163 = vmatpush1.msra.mxu0 0.0
          %1164 = vmatprep.subr.mxu0 0.0
          %1165 = vmatpush1.msra.mxu0 0.0
          %1166 = vmatprep.subr.mxu0 0.0
          %1167 = vmatpush1.msra.mxu0 0.0
          %1168 = vmatprep.subr.mxu0 0.0
          %1169 = vmatpush1.msra.mxu0 0.0
          %1170 = vmatprep.subr.mxu0 0.0
          %1171 = vmatpush1.msra.mxu0 0.0
          %1172 = vmatprep.subr.mxu0 0.0
          %1173 = vmatpush1.msra.mxu0 0.0
          %1174 = vmatprep.subr.mxu0 0.0
          %1175 = vmatpush1.msra.mxu0 0.0
          %1176 = vmatprep.subr.mxu0 0.0
          %1177 = vmatpush1.msra.mxu0 0.0
          %1178 = vmatprep.subr.mxu0 0.0
          %1179 = vmatpush1.msra.mxu0 0.0
          %1180 = vmatprep.subr.mxu0 0.0
          %1181 = vmatpush1.msra.mxu0 0.0
          %1182 = vmatprep.subr.mxu0 0.0
          %1183 = vmatpush1.msra.mxu0 0.0
          %1184 = vmatprep.mubr.f32.mxu0 0.0
          %1185 = vmatmul.mubr.f32.gmra.mrb[0].mxu0 %v1104
          %v1186 = vpop.f32.mrb[0].mxu0
          %v1187 = vadd.f32 0.0, %v1186
          %v1188 = vpop.f32.mrb[0].mxu0
          %1189 = vmatprep.mubr.f32.mxu0 0.0
          %1190 = vmatmul.mubr.f32.gmra.mrb[0].mxu0 %v1106
          %v1191 = vpop.f32.mrb[0].mxu0
          %v1192 = vadd.f32 0.0, %v1191
          %v1193 = vpop.f32.mrb[0].mxu0
          %1194 = vmatprep.mubr.f32.mxu0 0.0
          %1195 = vmatmul.mubr.f32.gmra.mrb[0].mxu0 %v1108
          %v1196 = vpop.f32.mrb[0].mxu0
          %v1197 = vadd.f32 0.0, %v1196
          %v1198 = vpop.f32.mrb[0].mxu0
          %1199 = vmatprep.mubr.f32.mxu0 0.0
          %1200 = vmatmul.mubr.f32.gmra.mrb[0].mxu0 %v1110
          %v1201 = vpop.f32.mrb[0].mxu0
          %v1202 = vadd.f32 0.0, %v1201
          %v1203 = vpop.f32.mrb[0].mxu0
          %1204 = vmatprep.mubr.f32.mxu0 0.0
          %1205 = vmatmul.mubr.f32.gmra.mrb[0].mxu0 %v1112
          %v1206 = vpop.f32.mrb[0].mxu0
          %v1207 = vadd.f32 0.0, %v1206
          %v1208 = vpop.f32.mrb[0].mxu0
          %1209 = vmatprep.mubr.f32.mxu0 0.0
          %1210 = vmatmul.mubr.f32.gmra.mrb[0].mxu0 %v1114
          %v1211 = vpop.f32.mrb[0].mxu0
          %v1212 = vadd.f32 0.0, %v1211
          %v1213 = vpop.f32.mrb[0].mxu0
          %1214 = vmatprep.mubr.f32.mxu0 0.0
          %1215 = vmatmul.mubr.f32.gmra.mrb[0].mxu0 %v1116
          %v1216 = vpop.f32.mrb[0].mxu0
          %v1217 = vadd.f32 0.0, %v1216
          %v1218 = vpop.f32.mrb[0].mxu0
          %1219 = vmatprep.mubr.f32.mxu0 0.0
          %1220 = vmatmul.mubr.f32.gmra.mrb[0].mxu0 %v1118
          %v1221 = vpop.f32.mrb[0].mxu0
          %v1222 = vadd.f32 0.0, %v1221
          %v1223 = vpop.f32.mrb[0].mxu0
          %1224 = vdwg.mxu0
          %v1226 = vsel %vm526, %v1053, 0
          %v1229 = vsel %vm526, %v1054, 0
          %v1232 = vsel %vm526, %v1055, 0
          %v1235 = vsel %vm526, %v1056, 0
          %v1238 = vsel %vm526, %v1057, 0
          %v1241 = vsel %vm526, %v1058, 0
          %v1244 = vsel %vm526, %v1059, 0
          %v1247 = vsel %vm526, %v1060, 0
          %1249 = vmatprep.subr.mxu0 0.0
          %1250 = vmatpush1.msra.mxu0 %v1077
          %1251 = vmatprep.subr.mxu0 0.0
          %1252 = vmatpush1.msra.mxu0 %v1078
          %1253 = vmatprep.subr.mxu0 0.0
          %1254 = vmatpush1.msra.mxu0 0.0
          %1255 = vmatprep.subr.mxu0 0.0
          %1256 = vmatpush1.msra.mxu0 0.0
          %1257 = vmatprep.subr.mxu0 0.0
          %1258 = vmatpush1.msra.mxu0 0.0
          %1259 = vmatprep.subr.mxu0 0.0
          %1260 = vmatpush1.msra.mxu0 0.0
          %1261 = vmatprep.subr.mxu0 0.0
          %1262 = vmatpush1.msra.mxu0 0.0
          %1263 = vmatprep.subr.mxu0 0.0
          %1264 = vmatpush1.msra.mxu0 0.0
          %1265 = vmatprep.subr.mxu0 0.0
          %1266 = vmatpush1.msra.mxu0 0.0
          %1267 = vmatprep.subr.mxu0 0.0
          %1268 = vmatpush1.msra.mxu0 0.0
          %1269 = vmatprep.subr.mxu0 0.0
          %1270 = vmatpush1.msra.mxu0 0.0
          %1271 = vmatprep.subr.mxu0 0.0
          %1272 = vmatpush1.msra.mxu0 0.0
          %1273 = vmatprep.subr.mxu0 0.0
          %1274 = vmatpush1.msra.mxu0 0.0
          %1275 = vmatprep.subr.mxu0 0.0
          %1276 = vmatpush1.msra.mxu0 0.0
          %1277 = vmatprep.subr.mxu0 0.0
          %1278 = vmatpush1.msra.mxu0 0.0
          %1279 = vmatprep.subr.mxu0 0.0
          %1280 = vmatpush1.msra.mxu0 0.0
          %1281 = vmatprep.subr.mxu0 0.0
          %1282 = vmatpush1.msra.mxu0 0.0
          %1283 = vmatprep.subr.mxu0 0.0
          %1284 = vmatpush1.msra.mxu0 0.0
          %1285 = vmatprep.subr.mxu0 0.0
          %1286 = vmatpush1.msra.mxu0 0.0
          %1287 = vmatprep.subr.mxu0 0.0
          %1288 = vmatpush1.msra.mxu0 0.0
          %1289 = vmatprep.subr.mxu0 0.0
          %1290 = vmatpush1.msra.mxu0 0.0
          %1291 = vmatprep.subr.mxu0 0.0
          %1292 = vmatpush1.msra.mxu0 0.0
          %1293 = vmatprep.subr.mxu0 0.0
          %1294 = vmatpush1.msra.mxu0 0.0
          %1295 = vmatprep.subr.mxu0 0.0
          %1296 = vmatpush1.msra.mxu0 0.0
          %1297 = vmatprep.subr.mxu0 0.0
          %1298 = vmatpush1.msra.mxu0 0.0
          %1299 = vmatprep.subr.mxu0 0.0
          %1300 = vmatpush1.msra.mxu0 0.0
          %1301 = vmatprep.subr.mxu0 0.0
          %1302 = vmatpush1.msra.mxu0 0.0
          %1303 = vmatprep.subr.mxu0 0.0
          %1304 = vmatpush1.msra.mxu0 0.0
          %1305 = vmatprep.subr.mxu0 0.0
          %1306 = vmatpush1.msra.mxu0 0.0
          %1307 = vmatprep.subr.mxu0 0.0
          %1308 = vmatpush1.msra.mxu0 0.0
          %1309 = vmatprep.subr.mxu0 0.0
          %1310 = vmatpush1.msra.mxu0 0.0
          %1311 = vmatprep.subr.mxu0 0.0
          %1312 = vmatpush1.msra.mxu0 0.0
          %1313 = vmatprep.mubr.f32.mxu0 0.0
          %1314 = vmatmul.mubr.f32.gmra.mrb[0].mxu0 %v1226
          %v1315 = vpop.f32.mrb[0].mxu0
          %v1316 = vadd.f32 %v1187, %v1315
          %v1317 = vpop.f32.mrb[0].mxu0
          %1318 = vmatprep.mubr.f32.mxu0 0.0
          %1319 = vmatmul.mubr.f32.gmra.mrb[0].mxu0 %v1229
          %v1320 = vpop.f32.mrb[0].mxu0
          %v1321 = vadd.f32 %v1192, %v1320
          %v1322 = vpop.f32.mrb[0].mxu0
          %1323 = vmatprep.mubr.f32.mxu0 0.0
          %1324 = vmatmul.mubr.f32.gmra.mrb[0].mxu0 %v1232
          %v1325 = vpop.f32.mrb[0].mxu0
          %v1326 = vadd.f32 %v1197, %v1325
          %v1327 = vpop.f32.mrb[0].mxu0
          %1328 = vmatprep.mubr.f32.mxu0 0.0
          %1329 = vmatmul.mubr.f32.gmra.mrb[0].mxu0 %v1235
          %v1330 = vpop.f32.mrb[0].mxu0
          %v1331 = vadd.f32 %v1202, %v1330
          %v1332 = vpop.f32.mrb[0].mxu0
          %1333 = vmatprep.mubr.f32.mxu0 0.0
          %1334 = vmatmul.mubr.f32.gmra.mrb[0].mxu0 %v1238
          %v1335 = vpop.f32.mrb[0].mxu0
          %v1336 = vadd.f32 %v1207, %v1335
          %v1337 = vpop.f32.mrb[0].mxu0
          %1338 = vmatprep.mubr.f32.mxu0 0.0
          %1339 = vmatmul.mubr.f32.gmra.mrb[0].mxu0 %v1241
          %v1340 = vpop.f32.mrb[0].mxu0
          %v1341 = vadd.f32 %v1212, %v1340
          %v1342 = vpop.f32.mrb[0].mxu0
          %1343 = vmatprep.mubr.f32.mxu0 0.0
          %1344 = vmatmul.mubr.f32.gmra.mrb[0].mxu0 %v1244
          %v1345 = vpop.f32.mrb[0].mxu0
          %v1346 = vadd.f32 %v1217, %v1345
          %v1347 = vpop.f32.mrb[0].mxu0
          %1348 = vmatprep.mubr.f32.mxu0 0.0
          %1349 = vmatmul.mubr.f32.gmra.mrb[0].mxu0 %v1247
          %v1350 = vpop.f32.mrb[0].mxu0
          %v1351 = vadd.f32 %v1222, %v1350
          %v1352 = vpop.f32.mrb[0].mxu0
          %1353 = vdwg.mxu0
          %s1354 = scalar_lea.vmem [#allocation12], 48
          %v1355 = vld [vmem:[%s1354] sm:$0xff]
          %v1356 = vld [vmem:[%s1354 + $0x8] sm:$0xff]
          %s1357 = scalar_lea.vmem [#allocation13], 24
          %v1358 = vld [vmem:[%s1357] sm:$0xff]
          %v1360 = vsel %vm570, %v1069, 0
          %v1363 = vsel %vm570, %v1070, 0
          %v1366 = vsel %vm570, %v1071, 0
          %v1369 = vsel %vm570, %v1072, 0
          %v1372 = vsel %vm570, %v1073, 0
          %v1375 = vsel %vm570, %v1074, 0
          %v1378 = vsel %vm570, %v1075, 0
          %v1381 = vsel %vm570, %v1076, 0
          %1383 = vmatprep.subr.mxu0 0.0
          %1384 = vmatpush1.msra.mxu0 %v1358
          %1385 = vmatprep.subr.mxu0 0.0
          %1386 = vmatpush1.msra.mxu0 0.0
          %1387 = vmatprep.subr.mxu0 0.0
          %1388 = vmatpush1.msra.mxu0 0.0
          %1389 = vmatprep.subr.mxu0 0.0
          %1390 = vmatpush1.msra.mxu0 0.0
          %1391 = vmatprep.subr.mxu0 0.0
          %1392 = vmatpush1.msra.mxu0 0.0
          %1393 = vmatprep.subr.mxu0 0.0
          %1394 = vmatpush1.msra.mxu0 0.0
          %1395 = vmatprep.subr.mxu0 0.0
          %1396 = vmatpush1.msra.mxu0 0.0
          %1397 = vmatprep.subr.mxu0 0.0
          %1398 = vmatpush1.msra.mxu0 0.0
          %1399 = vmatprep.subr.mxu0 0.0
          %1400 = vmatpush1.msra.mxu0 0.0
          %1401 = vmatprep.subr.mxu0 0.0
          %1402 = vmatpush1.msra.mxu0 0.0
          %1403 = vmatprep.subr.mxu0 0.0
          %1404 = vmatpush1.msra.mxu0 0.0
          %1405 = vmatprep.subr.mxu0 0.0
          %1406 = vmatpush1.msra.mxu0 0.0
          %1407 = vmatprep.subr.mxu0 0.0
          %1408 = vmatpush1.msra.mxu0 0.0
          %1409 = vmatprep.subr.mxu0 0.0
          %1410 = vmatpush1.msra.mxu0 0.0
          %1411 = vmatprep.subr.mxu0 0.0
          %1412 = vmatpush1.msra.mxu0 0.0
          %1413 = vmatprep.subr.mxu0 0.0
          %1414 = vmatpush1.msra.mxu0 0.0
          %1415 = vmatprep.subr.mxu0 0.0
          %1416 = vmatpush1.msra.mxu0 0.0
          %1417 = vmatprep.subr.mxu0 0.0
          %1418 = vmatpush1.msra.mxu0 0.0
          %1419 = vmatprep.subr.mxu0 0.0
          %1420 = vmatpush1.msra.mxu0 0.0
          %1421 = vmatprep.subr.mxu0 0.0
          %1422 = vmatpush1.msra.mxu0 0.0
          %1423 = vmatprep.subr.mxu0 0.0
          %1424 = vmatpush1.msra.mxu0 0.0
          %1425 = vmatprep.subr.mxu0 0.0
          %1426 = vmatpush1.msra.mxu0 0.0
          %1427 = vmatprep.subr.mxu0 0.0
          %1428 = vmatpush1.msra.mxu0 0.0
          %1429 = vmatprep.subr.mxu0 0.0
          %1430 = vmatpush1.msra.mxu0 0.0
          %1431 = vmatprep.subr.mxu0 0.0
          %1432 = vmatpush1.msra.mxu0 0.0
          %1433 = vmatprep.subr.mxu0 0.0
          %1434 = vmatpush1.msra.mxu0 0.0
          %1435 = vmatprep.subr.mxu0 0.0
          %1436 = vmatpush1.msra.mxu0 0.0
          %1437 = vmatprep.subr.mxu0 0.0
          %1438 = vmatpush1.msra.mxu0 0.0
          %1439 = vmatprep.subr.mxu0 0.0
          %1440 = vmatpush1.msra.mxu0 0.0
          %1441 = vmatprep.subr.mxu0 0.0
          %1442 = vmatpush1.msra.mxu0 0.0
          %1443 = vmatprep.subr.mxu0 0.0
          %1444 = vmatpush1.msra.mxu0 0.0
          %1445 = vmatprep.subr.mxu0 0.0
          %1446 = vmatpush1.msra.mxu0 0.0
          %1447 = vmatprep.mubr.f32.mxu0 0.0
          %1448 = vmatmul.mubr.f32.gmra.mrb[0].mxu0 %v1360
          %v1449 = vpop.f32.mrb[0].mxu0
          %v1450 = vadd.f32 0.0, %v1449
          %v1451 = vpop.f32.mrb[0].mxu0
          %1452 = vmatprep.mubr.f32.mxu0 0.0
          %1453 = vmatmul.mubr.f32.gmra.mrb[0].mxu0 %v1363
          %v1454 = vpop.f32.mrb[0].mxu0
          %v1455 = vadd.f32 0.0, %v1454
          %v1456 = vpop.f32.mrb[0].mxu0
          %1457 = vmatprep.mubr.f32.mxu0 0.0
          %1458 = vmatmul.mubr.f32.gmra.mrb[0].mxu0 %v1366
          %v1459 = vpop.f32.mrb[0].mxu0
          %v1460 = vadd.f32 0.0, %v1459
          %v1461 = vpop.f32.mrb[0].mxu0
          %1462 = vmatprep.mubr.f32.mxu0 0.0
          %1463 = vmatmul.mubr.f32.gmra.mrb[0].mxu0 %v1369
          %v1464 = vpop.f32.mrb[0].mxu0
          %v1465 = vadd.f32 0.0, %v1464
          %v1466 = vpop.f32.mrb[0].mxu0
          %1467 = vmatprep.mubr.f32.mxu0 0.0
          %1468 = vmatmul.mubr.f32.gmra.mrb[0].mxu0 %v1372
          %v1469 = vpop.f32.mrb[0].mxu0
          %v1470 = vadd.f32 0.0, %v1469
          %v1471 = vpop.f32.mrb[0].mxu0
          %1472 = vmatprep.mubr.f32.mxu0 0.0
          %1473 = vmatmul.mubr.f32.gmra.mrb[0].mxu0 %v1375
          %v1474 = vpop.f32.mrb[0].mxu0
          %v1475 = vadd.f32 0.0, %v1474
          %v1476 = vpop.f32.mrb[0].mxu0
          %1477 = vmatprep.mubr.f32.mxu0 0.0
          %1478 = vmatmul.mubr.f32.gmra.mrb[0].mxu0 %v1378
          %v1479 = vpop.f32.mrb[0].mxu0
          %v1480 = vadd.f32 0.0, %v1479
          %v1481 = vpop.f32.mrb[0].mxu0
          %1482 = vmatprep.mubr.f32.mxu0 0.0
          %1483 = vmatmul.mubr.f32.gmra.mrb[0].mxu0 %v1381
          %v1484 = vpop.f32.mrb[0].mxu0
          %v1485 = vadd.f32 0.0, %v1484
          %v1486 = vpop.f32.mrb[0].mxu0
          %1487 = vdwg.mxu0
          %1488 = vmatprep.subr.mxu0 0.0
          %1489 = vmatpush1.msra.mxu0 %v1355
          %1490 = vmatprep.subr.mxu0 0.0
          %1491 = vmatpush1.msra.mxu0 %v1356
          %1492 = vmatprep.subr.mxu0 0.0
          %1493 = vmatpush1.msra.mxu0 0.0
          %1494 = vmatprep.subr.mxu0 0.0
          %1495 = vmatpush1.msra.mxu0 0.0
          %1496 = vmatprep.subr.mxu0 0.0
          %1497 = vmatpush1.msra.mxu0 0.0
          %1498 = vmatprep.subr.mxu0 0.0
          %1499 = vmatpush1.msra.mxu0 0.0
          %1500 = vmatprep.subr.mxu0 0.0
          %1501 = vmatpush1.msra.mxu0 0.0
          %1502 = vmatprep.subr.mxu0 0.0
          %1503 = vmatpush1.msra.mxu0 0.0
          %1504 = vmatprep.subr.mxu0 0.0
          %1505 = vmatpush1.msra.mxu0 0.0
          %1506 = vmatprep.subr.mxu0 0.0
          %1507 = vmatpush1.msra.mxu0 0.0
          %1508 = vmatprep.subr.mxu0 0.0
          %1509 = vmatpush1.msra.mxu0 0.0
          %1510 = vmatprep.subr.mxu0 0.0
          %1511 = vmatpush1.msra.mxu0 0.0
          %1512 = vmatprep.subr.mxu0 0.0
          %1513 = vmatpush1.msra.mxu0 0.0
          %1514 = vmatprep.subr.mxu0 0.0
          %1515 = vmatpush1.msra.mxu0 0.0
          %1516 = vmatprep.subr.mxu0 0.0
          %1517 = vmatpush1.msra.mxu0 0.0
          %1518 = vmatprep.subr.mxu0 0.0
          %1519 = vmatpush1.msra.mxu0 0.0
          %1520 = vmatprep.subr.mxu0 0.0
          %1521 = vmatpush1.msra.mxu0 0.0
          %1522 = vmatprep.subr.mxu0 0.0
          %1523 = vmatpush1.msra.mxu0 0.0
          %1524 = vmatprep.subr.mxu0 0.0
          %1525 = vmatpush1.msra.mxu0 0.0
          %1526 = vmatprep.subr.mxu0 0.0
          %1527 = vmatpush1.msra.mxu0 0.0
          %1528 = vmatprep.subr.mxu0 0.0
          %1529 = vmatpush1.msra.mxu0 0.0
          %1530 = vmatprep.subr.mxu0 0.0
          %1531 = vmatpush1.msra.mxu0 0.0
          %1532 = vmatprep.subr.mxu0 0.0
          %1533 = vmatpush1.msra.mxu0 0.0
          %1534 = vmatprep.subr.mxu0 0.0
          %1535 = vmatpush1.msra.mxu0 0.0
          %1536 = vmatprep.subr.mxu0 0.0
          %1537 = vmatpush1.msra.mxu0 0.0
          %1538 = vmatprep.subr.mxu0 0.0
          %1539 = vmatpush1.msra.mxu0 0.0
          %1540 = vmatprep.subr.mxu0 0.0
          %1541 = vmatpush1.msra.mxu0 0.0
          %1542 = vmatprep.subr.mxu0 0.0
          %1543 = vmatpush1.msra.mxu0 0.0
          %1544 = vmatprep.subr.mxu0 0.0
          %1545 = vmatpush1.msra.mxu0 0.0
          %1546 = vmatprep.subr.mxu0 0.0
          %1547 = vmatpush1.msra.mxu0 0.0
          %1548 = vmatprep.subr.mxu0 0.0
          %1549 = vmatpush1.msra.mxu0 0.0
          %1550 = vmatprep.subr.mxu0 0.0
          %1551 = vmatpush1.msra.mxu0 0.0
          %1552 = vmatprep.mubr.f32.mxu0 0.0
          %1553 = vmatmul.mubr.f32.gmra.mrb[0].mxu0 %v1226
          %v1554 = vpop.f32.mrb[0].mxu0
          %v1555 = vadd.f32 %v1450, %v1554
          %v1556 = vpop.f32.mrb[0].mxu0
          %1557 = vmatprep.mubr.f32.mxu0 0.0
          %1558 = vmatmul.mubr.f32.gmra.mrb[0].mxu0 %v1229
          %v1559 = vpop.f32.mrb[0].mxu0
          %v1560 = vadd.f32 %v1455, %v1559
          %v1561 = vpop.f32.mrb[0].mxu0
          %1562 = vmatprep.mubr.f32.mxu0 0.0
          %1563 = vmatmul.mubr.f32.gmra.mrb[0].mxu0 %v1232
          %v1564 = vpop.f32.mrb[0].mxu0
          %v1565 = vadd.f32 %v1460, %v1564
          %v1566 = vpop.f32.mrb[0].mxu0
          %1567 = vmatprep.mubr.f32.mxu0 0.0
          %1568 = vmatmul.mubr.f32.gmra.mrb[0].mxu0 %v1235
          %v1569 = vpop.f32.mrb[0].mxu0
          %v1570 = vadd.f32 %v1465, %v1569
          %v1571 = vpop.f32.mrb[0].mxu0
          %1572 = vmatprep.mubr.f32.mxu0 0.0
          %1573 = vmatmul.mubr.f32.gmra.mrb[0].mxu0 %v1238
          %v1574 = vpop.f32.mrb[0].mxu0
          %v1575 = vadd.f32 %v1470, %v1574
          %v1576 = vpop.f32.mrb[0].mxu0
          %1577 = vmatprep.mubr.f32.mxu0 0.0
          %1578 = vmatmul.mubr.f32.gmra.mrb[0].mxu0 %v1241
          %v1579 = vpop.f32.mrb[0].mxu0
          %v1580 = vadd.f32 %v1475, %v1579
          %v1581 = vpop.f32.mrb[0].mxu0
          %1582 = vmatprep.mubr.f32.mxu0 0.0
          %1583 = vmatmul.mubr.f32.gmra.mrb[0].mxu0 %v1244
          %v1584 = vpop.f32.mrb[0].mxu0
          %v1585 = vadd.f32 %v1480, %v1584
          %v1586 = vpop.f32.mrb[0].mxu0
          %1587 = vmatprep.mubr.f32.mxu0 0.0
          %1588 = vmatmul.mubr.f32.gmra.mrb[0].mxu0 %v1247
          %v1589 = vpop.f32.mrb[0].mxu0
          %v1590 = vadd.f32 %v1485, %v1589
          %v1591 = vpop.f32.mrb[0].mxu0
          %1592 = vdwg.mxu0
          %s1593 = sadd.s32 %s1049, 1
          %s1594 = smul.u32 %s1593, 24
          %s1595 = scalar_lea.vmem [#allocation2], %s1594
          %v1596 = vld [vmem:[%s1595 + $0x8] sm:$0xff]
          %v1597 = vld [vmem:[%s1595 + $0x20] sm:$0xff]
          %v1598 = vld [vmem:[%s1595 + $0x38] sm:$0xff]
          %v1599 = vld [vmem:[%s1595 + $0x50] sm:$0xff]
          %v1600 = vld [vmem:[%s1595 + $0x68] sm:$0xff]
          %v1601 = vld [vmem:[%s1595 + $0x80] sm:$0xff]
          %v1602 = vld [vmem:[%s1595 + $0x98] sm:$0xff]
          %v1603 = vld [vmem:[%s1595 + $0xb0] sm:$0xff]
          %v1604 = vld [vmem:[%s1595 + $0x7] sm:$0xff]
          %v1605 = vld [vmem:[%s1595 + $0x1f] sm:$0xff]
          %v1606 = vld [vmem:[%s1595 + $0x37] sm:$0xff]
          %v1607 = vld [vmem:[%s1595 + $0x4f] sm:$0xff]
          %v1608 = vld [vmem:[%s1595 + $0x67] sm:$0xff]
          %v1609 = vld [vmem:[%s1595 + $0x7f] sm:$0xff]
          %v1610 = vld [vmem:[%s1595 + $0x97] sm:$0xff]
          %v1611 = vld [vmem:[%s1595 + $0xaf] sm:$0xff]
          %v1612 = vld [vmem:[%s1595 + $0x9] sm:$0xff]
          %v1613 = vld [vmem:[%s1595 + $0x21] sm:$0xff]
          %v1614 = vld [vmem:[%s1595 + $0x39] sm:$0xff]
          %v1615 = vld [vmem:[%s1595 + $0x51] sm:$0xff]
          %v1616 = vld [vmem:[%s1595 + $0x69] sm:$0xff]
          %v1617 = vld [vmem:[%s1595 + $0x81] sm:$0xff]
          %v1618 = vld [vmem:[%s1595 + $0x99] sm:$0xff]
          %v1619 = vld [vmem:[%s1595 + $0xb1] sm:$0xff]
          %s1620 = scalar_lea.vmem [#allocation12], 16
          %v1621 = vld [vmem:[%s1620] sm:$0xff]
          %v1622 = vld [vmem:[%s1620 + $0x8] sm:$0xff]
          %v1624 = vsel %vm526, %v1596, 0
          %v1627 = vsel %vm526, %v1597, 0
          %v1630 = vsel %vm526, %v1598, 0
          %v1633 = vsel %vm526, %v1599, 0
          %v1636 = vsel %vm526, %v1600, 0
          %v1639 = vsel %vm526, %v1601, 0
          %v1642 = vsel %vm526, %v1602, 0
          %v1645 = vsel %vm526, %v1603, 0
          %1647 = vmatprep.subr.mxu0 0.0
          %1648 = vmatpush1.msra.mxu0 %v1621
          %1649 = vmatprep.subr.mxu0 0.0
          %1650 = vmatpush1.msra.mxu0 %v1622
          %1651 = vmatprep.subr.mxu0 0.0
          %1652 = vmatpush1.msra.mxu0 0.0
          %1653 = vmatprep.subr.mxu0 0.0
          %1654 = vmatpush1.msra.mxu0 0.0
          %1655 = vmatprep.subr.mxu0 0.0
          %1656 = vmatpush1.msra.mxu0 0.0
          %1657 = vmatprep.subr.mxu0 0.0
          %1658 = vmatpush1.msra.mxu0 0.0
          %1659 = vmatprep.subr.mxu0 0.0
          %1660 = vmatpush1.msra.mxu0 0.0
          %1661 = vmatprep.subr.mxu0 0.0
          %1662 = vmatpush1.msra.mxu0 0.0
          %1663 = vmatprep.subr.mxu0 0.0
          %1664 = vmatpush1.msra.mxu0 0.0
          %1665 = vmatprep.subr.mxu0 0.0
          %1666 = vmatpush1.msra.mxu0 0.0
          %1667 = vmatprep.subr.mxu0 0.0
          %1668 = vmatpush1.msra.mxu0 0.0
          %1669 = vmatprep.subr.mxu0 0.0
          %1670 = vmatpush1.msra.mxu0 0.0
          %1671 = vmatprep.subr.mxu0 0.0
          %1672 = vmatpush1.msra.mxu0 0.0
          %1673 = vmatprep.subr.mxu0 0.0
          %1674 = vmatpush1.msra.mxu0 0.0
          %1675 = vmatprep.subr.mxu0 0.0
          %1676 = vmatpush1.msra.mxu0 0.0
          %1677 = vmatprep.subr.mxu0 0.0
          %1678 = vmatpush1.msra.mxu0 0.0
          %1679 = vmatprep.subr.mxu0 0.0
          %1680 = vmatpush1.msra.mxu0 0.0
          %1681 = vmatprep.subr.mxu0 0.0
          %1682 = vmatpush1.msra.mxu0 0.0
          %1683 = vmatprep.subr.mxu0 0.0
          %1684 = vmatpush1.msra.mxu0 0.0
          %1685 = vmatprep.subr.mxu0 0.0
          %1686 = vmatpush1.msra.mxu0 0.0
          %1687 = vmatprep.subr.mxu0 0.0
          %1688 = vmatpush1.msra.mxu0 0.0
          %1689 = vmatprep.subr.mxu0 0.0
          %1690 = vmatpush1.msra.mxu0 0.0
          %1691 = vmatprep.subr.mxu0 0.0
          %1692 = vmatpush1.msra.mxu0 0.0
          %1693 = vmatprep.subr.mxu0 0.0
          %1694 = vmatpush1.msra.mxu0 0.0
          %1695 = vmatprep.subr.mxu0 0.0
          %1696 = vmatpush1.msra.mxu0 0.0
          %1697 = vmatprep.subr.mxu0 0.0
          %1698 = vmatpush1.msra.mxu0 0.0
          %1699 = vmatprep.subr.mxu0 0.0
          %1700 = vmatpush1.msra.mxu0 0.0
          %1701 = vmatprep.subr.mxu0 0.0
          %1702 = vmatpush1.msra.mxu0 0.0
          %1703 = vmatprep.subr.mxu0 0.0
          %1704 = vmatpush1.msra.mxu0 0.0
          %1705 = vmatprep.subr.mxu0 0.0
          %1706 = vmatpush1.msra.mxu0 0.0
          %1707 = vmatprep.subr.mxu0 0.0
          %1708 = vmatpush1.msra.mxu0 0.0
          %1709 = vmatprep.subr.mxu0 0.0
          %1710 = vmatpush1.msra.mxu0 0.0
          %1711 = vmatprep.mubr.f32.mxu0 0.0
          %1712 = vmatmul.mubr.f32.gmra.mrb[0].mxu0 %v1624
          %v1713 = vpop.f32.mrb[0].mxu0
          %v1714 = vadd.f32 0.0, %v1713
          %v1715 = vpop.f32.mrb[0].mxu0
          %1716 = vmatprep.mubr.f32.mxu0 0.0
          %1717 = vmatmul.mubr.f32.gmra.mrb[0].mxu0 %v1627
          %v1718 = vpop.f32.mrb[0].mxu0
          %v1719 = vadd.f32 0.0, %v1718
          %v1720 = vpop.f32.mrb[0].mxu0
          %1721 = vmatprep.mubr.f32.mxu0 0.0
          %1722 = vmatmul.mubr.f32.gmra.mrb[0].mxu0 %v1630
          %v1723 = vpop.f32.mrb[0].mxu0
          %v1724 = vadd.f32 0.0, %v1723
          %v1725 = vpop.f32.mrb[0].mxu0
          %1726 = vmatprep.mubr.f32.mxu0 0.0
          %1727 = vmatmul.mubr.f32.gmra.mrb[0].mxu0 %v1633
          %v1728 = vpop.f32.mrb[0].mxu0
          %v1729 = vadd.f32 0.0, %v1728
          %v1730 = vpop.f32.mrb[0].mxu0
          %1731 = vmatprep.mubr.f32.mxu0 0.0
          %1732 = vmatmul.mubr.f32.gmra.mrb[0].mxu0 %v1636
          %v1733 = vpop.f32.mrb[0].mxu0
          %v1734 = vadd.f32 0.0, %v1733
          %v1735 = vpop.f32.mrb[0].mxu0
          %1736 = vmatprep.mubr.f32.mxu0 0.0
          %1737 = vmatmul.mubr.f32.gmra.mrb[0].mxu0 %v1639
          %v1738 = vpop.f32.mrb[0].mxu0
          %v1739 = vadd.f32 0.0, %v1738
          %v1740 = vpop.f32.mrb[0].mxu0
          %1741 = vmatprep.mubr.f32.mxu0 0.0
          %1742 = vmatmul.mubr.f32.gmra.mrb[0].mxu0 %v1642
          %v1743 = vpop.f32.mrb[0].mxu0
          %v1744 = vadd.f32 0.0, %v1743
          %v1745 = vpop.f32.mrb[0].mxu0
          %1746 = vmatprep.mubr.f32.mxu0 0.0
          %1747 = vmatmul.mubr.f32.gmra.mrb[0].mxu0 %v1645
          %v1748 = vpop.f32.mrb[0].mxu0
          %v1749 = vadd.f32 0.0, %v1748
          %v1750 = vpop.f32.mrb[0].mxu0
          %1751 = vdwg.mxu0
          %v1752 = vadd.f32 %v1316, %v1714
          %v1753 = vadd.f32 %v1321, %v1719
          %v1754 = vadd.f32 %v1326, %v1724
          %v1755 = vadd.f32 %v1331, %v1729
          %v1756 = vadd.f32 %v1336, %v1734
          %v1757 = vadd.f32 %v1341, %v1739
          %v1758 = vadd.f32 %v1346, %v1744
          %v1759 = vadd.f32 %v1351, %v1749
          %s1760 = scalar_lea.vmem [#allocation13], 8
          %v1761 = vld [vmem:[%s1760] sm:$0xff]
          %1770 = vrot.lane.b32.xlu0 %v1604, 120
          %v1771 = vpop.permute.xlu0 %1770
          %1772 = vrot.lane.b32.xlu0 %v1605, 120
          %v1773 = vpop.permute.xlu0 %1772
          %1774 = vrot.lane.b32.xlu0 %v1606, 120
          %v1775 = vpop.permute.xlu0 %1774
          %1776 = vrot.lane.b32.xlu0 %v1607, 120
          %v1777 = vpop.permute.xlu0 %1776
          %1778 = vrot.lane.b32.xlu0 %v1608, 120
          %v1779 = vpop.permute.xlu0 %1778
          %1780 = vrot.lane.b32.xlu0 %v1609, 120
          %v1781 = vpop.permute.xlu0 %1780
          %1782 = vrot.lane.b32.xlu0 %v1610, 120
          %v1783 = vpop.permute.xlu0 %1782
          %1784 = vrot.lane.b32.xlu0 %v1611, 120
          %v1785 = vpop.permute.xlu0 %1784
          %v1786 = vsel %vm570, %v1771, 0
          %v1788 = vsel %vm570, %v1773, 0
          %v1790 = vsel %vm570, %v1775, 0
          %v1792 = vsel %vm570, %v1777, 0
          %v1794 = vsel %vm570, %v1779, 0
          %v1796 = vsel %vm570, %v1781, 0
          %v1798 = vsel %vm570, %v1783, 0
          %v1800 = vsel %vm570, %v1785, 0
          %1802 = vmatprep.subr.mxu0 0.0
          %1803 = vmatpush1.msra.mxu0 %v1761
          %1804 = vmatprep.subr.mxu0 0.0
          %1805 = vmatpush1.msra.mxu0 0.0
          %1806 = vmatprep.subr.mxu0 0.0
          %1807 = vmatpush1.msra.mxu0 0.0
          %1808 = vmatprep.subr.mxu0 0.0
          %1809 = vmatpush1.msra.mxu0 0.0
          %1810 = vmatprep.subr.mxu0 0.0
          %1811 = vmatpush1.msra.mxu0 0.0
          %1812 = vmatprep.subr.mxu0 0.0
          %1813 = vmatpush1.msra.mxu0 0.0
          %1814 = vmatprep.subr.mxu0 0.0
          %1815 = vmatpush1.msra.mxu0 0.0
          %1816 = vmatprep.subr.mxu0 0.0
          %1817 = vmatpush1.msra.mxu0 0.0
          %1818 = vmatprep.subr.mxu0 0.0
          %1819 = vmatpush1.msra.mxu0 0.0
          %1820 = vmatprep.subr.mxu0 0.0
          %1821 = vmatpush1.msra.mxu0 0.0
          %1822 = vmatprep.subr.mxu0 0.0
          %1823 = vmatpush1.msra.mxu0 0.0
          %1824 = vmatprep.subr.mxu0 0.0
          %1825 = vmatpush1.msra.mxu0 0.0
          %1826 = vmatprep.subr.mxu0 0.0
          %1827 = vmatpush1.msra.mxu0 0.0
          %1828 = vmatprep.subr.mxu0 0.0
          %1829 = vmatpush1.msra.mxu0 0.0
          %1830 = vmatprep.subr.mxu0 0.0
          %1831 = vmatpush1.msra.mxu0 0.0
          %1832 = vmatprep.subr.mxu0 0.0
          %1833 = vmatpush1.msra.mxu0 0.0
          %1834 = vmatprep.subr.mxu0 0.0
          %1835 = vmatpush1.msra.mxu0 0.0
          %1836 = vmatprep.subr.mxu0 0.0
          %1837 = vmatpush1.msra.mxu0 0.0
          %1838 = vmatprep.subr.mxu0 0.0
          %1839 = vmatpush1.msra.mxu0 0.0
          %1840 = vmatprep.subr.mxu0 0.0
          %1841 = vmatpush1.msra.mxu0 0.0
          %1842 = vmatprep.subr.mxu0 0.0
          %1843 = vmatpush1.msra.mxu0 0.0
          %1844 = vmatprep.subr.mxu0 0.0
          %1845 = vmatpush1.msra.mxu0 0.0
          %1846 = vmatprep.subr.mxu0 0.0
          %1847 = vmatpush1.msra.mxu0 0.0
          %1848 = vmatprep.subr.mxu0 0.0
          %1849 = vmatpush1.msra.mxu0 0.0
          %1850 = vmatprep.subr.mxu0 0.0
          %1851 = vmatpush1.msra.mxu0 0.0
          %1852 = vmatprep.subr.mxu0 0.0
          %1853 = vmatpush1.msra.mxu0 0.0
          %1854 = vmatprep.subr.mxu0 0.0
          %1855 = vmatpush1.msra.mxu0 0.0
          %1856 = vmatprep.subr.mxu0 0.0
          %1857 = vmatpush1.msra.mxu0 0.0
          %1858 = vmatprep.subr.mxu0 0.0
          %1859 = vmatpush1.msra.mxu0 0.0
          %1860 = vmatprep.subr.mxu0 0.0
          %1861 = vmatpush1.msra.mxu0 0.0
          %1862 = vmatprep.subr.mxu0 0.0
          %1863 = vmatpush1.msra.mxu0 0.0
          %1864 = vmatprep.subr.mxu0 0.0
          %1865 = vmatpush1.msra.mxu0 0.0
          %1866 = vmatprep.mubr.f32.mxu0 0.0
          %1867 = vmatmul.mubr.f32.gmra.mrb[0].mxu0 %v1786
          %v1868 = vpop.f32.mrb[0].mxu0
          %v1869 = vadd.f32 0.0, %v1868
          %v1870 = vpop.f32.mrb[0].mxu0
          %1871 = vmatprep.mubr.f32.mxu0 0.0
          %1872 = vmatmul.mubr.f32.gmra.mrb[0].mxu0 %v1788
          %v1873 = vpop.f32.mrb[0].mxu0
          %v1874 = vadd.f32 0.0, %v1873
          %v1875 = vpop.f32.mrb[0].mxu0
          %1876 = vmatprep.mubr.f32.mxu0 0.0
          %1877 = vmatmul.mubr.f32.gmra.mrb[0].mxu0 %v1790
          %v1878 = vpop.f32.mrb[0].mxu0
          %v1879 = vadd.f32 0.0, %v1878
          %v1880 = vpop.f32.mrb[0].mxu0
          %1881 = vmatprep.mubr.f32.mxu0 0.0
          %1882 = vmatmul.mubr.f32.gmra.mrb[0].mxu0 %v1792
          %v1883 = vpop.f32.mrb[0].mxu0
          %v1884 = vadd.f32 0.0, %v1883
          %v1885 = vpop.f32.mrb[0].mxu0
          %1886 = vmatprep.mubr.f32.mxu0 0.0
          %1887 = vmatmul.mubr.f32.gmra.mrb[0].mxu0 %v1794
          %v1888 = vpop.f32.mrb[0].mxu0
          %v1889 = vadd.f32 0.0, %v1888
          %v1890 = vpop.f32.mrb[0].mxu0
          %1891 = vmatprep.mubr.f32.mxu0 0.0
          %1892 = vmatmul.mubr.f32.gmra.mrb[0].mxu0 %v1796
          %v1893 = vpop.f32.mrb[0].mxu0
          %v1894 = vadd.f32 0.0, %v1893
          %v1895 = vpop.f32.mrb[0].mxu0
          %1896 = vmatprep.mubr.f32.mxu0 0.0
          %1897 = vmatmul.mubr.f32.gmra.mrb[0].mxu0 %v1798
          %v1898 = vpop.f32.mrb[0].mxu0
          %v1899 = vadd.f32 0.0, %v1898
          %v1900 = vpop.f32.mrb[0].mxu0
          %1901 = vmatprep.mubr.f32.mxu0 0.0
          %1902 = vmatmul.mubr.f32.gmra.mrb[0].mxu0 %v1800
          %v1903 = vpop.f32.mrb[0].mxu0
          %v1904 = vadd.f32 0.0, %v1903
          %v1905 = vpop.f32.mrb[0].mxu0
          %1906 = vdwg.mxu0
          %v1907 = vadd.f32 %v1752, %v1869
          %v1908 = vadd.f32 %v1753, %v1874
          %v1909 = vadd.f32 %v1754, %v1879
          %v1910 = vadd.f32 %v1755, %v1884
          %v1911 = vadd.f32 %v1756, %v1889
          %v1912 = vadd.f32 %v1757, %v1894
          %v1913 = vadd.f32 %v1758, %v1899
          %v1914 = vadd.f32 %v1759, %v1904
          %s1915 = scalar_lea.vmem [#allocation12], 64
          %v1916 = vld [vmem:[%s1915] sm:$0xff]
          %v1917 = vld [vmem:[%s1915 + $0x8] sm:$0xff]
          %1918 = vmatprep.subr.mxu0 0.0
          %1919 = vmatpush1.msra.mxu0 %v1916
          %1920 = vmatprep.subr.mxu0 0.0
          %1921 = vmatpush1.msra.mxu0 %v1917
          %1922 = vmatprep.subr.mxu0 0.0
          %1923 = vmatpush1.msra.mxu0 0.0
          %1924 = vmatprep.subr.mxu0 0.0
          %1925 = vmatpush1.msra.mxu0 0.0
          %1926 = vmatprep.subr.mxu0 0.0
          %1927 = vmatpush1.msra.mxu0 0.0
          %1928 = vmatprep.subr.mxu0 0.0
          %1929 = vmatpush1.msra.mxu0 0.0
          %1930 = vmatprep.subr.mxu0 0.0
          %1931 = vmatpush1.msra.mxu0 0.0
          %1932 = vmatprep.subr.mxu0 0.0
          %1933 = vmatpush1.msra.mxu0 0.0
          %1934 = vmatprep.subr.mxu0 0.0
          %1935 = vmatpush1.msra.mxu0 0.0
          %1936 = vmatprep.subr.mxu0 0.0
          %1937 = vmatpush1.msra.mxu0 0.0
          %1938 = vmatprep.subr.mxu0 0.0
          %1939 = vmatpush1.msra.mxu0 0.0
          %1940 = vmatprep.subr.mxu0 0.0
          %1941 = vmatpush1.msra.mxu0 0.0
          %1942 = vmatprep.subr.mxu0 0.0
          %1943 = vmatpush1.msra.mxu0 0.0
          %1944 = vmatprep.subr.mxu0 0.0
          %1945 = vmatpush1.msra.mxu0 0.0
          %1946 = vmatprep.subr.mxu0 0.0
          %1947 = vmatpush1.msra.mxu0 0.0
          %1948 = vmatprep.subr.mxu0 0.0
          %1949 = vmatpush1.msra.mxu0 0.0
          %1950 = vmatprep.subr.mxu0 0.0
          %1951 = vmatpush1.msra.mxu0 0.0
          %1952 = vmatprep.subr.mxu0 0.0
          %1953 = vmatpush1.msra.mxu0 0.0
          %1954 = vmatprep.subr.mxu0 0.0
          %1955 = vmatpush1.msra.mxu0 0.0
          %1956 = vmatprep.subr.mxu0 0.0
          %1957 = vmatpush1.msra.mxu0 0.0
          %1958 = vmatprep.subr.mxu0 0.0
          %1959 = vmatpush1.msra.mxu0 0.0
          %1960 = vmatprep.subr.mxu0 0.0
          %1961 = vmatpush1.msra.mxu0 0.0
          %1962 = vmatprep.subr.mxu0 0.0
          %1963 = vmatpush1.msra.mxu0 0.0
          %1964 = vmatprep.subr.mxu0 0.0
          %1965 = vmatpush1.msra.mxu0 0.0
          %1966 = vmatprep.subr.mxu0 0.0
          %1967 = vmatpush1.msra.mxu0 0.0
          %1968 = vmatprep.subr.mxu0 0.0
          %1969 = vmatpush1.msra.mxu0 0.0
          %1970 = vmatprep.subr.mxu0 0.0
          %1971 = vmatpush1.msra.mxu0 0.0
          %1972 = vmatprep.subr.mxu0 0.0
          %1973 = vmatpush1.msra.mxu0 0.0
          %1974 = vmatprep.subr.mxu0 0.0
          %1975 = vmatpush1.msra.mxu0 0.0
          %1976 = vmatprep.subr.mxu0 0.0
          %1977 = vmatpush1.msra.mxu0 0.0
          %1978 = vmatprep.subr.mxu0 0.0
          %1979 = vmatpush1.msra.mxu0 0.0
          %1980 = vmatprep.subr.mxu0 0.0
          %1981 = vmatpush1.msra.mxu0 0.0
          %1982 = vmatprep.mubr.f32.mxu0 0.0
          %1983 = vmatmul.mubr.f32.gmra.mrb[0].mxu0 %v1624
          %v1984 = vpop.f32.mrb[0].mxu0
          %v1985 = vadd.f32 0.0, %v1984
          %v1986 = vpop.f32.mrb[0].mxu0
          %1987 = vmatprep.mubr.f32.mxu0 0.0
          %1988 = vmatmul.mubr.f32.gmra.mrb[0].mxu0 %v1627
          %v1989 = vpop.f32.mrb[0].mxu0
          %v1990 = vadd.f32 0.0, %v1989
          %v1991 = vpop.f32.mrb[0].mxu0
          %1992 = vmatprep.mubr.f32.mxu0 0.0
          %1993 = vmatmul.mubr.f32.gmra.mrb[0].mxu0 %v1630
          %v1994 = vpop.f32.mrb[0].mxu0
          %v1995 = vadd.f32 0.0, %v1994
          %v1996 = vpop.f32.mrb[0].mxu0
          %1997 = vmatprep.mubr.f32.mxu0 0.0
          %1998 = vmatmul.mubr.f32.gmra.mrb[0].mxu0 %v1633
          %v1999 = vpop.f32.mrb[0].mxu0
          %v2000 = vadd.f32 0.0, %v1999
          %v2001 = vpop.f32.mrb[0].mxu0
          %2002 = vmatprep.mubr.f32.mxu0 0.0
          %2003 = vmatmul.mubr.f32.gmra.mrb[0].mxu0 %v1636
          %v2004 = vpop.f32.mrb[0].mxu0
          %v2005 = vadd.f32 0.0, %v2004
          %v2006 = vpop.f32.mrb[0].mxu0
          %2007 = vmatprep.mubr.f32.mxu0 0.0
          %2008 = vmatmul.mubr.f32.gmra.mrb[0].mxu0 %v1639
          %v2009 = vpop.f32.mrb[0].mxu0
          %v2010 = vadd.f32 0.0, %v2009
          %v2011 = vpop.f32.mrb[0].mxu0
          %2012 = vmatprep.mubr.f32.mxu0 0.0
          %2013 = vmatmul.mubr.f32.gmra.mrb[0].mxu0 %v1642
          %v2014 = vpop.f32.mrb[0].mxu0
          %v2015 = vadd.f32 0.0, %v2014
          %v2016 = vpop.f32.mrb[0].mxu0
          %2017 = vmatprep.mubr.f32.mxu0 0.0
          %2018 = vmatmul.mubr.f32.gmra.mrb[0].mxu0 %v1645
          %v2019 = vpop.f32.mrb[0].mxu0
          %v2020 = vadd.f32 0.0, %v2019
          %v2021 = vpop.f32.mrb[0].mxu0
          %2022 = vdwg.mxu0
          %v2023 = vadd.f32 %v1555, %v1985
          %v2024 = vadd.f32 %v1560, %v1990
          %v2025 = vadd.f32 %v1565, %v1995
          %v2026 = vadd.f32 %v1570, %v2000
          %v2027 = vadd.f32 %v1575, %v2005
          %v2028 = vadd.f32 %v1580, %v2010
          %v2029 = vadd.f32 %v1585, %v2015
          %v2030 = vadd.f32 %v1590, %v2020
          %s2031 = scalar_lea.vmem [#allocation13], 32
          %v2032 = vld [vmem:[%s2031] sm:$0xff]
          %v2034 = vsel %vm570, %v1612, 0
          %v2037 = vsel %vm570, %v1613, 0
          %v2040 = vsel %vm570, %v1614, 0
          %v2043 = vsel %vm570, %v1615, 0
          %v2046 = vsel %vm570, %v1616, 0
          %v2049 = vsel %vm570, %v1617, 0
          %v2052 = vsel %vm570, %v1618, 0
          %v2055 = vsel %vm570, %v1619, 0
          %2057 = vmatprep.subr.mxu0 0.0
          %2058 = vmatpush1.msra.mxu0 %v2032
          %2059 = vmatprep.subr.mxu0 0.0
          %2060 = vmatpush1.msra.mxu0 0.0
          %2061 = vmatprep.subr.mxu0 0.0
          %2062 = vmatpush1.msra.mxu0 0.0
          %2063 = vmatprep.subr.mxu0 0.0
          %2064 = vmatpush1.msra.mxu0 0.0
          %2065 = vmatprep.subr.mxu0 0.0
          %2066 = vmatpush1.msra.mxu0 0.0
          %2067 = vmatprep.subr.mxu0 0.0
          %2068 = vmatpush1.msra.mxu0 0.0
          %2069 = vmatprep.subr.mxu0 0.0
          %2070 = vmatpush1.msra.mxu0 0.0
          %2071 = vmatprep.subr.mxu0 0.0
          %2072 = vmatpush1.msra.mxu0 0.0
          %2073 = vmatprep.subr.mxu0 0.0
          %2074 = vmatpush1.msra.mxu0 0.0
          %2075 = vmatprep.subr.mxu0 0.0
          %2076 = vmatpush1.msra.mxu0 0.0
          %2077 = vmatprep.subr.mxu0 0.0
          %2078 = vmatpush1.msra.mxu0 0.0
          %2079 = vmatprep.subr.mxu0 0.0
          %2080 = vmatpush1.msra.mxu0 0.0
          %2081 = vmatprep.subr.mxu0 0.0
          %2082 = vmatpush1.msra.mxu0 0.0
          %2083 = vmatprep.subr.mxu0 0.0
          %2084 = vmatpush1.msra.mxu0 0.0
          %2085 = vmatprep.subr.mxu0 0.0
          %2086 = vmatpush1.msra.mxu0 0.0
          %2087 = vmatprep.subr.mxu0 0.0
          %2088 = vmatpush1.msra.mxu0 0.0
          %2089 = vmatprep.subr.mxu0 0.0
          %2090 = vmatpush1.msra.mxu0 0.0
          %2091 = vmatprep.subr.mxu0 0.0
          %2092 = vmatpush1.msra.mxu0 0.0
          %2093 = vmatprep.subr.mxu0 0.0
          %2094 = vmatpush1.msra.mxu0 0.0
          %2095 = vmatprep.subr.mxu0 0.0
          %2096 = vmatpush1.msra.mxu0 0.0
          %2097 = vmatprep.subr.mxu0 0.0
          %2098 = vmatpush1.msra.mxu0 0.0
          %2099 = vmatprep.subr.mxu0 0.0
          %2100 = vmatpush1.msra.mxu0 0.0
          %2101 = vmatprep.subr.mxu0 0.0
          %2102 = vmatpush1.msra.mxu0 0.0
          %2103 = vmatprep.subr.mxu0 0.0
          %2104 = vmatpush1.msra.mxu0 0.0
          %2105 = vmatprep.subr.mxu0 0.0
          %2106 = vmatpush1.msra.mxu0 0.0
          %2107 = vmatprep.subr.mxu0 0.0
          %2108 = vmatpush1.msra.mxu0 0.0
          %2109 = vmatprep.subr.mxu0 0.0
          %2110 = vmatpush1.msra.mxu0 0.0
          %2111 = vmatprep.subr.mxu0 0.0
          %2112 = vmatpush1.msra.mxu0 0.0
          %2113 = vmatprep.subr.mxu0 0.0
          %2114 = vmatpush1.msra.mxu0 0.0
          %2115 = vmatprep.subr.mxu0 0.0
          %2116 = vmatpush1.msra.mxu0 0.0
          %2117 = vmatprep.subr.mxu0 0.0
          %2118 = vmatpush1.msra.mxu0 0.0
          %2119 = vmatprep.subr.mxu0 0.0
          %2120 = vmatpush1.msra.mxu0 0.0
          %2121 = vmatprep.mubr.f32.mxu0 0.0
          %2122 = vmatmul.mubr.f32.gmra.mrb[0].mxu0 %v2034
          %v2123 = vpop.f32.mrb[0].mxu0
          %v2124 = vadd.f32 0.0, %v2123
          %v2125 = vpop.f32.mrb[0].mxu0
          %2126 = vmatprep.mubr.f32.mxu0 0.0
          %2127 = vmatmul.mubr.f32.gmra.mrb[0].mxu0 %v2037
          %v2128 = vpop.f32.mrb[0].mxu0
          %v2129 = vadd.f32 0.0, %v2128
          %v2130 = vpop.f32.mrb[0].mxu0
          %2131 = vmatprep.mubr.f32.mxu0 0.0
          %2132 = vmatmul.mubr.f32.gmra.mrb[0].mxu0 %v2040
          %v2133 = vpop.f32.mrb[0].mxu0
          %v2134 = vadd.f32 0.0, %v2133
          %v2135 = vpop.f32.mrb[0].mxu0
          %2136 = vmatprep.mubr.f32.mxu0 0.0
          %2137 = vmatmul.mubr.f32.gmra.mrb[0].mxu0 %v2043
          %v2138 = vpop.f32.mrb[0].mxu0
          %v2139 = vadd.f32 0.0, %v2138
          %v2140 = vpop.f32.mrb[0].mxu0
          %2141 = vmatprep.mubr.f32.mxu0 0.0
          %2142 = vmatmul.mubr.f32.gmra.mrb[0].mxu0 %v2046
          %v2143 = vpop.f32.mrb[0].mxu0
          %v2144 = vadd.f32 0.0, %v2143
          %v2145 = vpop.f32.mrb[0].mxu0
          %2146 = vmatprep.mubr.f32.mxu0 0.0
          %2147 = vmatmul.mubr.f32.gmra.mrb[0].mxu0 %v2049
          %v2148 = vpop.f32.mrb[0].mxu0
          %v2149 = vadd.f32 0.0, %v2148
          %v2150 = vpop.f32.mrb[0].mxu0
          %2151 = vmatprep.mubr.f32.mxu0 0.0
          %2152 = vmatmul.mubr.f32.gmra.mrb[0].mxu0 %v2052
          %v2153 = vpop.f32.mrb[0].mxu0
          %v2154 = vadd.f32 0.0, %v2153
          %v2155 = vpop.f32.mrb[0].mxu0
          %2156 = vmatprep.mubr.f32.mxu0 0.0
          %2157 = vmatmul.mubr.f32.gmra.mrb[0].mxu0 %v2055
          %v2158 = vpop.f32.mrb[0].mxu0
          %v2159 = vadd.f32 0.0, %v2158
          %v2160 = vpop.f32.mrb[0].mxu0
          %2161 = vdwg.mxu0
          %v2162 = vadd.f32 %v2023, %v2124
          %v2163 = vadd.f32 %v2024, %v2129
          %v2164 = vadd.f32 %v2025, %v2134
          %v2165 = vadd.f32 %v2026, %v2139
          %v2166 = vadd.f32 %v2027, %v2144
          %v2167 = vadd.f32 %v2028, %v2149
          %v2168 = vadd.f32 %v2029, %v2154
          %v2169 = vadd.f32 %v2030, %v2159
          %s2170 = sadd.s32 %s1049, 2
          %s2171 = smul.u32 %s2170, 24
          %s2172 = scalar_lea.vmem [#allocation2], %s2171
          %v2173 = vld [vmem:[%s2172 + $0x8] sm:$0xff]
          %v2174 = vld [vmem:[%s2172 + $0x20] sm:$0xff]
          %v2175 = vld [vmem:[%s2172 + $0x38] sm:$0xff]
          %v2176 = vld [vmem:[%s2172 + $0x50] sm:$0xff]
          %v2177 = vld [vmem:[%s2172 + $0x68] sm:$0xff]
          %v2178 = vld [vmem:[%s2172 + $0x80] sm:$0xff]
          %v2179 = vld [vmem:[%s2172 + $0x98] sm:$0xff]
          %v2180 = vld [vmem:[%s2172 + $0xb0] sm:$0xff]
          %v2181 = vld [vmem:[%s2172 + $0x7] sm:$0xff]
          %v2182 = vld [vmem:[%s2172 + $0x1f] sm:$0xff]
          %v2183 = vld [vmem:[%s2172 + $0x37] sm:$0xff]
          %v2184 = vld [vmem:[%s2172 + $0x4f] sm:$0xff]
          %v2185 = vld [vmem:[%s2172 + $0x67] sm:$0xff]
          %v2186 = vld [vmem:[%s2172 + $0x7f] sm:$0xff]
          %v2187 = vld [vmem:[%s2172 + $0x97] sm:$0xff]
          %v2188 = vld [vmem:[%s2172 + $0xaf] sm:$0xff]
          %v2189 = vld [vmem:[%s2172 + $0x9] sm:$0xff]
          %v2190 = vld [vmem:[%s2172 + $0x21] sm:$0xff]
          %v2191 = vld [vmem:[%s2172 + $0x39] sm:$0xff]
          %v2192 = vld [vmem:[%s2172 + $0x51] sm:$0xff]
          %v2193 = vld [vmem:[%s2172 + $0x69] sm:$0xff]
          %v2194 = vld [vmem:[%s2172 + $0x81] sm:$0xff]
          %v2195 = vld [vmem:[%s2172 + $0x99] sm:$0xff]
          %v2196 = vld [vmem:[%s2172 + $0xb1] sm:$0xff]
          %s2197 = scalar_lea.vmem [#allocation12], 32
          %v2198 = vld [vmem:[%s2197] sm:$0xff]
          %v2199 = vld [vmem:[%s2197 + $0x8] sm:$0xff]
          %v2201 = vsel %vm526, %v2173, 0
          %v2204 = vsel %vm526, %v2174, 0
          %v2207 = vsel %vm526, %v2175, 0
          %v2210 = vsel %vm526, %v2176, 0
          %v2213 = vsel %vm526, %v2177, 0
          %v2216 = vsel %vm526, %v2178, 0
          %v2219 = vsel %vm526, %v2179, 0
          %v2222 = vsel %vm526, %v2180, 0
          %2224 = vmatprep.subr.mxu0 0.0
          %2225 = vmatpush1.msra.mxu0 %v2198
          %2226 = vmatprep.subr.mxu0 0.0
          %2227 = vmatpush1.msra.mxu0 %v2199
          %2228 = vmatprep.subr.mxu0 0.0
          %2229 = vmatpush1.msra.mxu0 0.0
          %2230 = vmatprep.subr.mxu0 0.0
          %2231 = vmatpush1.msra.mxu0 0.0
          %2232 = vmatprep.subr.mxu0 0.0
          %2233 = vmatpush1.msra.mxu0 0.0
          %2234 = vmatprep.subr.mxu0 0.0
          %2235 = vmatpush1.msra.mxu0 0.0
          %2236 = vmatprep.subr.mxu0 0.0
          %2237 = vmatpush1.msra.mxu0 0.0
          %2238 = vmatprep.subr.mxu0 0.0
          %2239 = vmatpush1.msra.mxu0 0.0
          %2240 = vmatprep.subr.mxu0 0.0
          %2241 = vmatpush1.msra.mxu0 0.0
          %2242 = vmatprep.subr.mxu0 0.0
          %2243 = vmatpush1.msra.mxu0 0.0
          %2244 = vmatprep.subr.mxu0 0.0
          %2245 = vmatpush1.msra.mxu0 0.0
          %2246 = vmatprep.subr.mxu0 0.0
          %2247 = vmatpush1.msra.mxu0 0.0
          %2248 = vmatprep.subr.mxu0 0.0
          %2249 = vmatpush1.msra.mxu0 0.0
          %2250 = vmatprep.subr.mxu0 0.0
          %2251 = vmatpush1.msra.mxu0 0.0
          %2252 = vmatprep.subr.mxu0 0.0
          %2253 = vmatpush1.msra.mxu0 0.0
          %2254 = vmatprep.subr.mxu0 0.0
          %2255 = vmatpush1.msra.mxu0 0.0
          %2256 = vmatprep.subr.mxu0 0.0
          %2257 = vmatpush1.msra.mxu0 0.0
          %2258 = vmatprep.subr.mxu0 0.0
          %2259 = vmatpush1.msra.mxu0 0.0
          %2260 = vmatprep.subr.mxu0 0.0
          %2261 = vmatpush1.msra.mxu0 0.0
          %2262 = vmatprep.subr.mxu0 0.0
          %2263 = vmatpush1.msra.mxu0 0.0
          %2264 = vmatprep.subr.mxu0 0.0
          %2265 = vmatpush1.msra.mxu0 0.0
          %2266 = vmatprep.subr.mxu0 0.0
          %2267 = vmatpush1.msra.mxu0 0.0
          %2268 = vmatprep.subr.mxu0 0.0
          %2269 = vmatpush1.msra.mxu0 0.0
          %2270 = vmatprep.subr.mxu0 0.0
          %2271 = vmatpush1.msra.mxu0 0.0
          %2272 = vmatprep.subr.mxu0 0.0
          %2273 = vmatpush1.msra.mxu0 0.0
          %2274 = vmatprep.subr.mxu0 0.0
          %2275 = vmatpush1.msra.mxu0 0.0
          %2276 = vmatprep.subr.mxu0 0.0
          %2277 = vmatpush1.msra.mxu0 0.0
          %2278 = vmatprep.subr.mxu0 0.0
          %2279 = vmatpush1.msra.mxu0 0.0
          %2280 = vmatprep.subr.mxu0 0.0
          %2281 = vmatpush1.msra.mxu0 0.0
          %2282 = vmatprep.subr.mxu0 0.0
          %2283 = vmatpush1.msra.mxu0 0.0
          %2284 = vmatprep.subr.mxu0 0.0
          %2285 = vmatpush1.msra.mxu0 0.0
          %2286 = vmatprep.subr.mxu0 0.0
          %2287 = vmatpush1.msra.mxu0 0.0
          %2288 = vmatprep.mubr.f32.mxu0 0.0
          %2289 = vmatmul.mubr.f32.gmra.mrb[0].mxu0 %v2201
          %v2290 = vpop.f32.mrb[0].mxu0
          %v2291 = vadd.f32 0.0, %v2290
          %v2292 = vpop.f32.mrb[0].mxu0
          %2293 = vmatprep.mubr.f32.mxu0 0.0
          %2294 = vmatmul.mubr.f32.gmra.mrb[0].mxu0 %v2204
          %v2295 = vpop.f32.mrb[0].mxu0
          %v2296 = vadd.f32 0.0, %v2295
          %v2297 = vpop.f32.mrb[0].mxu0
          %2298 = vmatprep.mubr.f32.mxu0 0.0
          %2299 = vmatmul.mubr.f32.gmra.mrb[0].mxu0 %v2207
          %v2300 = vpop.f32.mrb[0].mxu0
          %v2301 = vadd.f32 0.0, %v2300
          %v2302 = vpop.f32.mrb[0].mxu0
          %2303 = vmatprep.mubr.f32.mxu0 0.0
          %2304 = vmatmul.mubr.f32.gmra.mrb[0].mxu0 %v2210
          %v2305 = vpop.f32.mrb[0].mxu0
          %v2306 = vadd.f32 0.0, %v2305
          %v2307 = vpop.f32.mrb[0].mxu0
          %2308 = vmatprep.mubr.f32.mxu0 0.0
          %2309 = vmatmul.mubr.f32.gmra.mrb[0].mxu0 %v2213
          %v2310 = vpop.f32.mrb[0].mxu0
          %v2311 = vadd.f32 0.0, %v2310
          %v2312 = vpop.f32.mrb[0].mxu0
          %2313 = vmatprep.mubr.f32.mxu0 0.0
          %2314 = vmatmul.mubr.f32.gmra.mrb[0].mxu0 %v2216
          %v2315 = vpop.f32.mrb[0].mxu0
          %v2316 = vadd.f32 0.0, %v2315
          %v2317 = vpop.f32.mrb[0].mxu0
          %2318 = vmatprep.mubr.f32.mxu0 0.0
          %2319 = vmatmul.mubr.f32.gmra.mrb[0].mxu0 %v2219
          %v2320 = vpop.f32.mrb[0].mxu0
          %v2321 = vadd.f32 0.0, %v2320
          %v2322 = vpop.f32.mrb[0].mxu0
          %2323 = vmatprep.mubr.f32.mxu0 0.0
          %2324 = vmatmul.mubr.f32.gmra.mrb[0].mxu0 %v2222
          %v2325 = vpop.f32.mrb[0].mxu0
          %v2326 = vadd.f32 0.0, %v2325
          %v2327 = vpop.f32.mrb[0].mxu0
          %2328 = vdwg.mxu0
          %v2329 = vadd.f32 %v1907, %v2291
          %v2330 = vadd.f32 %v1908, %v2296
          %v2331 = vadd.f32 %v1909, %v2301
          %v2332 = vadd.f32 %v1910, %v2306
          %v2333 = vadd.f32 %v1911, %v2311
          %v2334 = vadd.f32 %v1912, %v2316
          %v2335 = vadd.f32 %v1913, %v2321
          %v2336 = vadd.f32 %v1914, %v2326
          %s2337 = scalar_lea.vmem [#allocation13], 16
          %v2338 = vld [vmem:[%s2337] sm:$0xff]
          %2347 = vrot.lane.b32.xlu0 %v2181, 120
          %v2348 = vpop.permute.xlu0 %2347
          %2349 = vrot.lane.b32.xlu0 %v2182, 120
          %v2350 = vpop.permute.xlu0 %2349
          %2351 = vrot.lane.b32.xlu0 %v2183, 120
          %v2352 = vpop.permute.xlu0 %2351
          %2353 = vrot.lane.b32.xlu0 %v2184, 120
          %v2354 = vpop.permute.xlu0 %2353
          %2355 = vrot.lane.b32.xlu0 %v2185, 120
          %v2356 = vpop.permute.xlu0 %2355
          %2357 = vrot.lane.b32.xlu0 %v2186, 120
          %v2358 = vpop.permute.xlu0 %2357
          %2359 = vrot.lane.b32.xlu0 %v2187, 120
          %v2360 = vpop.permute.xlu0 %2359
          %2361 = vrot.lane.b32.xlu0 %v2188, 120
          %v2362 = vpop.permute.xlu0 %2361
          %v2363 = vsel %vm570, %v2348, 0
          %v2365 = vsel %vm570, %v2350, 0
          %v2367 = vsel %vm570, %v2352, 0
          %v2369 = vsel %vm570, %v2354, 0
          %v2371 = vsel %vm570, %v2356, 0
          %v2373 = vsel %vm570, %v2358, 0
          %v2375 = vsel %vm570, %v2360, 0
          %v2377 = vsel %vm570, %v2362, 0
          %2379 = vmatprep.subr.mxu0 0.0
          %2380 = vmatpush1.msra.mxu0 %v2338
          %2381 = vmatprep.subr.mxu0 0.0
          %2382 = vmatpush1.msra.mxu0 0.0
          %2383 = vmatprep.subr.mxu0 0.0
          %2384 = vmatpush1.msra.mxu0 0.0
          %2385 = vmatprep.subr.mxu0 0.0
          %2386 = vmatpush1.msra.mxu0 0.0
          %2387 = vmatprep.subr.mxu0 0.0
          %2388 = vmatpush1.msra.mxu0 0.0
          %2389 = vmatprep.subr.mxu0 0.0
          %2390 = vmatpush1.msra.mxu0 0.0
          %2391 = vmatprep.subr.mxu0 0.0
          %2392 = vmatpush1.msra.mxu0 0.0
          %2393 = vmatprep.subr.mxu0 0.0
          %2394 = vmatpush1.msra.mxu0 0.0
          %2395 = vmatprep.subr.mxu0 0.0
          %2396 = vmatpush1.msra.mxu0 0.0
          %2397 = vmatprep.subr.mxu0 0.0
          %2398 = vmatpush1.msra.mxu0 0.0
          %2399 = vmatprep.subr.mxu0 0.0
          %2400 = vmatpush1.msra.mxu0 0.0
          %2401 = vmatprep.subr.mxu0 0.0
          %2402 = vmatpush1.msra.mxu0 0.0
          %2403 = vmatprep.subr.mxu0 0.0
          %2404 = vmatpush1.msra.mxu0 0.0
          %2405 = vmatprep.subr.mxu0 0.0
          %2406 = vmatpush1.msra.mxu0 0.0
          %2407 = vmatprep.subr.mxu0 0.0
          %2408 = vmatpush1.msra.mxu0 0.0
          %2409 = vmatprep.subr.mxu0 0.0
          %2410 = vmatpush1.msra.mxu0 0.0
          %2411 = vmatprep.subr.mxu0 0.0
          %2412 = vmatpush1.msra.mxu0 0.0
          %2413 = vmatprep.subr.mxu0 0.0
          %2414 = vmatpush1.msra.mxu0 0.0
          %2415 = vmatprep.subr.mxu0 0.0
          %2416 = vmatpush1.msra.mxu0 0.0
          %2417 = vmatprep.subr.mxu0 0.0
          %2418 = vmatpush1.msra.mxu0 0.0
          %2419 = vmatprep.subr.mxu0 0.0
          %2420 = vmatpush1.msra.mxu0 0.0
          %2421 = vmatprep.subr.mxu0 0.0
          %2422 = vmatpush1.msra.mxu0 0.0
          %2423 = vmatprep.subr.mxu0 0.0
          %2424 = vmatpush1.msra.mxu0 0.0
          %2425 = vmatprep.subr.mxu0 0.0
          %2426 = vmatpush1.msra.mxu0 0.0
          %2427 = vmatprep.subr.mxu0 0.0
          %2428 = vmatpush1.msra.mxu0 0.0
          %2429 = vmatprep.subr.mxu0 0.0
          %2430 = vmatpush1.msra.mxu0 0.0
          %2431 = vmatprep.subr.mxu0 0.0
          %2432 = vmatpush1.msra.mxu0 0.0
          %2433 = vmatprep.subr.mxu0 0.0
          %2434 = vmatpush1.msra.mxu0 0.0
          %2435 = vmatprep.subr.mxu0 0.0
          %2436 = vmatpush1.msra.mxu0 0.0
          %2437 = vmatprep.subr.mxu0 0.0
          %2438 = vmatpush1.msra.mxu0 0.0
          %2439 = vmatprep.subr.mxu0 0.0
          %2440 = vmatpush1.msra.mxu0 0.0
          %2441 = vmatprep.subr.mxu0 0.0
          %2442 = vmatpush1.msra.mxu0 0.0
          %2443 = vmatprep.mubr.f32.mxu0 0.0
          %2444 = vmatmul.mubr.f32.gmra.mrb[0].mxu0 %v2363
          %v2445 = vpop.f32.mrb[0].mxu0
          %v2446 = vadd.f32 0.0, %v2445
          %v2447 = vpop.f32.mrb[0].mxu0
          %2448 = vmatprep.mubr.f32.mxu0 0.0
          %2449 = vmatmul.mubr.f32.gmra.mrb[0].mxu0 %v2365
          %v2450 = vpop.f32.mrb[0].mxu0
          %v2451 = vadd.f32 0.0, %v2450
          %v2452 = vpop.f32.mrb[0].mxu0
          %2453 = vmatprep.mubr.f32.mxu0 0.0
          %2454 = vmatmul.mubr.f32.gmra.mrb[0].mxu0 %v2367
          %v2455 = vpop.f32.mrb[0].mxu0
          %v2456 = vadd.f32 0.0, %v2455
          %v2457 = vpop.f32.mrb[0].mxu0
          %2458 = vmatprep.mubr.f32.mxu0 0.0
          %2459 = vmatmul.mubr.f32.gmra.mrb[0].mxu0 %v2369
          %v2460 = vpop.f32.mrb[0].mxu0
          %v2461 = vadd.f32 0.0, %v2460
          %v2462 = vpop.f32.mrb[0].mxu0
          %2463 = vmatprep.mubr.f32.mxu0 0.0
          %2464 = vmatmul.mubr.f32.gmra.mrb[0].mxu0 %v2371
          %v2465 = vpop.f32.mrb[0].mxu0
          %v2466 = vadd.f32 0.0, %v2465
          %v2467 = vpop.f32.mrb[0].mxu0
          %2468 = vmatprep.mubr.f32.mxu0 0.0
          %2469 = vmatmul.mubr.f32.gmra.mrb[0].mxu0 %v2373
          %v2470 = vpop.f32.mrb[0].mxu0
          %v2471 = vadd.f32 0.0, %v2470
          %v2472 = vpop.f32.mrb[0].mxu0
          %2473 = vmatprep.mubr.f32.mxu0 0.0
          %2474 = vmatmul.mubr.f32.gmra.mrb[0].mxu0 %v2375
          %v2475 = vpop.f32.mrb[0].mxu0
          %v2476 = vadd.f32 0.0, %v2475
          %v2477 = vpop.f32.mrb[0].mxu0
          %2478 = vmatprep.mubr.f32.mxu0 0.0
          %2479 = vmatmul.mubr.f32.gmra.mrb[0].mxu0 %v2377
          %v2480 = vpop.f32.mrb[0].mxu0
          %v2481 = vadd.f32 0.0, %v2480
          %v2482 = vpop.f32.mrb[0].mxu0
          %2483 = vdwg.mxu0
          %v2484 = vadd.f32 %v2329, %v2446
          %v2485 = vadd.f32 %v2330, %v2451
          %v2486 = vadd.f32 %v2331, %v2456
          %v2487 = vadd.f32 %v2332, %v2461
          %v2488 = vadd.f32 %v2333, %v2466
          %v2489 = vadd.f32 %v2334, %v2471
          %v2490 = vadd.f32 %v2335, %v2476
          %v2491 = vadd.f32 %v2336, %v2481
          %s2492 = scalar_lea.vmem [#allocation12], 80
          %v2493 = vld [vmem:[%s2492] sm:$0xff]
          %v2494 = vld [vmem:[%s2492 + $0x8] sm:$0xff]
          %2495 = vmatprep.subr.mxu0 0.0
          %2496 = vmatpush1.msra.mxu0 %v2493
          %2497 = vmatprep.subr.mxu0 0.0
          %2498 = vmatpush1.msra.mxu0 %v2494
          %2499 = vmatprep.subr.mxu0 0.0
          %2500 = vmatpush1.msra.mxu0 0.0
          %2501 = vmatprep.subr.mxu0 0.0
          %2502 = vmatpush1.msra.mxu0 0.0
          %2503 = vmatprep.subr.mxu0 0.0
          %2504 = vmatpush1.msra.mxu0 0.0
          %2505 = vmatprep.subr.mxu0 0.0
          %2506 = vmatpush1.msra.mxu0 0.0
          %2507 = vmatprep.subr.mxu0 0.0
          %2508 = vmatpush1.msra.mxu0 0.0
          %2509 = vmatprep.subr.mxu0 0.0
          %2510 = vmatpush1.msra.mxu0 0.0
          %2511 = vmatprep.subr.mxu0 0.0
          %2512 = vmatpush1.msra.mxu0 0.0
          %2513 = vmatprep.subr.mxu0 0.0
          %2514 = vmatpush1.msra.mxu0 0.0
          %2515 = vmatprep.subr.mxu0 0.0
          %2516 = vmatpush1.msra.mxu0 0.0
          %2517 = vmatprep.subr.mxu0 0.0
          %2518 = vmatpush1.msra.mxu0 0.0
          %2519 = vmatprep.subr.mxu0 0.0
          %2520 = vmatpush1.msra.mxu0 0.0
          %2521 = vmatprep.subr.mxu0 0.0
          %2522 = vmatpush1.msra.mxu0 0.0
          %2523 = vmatprep.subr.mxu0 0.0
          %2524 = vmatpush1.msra.mxu0 0.0
          %2525 = vmatprep.subr.mxu0 0.0
          %2526 = vmatpush1.msra.mxu0 0.0
          %2527 = vmatprep.subr.mxu0 0.0
          %2528 = vmatpush1.msra.mxu0 0.0
          %2529 = vmatprep.subr.mxu0 0.0
          %2530 = vmatpush1.msra.mxu0 0.0
          %2531 = vmatprep.subr.mxu0 0.0
          %2532 = vmatpush1.msra.mxu0 0.0
          %2533 = vmatprep.subr.mxu0 0.0
          %2534 = vmatpush1.msra.mxu0 0.0
          %2535 = vmatprep.subr.mxu0 0.0
          %2536 = vmatpush1.msra.mxu0 0.0
          %2537 = vmatprep.subr.mxu0 0.0
          %2538 = vmatpush1.msra.mxu0 0.0
          %2539 = vmatprep.subr.mxu0 0.0
          %2540 = vmatpush1.msra.mxu0 0.0
          %2541 = vmatprep.subr.mxu0 0.0
          %2542 = vmatpush1.msra.mxu0 0.0
          %2543 = vmatprep.subr.mxu0 0.0
          %2544 = vmatpush1.msra.mxu0 0.0
          %2545 = vmatprep.subr.mxu0 0.0
          %2546 = vmatpush1.msra.mxu0 0.0
          %2547 = vmatprep.subr.mxu0 0.0
          %2548 = vmatpush1.msra.mxu0 0.0
          %2549 = vmatprep.subr.mxu0 0.0
          %2550 = vmatpush1.msra.mxu0 0.0
          %2551 = vmatprep.subr.mxu0 0.0
          %2552 = vmatpush1.msra.mxu0 0.0
          %2553 = vmatprep.subr.mxu0 0.0
          %2554 = vmatpush1.msra.mxu0 0.0
          %2555 = vmatprep.subr.mxu0 0.0
          %2556 = vmatpush1.msra.mxu0 0.0
          %2557 = vmatprep.subr.mxu0 0.0
          %2558 = vmatpush1.msra.mxu0 0.0
          %2559 = vmatprep.mubr.f32.mxu0 0.0
          %2560 = vmatmul.mubr.f32.gmra.mrb[0].mxu0 %v2201
          %v2561 = vpop.f32.mrb[0].mxu0
          %v2562 = vadd.f32 0.0, %v2561
          %v2563 = vpop.f32.mrb[0].mxu0
          %2564 = vmatprep.mubr.f32.mxu0 0.0
          %2565 = vmatmul.mubr.f32.gmra.mrb[0].mxu0 %v2204
          %v2566 = vpop.f32.mrb[0].mxu0
          %v2567 = vadd.f32 0.0, %v2566
          %v2568 = vpop.f32.mrb[0].mxu0
          %2569 = vmatprep.mubr.f32.mxu0 0.0
          %2570 = vmatmul.mubr.f32.gmra.mrb[0].mxu0 %v2207
          %v2571 = vpop.f32.mrb[0].mxu0
          %v2572 = vadd.f32 0.0, %v2571
          %v2573 = vpop.f32.mrb[0].mxu0
          %2574 = vmatprep.mubr.f32.mxu0 0.0
          %2575 = vmatmul.mubr.f32.gmra.mrb[0].mxu0 %v2210
          %v2576 = vpop.f32.mrb[0].mxu0
          %v2577 = vadd.f32 0.0, %v2576
          %v2578 = vpop.f32.mrb[0].mxu0
          %2579 = vmatprep.mubr.f32.mxu0 0.0
          %2580 = vmatmul.mubr.f32.gmra.mrb[0].mxu0 %v2213
          %v2581 = vpop.f32.mrb[0].mxu0
          %v2582 = vadd.f32 0.0, %v2581
          %v2583 = vpop.f32.mrb[0].mxu0
          %2584 = vmatprep.mubr.f32.mxu0 0.0
          %2585 = vmatmul.mubr.f32.gmra.mrb[0].mxu0 %v2216
          %v2586 = vpop.f32.mrb[0].mxu0
          %v2587 = vadd.f32 0.0, %v2586
          %v2588 = vpop.f32.mrb[0].mxu0
          %2589 = vmatprep.mubr.f32.mxu0 0.0
          %2590 = vmatmul.mubr.f32.gmra.mrb[0].mxu0 %v2219
          %v2591 = vpop.f32.mrb[0].mxu0
          %v2592 = vadd.f32 0.0, %v2591
          %v2593 = vpop.f32.mrb[0].mxu0
          %2594 = vmatprep.mubr.f32.mxu0 0.0
          %2595 = vmatmul.mubr.f32.gmra.mrb[0].mxu0 %v2222
          %v2596 = vpop.f32.mrb[0].mxu0
          %v2597 = vadd.f32 0.0, %v2596
          %v2598 = vpop.f32.mrb[0].mxu0
          %2599 = vdwg.mxu0
          %v2600 = vadd.f32 %v2162, %v2562
          %v2601 = vadd.f32 %v2163, %v2567
          %v2602 = vadd.f32 %v2164, %v2572
          %v2603 = vadd.f32 %v2165, %v2577
          %v2604 = vadd.f32 %v2166, %v2582
          %v2605 = vadd.f32 %v2167, %v2587
          %v2606 = vadd.f32 %v2168, %v2592
          %v2607 = vadd.f32 %v2169, %v2597
          %s2608 = scalar_lea.vmem [#allocation13], 40
          %v2609 = vld [vmem:[%s2608] sm:$0xff]
          %v2611 = vsel %vm570, %v2189, 0
          %v2614 = vsel %vm570, %v2190, 0
          %v2617 = vsel %vm570, %v2191, 0
          %v2620 = vsel %vm570, %v2192, 0
          %v2623 = vsel %vm570, %v2193, 0
          %v2626 = vsel %vm570, %v2194, 0
          %v2629 = vsel %vm570, %v2195, 0
          %v2632 = vsel %vm570, %v2196, 0
          %2634 = vmatprep.subr.mxu0 0.0
          %2635 = vmatpush1.msra.mxu0 %v2609
          %2636 = vmatprep.subr.mxu0 0.0
          %2637 = vmatpush1.msra.mxu0 0.0
          %2638 = vmatprep.subr.mxu0 0.0
          %2639 = vmatpush1.msra.mxu0 0.0
          %2640 = vmatprep.subr.mxu0 0.0
          %2641 = vmatpush1.msra.mxu0 0.0
          %2642 = vmatprep.subr.mxu0 0.0
          %2643 = vmatpush1.msra.mxu0 0.0
          %2644 = vmatprep.subr.mxu0 0.0
          %2645 = vmatpush1.msra.mxu0 0.0
          %2646 = vmatprep.subr.mxu0 0.0
          %2647 = vmatpush1.msra.mxu0 0.0
          %2648 = vmatprep.subr.mxu0 0.0
          %2649 = vmatpush1.msra.mxu0 0.0
          %2650 = vmatprep.subr.mxu0 0.0
          %2651 = vmatpush1.msra.mxu0 0.0
          %2652 = vmatprep.subr.mxu0 0.0
          %2653 = vmatpush1.msra.mxu0 0.0
          %2654 = vmatprep.subr.mxu0 0.0
          %2655 = vmatpush1.msra.mxu0 0.0
          %2656 = vmatprep.subr.mxu0 0.0
          %2657 = vmatpush1.msra.mxu0 0.0
          %2658 = vmatprep.subr.mxu0 0.0
          %2659 = vmatpush1.msra.mxu0 0.0
          %2660 = vmatprep.subr.mxu0 0.0
          %2661 = vmatpush1.msra.mxu0 0.0
          %2662 = vmatprep.subr.mxu0 0.0
          %2663 = vmatpush1.msra.mxu0 0.0
          %2664 = vmatprep.subr.mxu0 0.0
          %2665 = vmatpush1.msra.mxu0 0.0
          %2666 = vmatprep.subr.mxu0 0.0
          %2667 = vmatpush1.msra.mxu0 0.0
          %2668 = vmatprep.subr.mxu0 0.0
          %2669 = vmatpush1.msra.mxu0 0.0
          %2670 = vmatprep.subr.mxu0 0.0
          %2671 = vmatpush1.msra.mxu0 0.0
          %2672 = vmatprep.subr.mxu0 0.0
          %2673 = vmatpush1.msra.mxu0 0.0
          %2674 = vmatprep.subr.mxu0 0.0
          %2675 = vmatpush1.msra.mxu0 0.0
          %2676 = vmatprep.subr.mxu0 0.0
          %2677 = vmatpush1.msra.mxu0 0.0
          %2678 = vmatprep.subr.mxu0 0.0
          %2679 = vmatpush1.msra.mxu0 0.0
          %2680 = vmatprep.subr.mxu0 0.0
          %2681 = vmatpush1.msra.mxu0 0.0
          %2682 = vmatprep.subr.mxu0 0.0
          %2683 = vmatpush1.msra.mxu0 0.0
          %2684 = vmatprep.subr.mxu0 0.0
          %2685 = vmatpush1.msra.mxu0 0.0
          %2686 = vmatprep.subr.mxu0 0.0
          %2687 = vmatpush1.msra.mxu0 0.0
          %2688 = vmatprep.subr.mxu0 0.0
          %2689 = vmatpush1.msra.mxu0 0.0
          %2690 = vmatprep.subr.mxu0 0.0
          %2691 = vmatpush1.msra.mxu0 0.0
          %2692 = vmatprep.subr.mxu0 0.0
          %2693 = vmatpush1.msra.mxu0 0.0
          %2694 = vmatprep.subr.mxu0 0.0
          %2695 = vmatpush1.msra.mxu0 0.0
          %2696 = vmatprep.subr.mxu0 0.0
          %2697 = vmatpush1.msra.mxu0 0.0
          %2698 = vmatprep.mubr.f32.mxu0 0.0
          %2699 = vmatmul.mubr.f32.gmra.mrb[0].mxu0 %v2611
          %v2700 = vpop.f32.mrb[0].mxu0
          %v2701 = vadd.f32 0.0, %v2700
          %v2702 = vpop.f32.mrb[0].mxu0
          %2703 = vmatprep.mubr.f32.mxu0 0.0
          %2704 = vmatmul.mubr.f32.gmra.mrb[0].mxu0 %v2614
          %v2705 = vpop.f32.mrb[0].mxu0
          %v2706 = vadd.f32 0.0, %v2705
          %v2707 = vpop.f32.mrb[0].mxu0
          %2708 = vmatprep.mubr.f32.mxu0 0.0
          %2709 = vmatmul.mubr.f32.gmra.mrb[0].mxu0 %v2617
          %v2710 = vpop.f32.mrb[0].mxu0
          %v2711 = vadd.f32 0.0, %v2710
          %v2712 = vpop.f32.mrb[0].mxu0
          %2713 = vmatprep.mubr.f32.mxu0 0.0
          %2714 = vmatmul.mubr.f32.gmra.mrb[0].mxu0 %v2620
          %v2715 = vpop.f32.mrb[0].mxu0
          %v2716 = vadd.f32 0.0, %v2715
          %v2717 = vpop.f32.mrb[0].mxu0
          %2718 = vmatprep.mubr.f32.mxu0 0.0
          %2719 = vmatmul.mubr.f32.gmra.mrb[0].mxu0 %v2623
          %v2720 = vpop.f32.mrb[0].mxu0
          %v2721 = vadd.f32 0.0, %v2720
          %v2722 = vpop.f32.mrb[0].mxu0
          %2723 = vmatprep.mubr.f32.mxu0 0.0
          %2724 = vmatmul.mubr.f32.gmra.mrb[0].mxu0 %v2626
          %v2725 = vpop.f32.mrb[0].mxu0
          %v2726 = vadd.f32 0.0, %v2725
          %v2727 = vpop.f32.mrb[0].mxu0
          %2728 = vmatprep.mubr.f32.mxu0 0.0
          %2729 = vmatmul.mubr.f32.gmra.mrb[0].mxu0 %v2629
          %v2730 = vpop.f32.mrb[0].mxu0
          %v2731 = vadd.f32 0.0, %v2730
          %v2732 = vpop.f32.mrb[0].mxu0
          %2733 = vmatprep.mubr.f32.mxu0 0.0
          %2734 = vmatmul.mubr.f32.gmra.mrb[0].mxu0 %v2632
          %v2735 = vpop.f32.mrb[0].mxu0
          %v2736 = vadd.f32 0.0, %v2735
          %v2737 = vpop.f32.mrb[0].mxu0
          %2738 = vdwg.mxu0
          %v2739 = vadd.f32 %v2600, %v2701
          %v2740 = vadd.f32 %v2601, %v2706
          %v2741 = vadd.f32 %v2602, %v2711
          %v2742 = vadd.f32 %v2603, %v2716
          %v2743 = vadd.f32 %v2604, %v2721
          %v2744 = vadd.f32 %v2605, %v2726
          %v2745 = vadd.f32 %v2606, %v2731
          %v2746 = vadd.f32 %v2607, %v2736
          %v2748 = vlaneseq
          %v2749 = vshrl.u32 %v2748, 7
          %v2750 = vsub.s32 0, %v2749
          %v2751 = vrot.slane %v1050, %v2750
          %v2753 = vadd.f32 %v2484, %v2751
          %v2754 = vadd.f32 %v2485, %v2751
          %v2755 = vadd.f32 %v2486, %v2751
          %v2756 = vadd.f32 %v2487, %v2751
          %v2757 = vadd.f32 %v2488, %v2751
          %v2758 = vadd.f32 %v2489, %v2751
          %v2759 = vadd.f32 %v2490, %v2751
          %v2760 = vadd.f32 %v2491, %v2751
          %v2761 = vmax.f32 %v2753, 0.0
          %v2762 = vmax.f32 %v2754, 0.0
          %v2763 = vmax.f32 %v2755, 0.0
          %v2764 = vmax.f32 %v2756, 0.0
          %v2765 = vmax.f32 %v2757, 0.0
          %v2766 = vmax.f32 %v2758, 0.0
          %v2767 = vmax.f32 %v2759, 0.0
          %v2768 = vmax.f32 %v2760, 0.0
          %v2769 = vadd.f32 %v2739, %v2751
          %v2770 = vadd.f32 %v2740, %v2751
          %v2771 = vadd.f32 %v2741, %v2751
          %v2772 = vadd.f32 %v2742, %v2751
          %v2773 = vadd.f32 %v2743, %v2751
          %v2774 = vadd.f32 %v2744, %v2751
          %v2775 = vadd.f32 %v2745, %v2751
          %v2776 = vadd.f32 %v2746, %v2751
          %v2777 = vmax.f32 %v2769, 0.0
          %v2778 = vmax.f32 %v2770, 0.0
          %v2779 = vmax.f32 %v2771, 0.0
          %v2780 = vmax.f32 %v2772, 0.0
          %v2781 = vmax.f32 %v2773, 0.0
          %v2782 = vmax.f32 %v2774, 0.0
          %v2783 = vmax.f32 %v2775, 0.0
          %v2784 = vmax.f32 %v2776, 0.0
          %s2785 = scalar_lea.vmem [#allocation3], %s1594
          %2786 = vst.msk [vmem:[%s2785 + $0x8] sm:$0xff] %vm815, %v2761
          %2787 = vst.msk [vmem:[%s2785 + $0x20] sm:$0xff] %vm815, %v2762
          %2788 = vst.msk [vmem:[%s2785 + $0x38] sm:$0xff] %vm815, %v2763
          %2789 = vst.msk [vmem:[%s2785 + $0x50] sm:$0xff] %vm815, %v2764
          %2790 = vst.msk [vmem:[%s2785 + $0x68] sm:$0xff] %vm815, %v2765
          %2791 = vst.msk [vmem:[%s2785 + $0x80] sm:$0xff] %vm815, %v2766
          %2792 = vst.msk [vmem:[%s2785 + $0x98] sm:$0xff] %vm815, %v2767
          %2793 = vst.msk [vmem:[%s2785 + $0xb0] sm:$0xff] %vm815, %v2768
          %2802 = vrot.lane.b32.xlu0 %v2777, 4
          %v2803 = vpop.permute.xlu0 %2802
          %2804 = vrot.lane.b32.xlu0 %v2778, 4
          %v2805 = vpop.permute.xlu0 %2804
          %2806 = vrot.lane.b32.xlu0 %v2779, 4
          %v2807 = vpop.permute.xlu0 %2806
          %2808 = vrot.lane.b32.xlu0 %v2780, 4
          %v2809 = vpop.permute.xlu0 %2808
          %2810 = vrot.lane.b32.xlu0 %v2781, 4
          %v2811 = vpop.permute.xlu0 %2810
          %2812 = vrot.lane.b32.xlu0 %v2782, 4
          %v2813 = vpop.permute.xlu0 %2812
          %2814 = vrot.lane.b32.xlu0 %v2783, 4
          %v2815 = vpop.permute.xlu0 %2814
          %2816 = vrot.lane.b32.xlu0 %v2784, 4
          %v2817 = vpop.permute.xlu0 %2816
          %2826 = vst.msk [vmem:[%s2785 + $0x8] sm:$0xff] %vm896, %v2803
          %2827 = vst.msk [vmem:[%s2785 + $0x20] sm:$0xff] %vm896, %v2805
          %2828 = vst.msk [vmem:[%s2785 + $0x38] sm:$0xff] %vm896, %v2807
          %2829 = vst.msk [vmem:[%s2785 + $0x50] sm:$0xff] %vm896, %v2809
          %2830 = vst.msk [vmem:[%s2785 + $0x68] sm:$0xff] %vm896, %v2811
          %2831 = vst.msk [vmem:[%s2785 + $0x80] sm:$0xff] %vm896, %v2813
          %2832 = vst.msk [vmem:[%s2785 + $0x98] sm:$0xff] %vm896, %v2815
          %2833 = vst.msk [vmem:[%s2785 + $0xb0] sm:$0xff] %vm896, %v2817
        $region105: #{unet_up_block_forward.1} parent=59 // loop_footer
          %s1048 = sadd.s32 1, %s1044
        $region106: #{unet_up_block_forward.1} parent=59 // loop_footer_branch
          %1043 = sbr.rel target = $region102
        $region107: #{unet_up_block_forward.1} parent=59 // loop_exit
          _
        loop: start=0, step=1, limit=2
        $region108: #{unet_up_block_forward.1} parent=59 // loop_pre_header
          _
        $region109: #{unet_up_block_forward.1} parent=59 // loop_header
          %s2835 = sphi 0, %s2839
          %p2836 = scmp.ge.s32.totalorder %s2835, 2
        $region110: #{unet_up_block_forward.1} parent=59 // loop_header_branch
          %2838 = sbr.rel (%p2836) target = $region114
        $region111: #{unet_up_block_forward.1} parent=59 // loop_body
          %s2840 = smul.u32 %s2835, 8
          %v2841 = vld [vmem:[#allocation19] sm:$0x1]
          %s2842 = smul.u32 %s2840, 24
          %s2843 = scalar_lea.vmem [#allocation3], %s2842
          %v2844 = vld [vmem:[%s2843 + $0x8] sm:$0xff]
          %v2845 = vld [vmem:[%s2843 + $0x20] sm:$0xff]
          %v2846 = vld [vmem:[%s2843 + $0x38] sm:$0xff]
          %v2847 = vld [vmem:[%s2843 + $0x50] sm:$0xff]
          %v2848 = vld [vmem:[%s2843 + $0x68] sm:$0xff]
          %v2849 = vld [vmem:[%s2843 + $0x80] sm:$0xff]
          %v2850 = vld [vmem:[%s2843 + $0x98] sm:$0xff]
          %v2851 = vld [vmem:[%s2843 + $0xb0] sm:$0xff]
          %v2852 = vld [vmem:[%s2843 + $0x7] sm:$0xff]
          %v2853 = vld [vmem:[%s2843 + $0x1f] sm:$0xff]
          %v2854 = vld [vmem:[%s2843 + $0x37] sm:$0xff]
          %v2855 = vld [vmem:[%s2843 + $0x4f] sm:$0xff]
          %v2856 = vld [vmem:[%s2843 + $0x67] sm:$0xff]
          %v2857 = vld [vmem:[%s2843 + $0x7f] sm:$0xff]
          %v2858 = vld [vmem:[%s2843 + $0x97] sm:$0xff]
          %v2859 = vld [vmem:[%s2843 + $0xaf] sm:$0xff]
          %v2860 = vld [vmem:[%s2843 + $0x9] sm:$0xff]
          %v2861 = vld [vmem:[%s2843 + $0x21] sm:$0xff]
          %v2862 = vld [vmem:[%s2843 + $0x39] sm:$0xff]
          %v2863 = vld [vmem:[%s2843 + $0x51] sm:$0xff]
          %v2864 = vld [vmem:[%s2843 + $0x69] sm:$0xff]
          %v2865 = vld [vmem:[%s2843 + $0x81] sm:$0xff]
          %v2866 = vld [vmem:[%s2843 + $0x99] sm:$0xff]
          %v2867 = vld [vmem:[%s2843 + $0xb1] sm:$0xff]
          %v2868 = vld [vmem:[#allocation16] sm:$0xff]
          %v2869 = vld [vmem:[#allocation18] sm:$0xf]
          %2878 = vrot.lane.b32.xlu0 %v2852, 124
          %v2879 = vpop.permute.xlu0 %2878
          %2880 = vrot.lane.b32.xlu0 %v2853, 124
          %v2881 = vpop.permute.xlu0 %2880
          %2882 = vrot.lane.b32.xlu0 %v2854, 124
          %v2883 = vpop.permute.xlu0 %2882
          %2884 = vrot.lane.b32.xlu0 %v2855, 124
          %v2885 = vpop.permute.xlu0 %2884
          %2886 = vrot.lane.b32.xlu0 %v2856, 124
          %v2887 = vpop.permute.xlu0 %2886
          %2888 = vrot.lane.b32.xlu0 %v2857, 124
          %v2889 = vpop.permute.xlu0 %2888
          %2890 = vrot.lane.b32.xlu0 %v2858, 124
          %v2891 = vpop.permute.xlu0 %2890
          %2892 = vrot.lane.b32.xlu0 %v2859, 124
          %v2893 = vpop.permute.xlu0 %2892
          %v2894 = vsel %vm815, %v2879, 0
          %v2896 = vsel %vm815, %v2881, 0
          %v2898 = vsel %vm815, %v2883, 0
          %v2900 = vsel %vm815, %v2885, 0
          %v2902 = vsel %vm815, %v2887, 0
          %v2904 = vsel %vm815, %v2889, 0
          %v2906 = vsel %vm815, %v2891, 0
          %v2908 = vsel %vm815, %v2893, 0
          %vm2910 = vcmask 1043456
          %v2912 = vsel %vm2910, %v2869, 0
          %2914 = vmatprep.subr.mxu0 0.0
          %2915 = vmatpush1.msra.mxu0 %v2912
          %2916 = vmatprep.subr.mxu0 0.0
          %2917 = vmatpush1.msra.mxu0 0.0
          %2918 = vmatprep.subr.mxu0 0.0
          %2919 = vmatpush1.msra.mxu0 0.0
          %2920 = vmatprep.subr.mxu0 0.0
          %2921 = vmatpush1.msra.mxu0 0.0
          %2922 = vmatprep.subr.mxu0 0.0
          %2923 = vmatpush1.msra.mxu0 0.0
          %2924 = vmatprep.subr.mxu0 0.0
          %2925 = vmatpush1.msra.mxu0 0.0
          %2926 = vmatprep.subr.mxu0 0.0
          %2927 = vmatpush1.msra.mxu0 0.0
          %2928 = vmatprep.subr.mxu0 0.0
          %2929 = vmatpush1.msra.mxu0 0.0
          %2930 = vmatprep.subr.mxu0 0.0
          %2931 = vmatpush1.msra.mxu0 0.0
          %2932 = vmatprep.subr.mxu0 0.0
          %2933 = vmatpush1.msra.mxu0 0.0
          %2934 = vmatprep.subr.mxu0 0.0
          %2935 = vmatpush1.msra.mxu0 0.0
          %2936 = vmatprep.subr.mxu0 0.0
          %2937 = vmatpush1.msra.mxu0 0.0
          %2938 = vmatprep.subr.mxu0 0.0
          %2939 = vmatpush1.msra.mxu0 0.0
          %2940 = vmatprep.subr.mxu0 0.0
          %2941 = vmatpush1.msra.mxu0 0.0
          %2942 = vmatprep.subr.mxu0 0.0
          %2943 = vmatpush1.msra.mxu0 0.0
          %2944 = vmatprep.subr.mxu0 0.0
          %2945 = vmatpush1.msra.mxu0 0.0
          %2946 = vmatprep.subr.mxu0 0.0
          %2947 = vmatpush1.msra.mxu0 0.0
          %2948 = vmatprep.subr.mxu0 0.0
          %2949 = vmatpush1.msra.mxu0 0.0
          %2950 = vmatprep.subr.mxu0 0.0
          %2951 = vmatpush1.msra.mxu0 0.0
          %2952 = vmatprep.subr.mxu0 0.0
          %2953 = vmatpush1.msra.mxu0 0.0
          %2954 = vmatprep.subr.mxu0 0.0
          %2955 = vmatpush1.msra.mxu0 0.0
          %2956 = vmatprep.subr.mxu0 0.0
          %2957 = vmatpush1.msra.mxu0 0.0
          %2958 = vmatprep.subr.mxu0 0.0
          %2959 = vmatpush1.msra.mxu0 0.0
          %2960 = vmatprep.subr.mxu0 0.0
          %2961 = vmatpush1.msra.mxu0 0.0
          %2962 = vmatprep.subr.mxu0 0.0
          %2963 = vmatpush1.msra.mxu0 0.0
          %2964 = vmatprep.subr.mxu0 0.0
          %2965 = vmatpush1.msra.mxu0 0.0
          %2966 = vmatprep.subr.mxu0 0.0
          %2967 = vmatpush1.msra.mxu0 0.0
          %2968 = vmatprep.subr.mxu0 0.0
          %2969 = vmatpush1.msra.mxu0 0.0
          %2970 = vmatprep.subr.mxu0 0.0
          %2971 = vmatpush1.msra.mxu0 0.0
          %2972 = vmatprep.subr.mxu0 0.0
          %2973 = vmatpush1.msra.mxu0 0.0
          %2974 = vmatprep.subr.mxu0 0.0
          %2975 = vmatpush1.msra.mxu0 0.0
          %2976 = vmatprep.subr.mxu0 0.0
          %2977 = vmatpush1.msra.mxu0 0.0
          %2978 = vmatprep.mubr.f32.mxu0 0.0
          %2979 = vmatmul.mubr.f32.gmra.mrb[0].mxu0 %v2894
          %v2980 = vpop.f32.mrb[0].mxu0
          %v2981 = vadd.f32 0.0, %v2980
          %v2982 = vpop.f32.mrb[0].mxu0
          %2983 = vmatprep.mubr.f32.mxu0 0.0
          %2984 = vmatmul.mubr.f32.gmra.mrb[0].mxu0 %v2896
          %v2985 = vpop.f32.mrb[0].mxu0
          %v2986 = vadd.f32 0.0, %v2985
          %v2987 = vpop.f32.mrb[0].mxu0
          %2988 = vmatprep.mubr.f32.mxu0 0.0
          %2989 = vmatmul.mubr.f32.gmra.mrb[0].mxu0 %v2898
          %v2990 = vpop.f32.mrb[0].mxu0
          %v2991 = vadd.f32 0.0, %v2990
          %v2992 = vpop.f32.mrb[0].mxu0
          %2993 = vmatprep.mubr.f32.mxu0 0.0
          %2994 = vmatmul.mubr.f32.gmra.mrb[0].mxu0 %v2900
          %v2995 = vpop.f32.mrb[0].mxu0
          %v2996 = vadd.f32 0.0, %v2995
          %v2997 = vpop.f32.mrb[0].mxu0
          %2998 = vmatprep.mubr.f32.mxu0 0.0
          %2999 = vmatmul.mubr.f32.gmra.mrb[0].mxu0 %v2902
          %v3000 = vpop.f32.mrb[0].mxu0
          %v3001 = vadd.f32 0.0, %v3000
          %v3002 = vpop.f32.mrb[0].mxu0
          %3003 = vmatprep.mubr.f32.mxu0 0.0
          %3004 = vmatmul.mubr.f32.gmra.mrb[0].mxu0 %v2904
          %v3005 = vpop.f32.mrb[0].mxu0
          %v3006 = vadd.f32 0.0, %v3005
          %v3007 = vpop.f32.mrb[0].mxu0
          %3008 = vmatprep.mubr.f32.mxu0 0.0
          %3009 = vmatmul.mubr.f32.gmra.mrb[0].mxu0 %v2906
          %v3010 = vpop.f32.mrb[0].mxu0
          %v3011 = vadd.f32 0.0, %v3010
          %v3012 = vpop.f32.mrb[0].mxu0
          %3013 = vmatprep.mubr.f32.mxu0 0.0
          %3014 = vmatmul.mubr.f32.gmra.mrb[0].mxu0 %v2908
          %v3015 = vpop.f32.mrb[0].mxu0
          %v3016 = vadd.f32 0.0, %v3015
          %v3017 = vpop.f32.mrb[0].mxu0
          %3018 = vdwg.mxu0
          %v3020 = vsel %vm570, %v2844, 0
          %v3023 = vsel %vm570, %v2845, 0
          %v3026 = vsel %vm570, %v2846, 0
          %v3029 = vsel %vm570, %v2847, 0
          %v3032 = vsel %vm570, %v2848, 0
          %v3035 = vsel %vm570, %v2849, 0
          %v3038 = vsel %vm570, %v2850, 0
          %v3041 = vsel %vm570, %v2851, 0
          %3043 = vmatprep.subr.mxu0 0.0
          %3044 = vmatpush1.msra.mxu0 %v2868
          %3045 = vmatprep.subr.mxu0 0.0
          %3046 = vmatpush1.msra.mxu0 0.0
          %3047 = vmatprep.subr.mxu0 0.0
          %3048 = vmatpush1.msra.mxu0 0.0
          %3049 = vmatprep.subr.mxu0 0.0
          %3050 = vmatpush1.msra.mxu0 0.0
          %3051 = vmatprep.subr.mxu0 0.0
          %3052 = vmatpush1.msra.mxu0 0.0
          %3053 = vmatprep.subr.mxu0 0.0
          %3054 = vmatpush1.msra.mxu0 0.0
          %3055 = vmatprep.subr.mxu0 0.0
          %3056 = vmatpush1.msra.mxu0 0.0
          %3057 = vmatprep.subr.mxu0 0.0
          %3058 = vmatpush1.msra.mxu0 0.0
          %3059 = vmatprep.subr.mxu0 0.0
          %3060 = vmatpush1.msra.mxu0 0.0
          %3061 = vmatprep.subr.mxu0 0.0
          %3062 = vmatpush1.msra.mxu0 0.0
          %3063 = vmatprep.subr.mxu0 0.0
          %3064 = vmatpush1.msra.mxu0 0.0
          %3065 = vmatprep.subr.mxu0 0.0
          %3066 = vmatpush1.msra.mxu0 0.0
          %3067 = vmatprep.subr.mxu0 0.0
          %3068 = vmatpush1.msra.mxu0 0.0
          %3069 = vmatprep.subr.mxu0 0.0
          %3070 = vmatpush1.msra.mxu0 0.0
          %3071 = vmatprep.subr.mxu0 0.0
          %3072 = vmatpush1.msra.mxu0 0.0
          %3073 = vmatprep.subr.mxu0 0.0
          %3074 = vmatpush1.msra.mxu0 0.0
          %3075 = vmatprep.subr.mxu0 0.0
          %3076 = vmatpush1.msra.mxu0 0.0
          %3077 = vmatprep.subr.mxu0 0.0
          %3078 = vmatpush1.msra.mxu0 0.0
          %3079 = vmatprep.subr.mxu0 0.0
          %3080 = vmatpush1.msra.mxu0 0.0
          %3081 = vmatprep.subr.mxu0 0.0
          %3082 = vmatpush1.msra.mxu0 0.0
          %3083 = vmatprep.subr.mxu0 0.0
          %3084 = vmatpush1.msra.mxu0 0.0
          %3085 = vmatprep.subr.mxu0 0.0
          %3086 = vmatpush1.msra.mxu0 0.0
          %3087 = vmatprep.subr.mxu0 0.0
          %3088 = vmatpush1.msra.mxu0 0.0
          %3089 = vmatprep.subr.mxu0 0.0
          %3090 = vmatpush1.msra.mxu0 0.0
          %3091 = vmatprep.subr.mxu0 0.0
          %3092 = vmatpush1.msra.mxu0 0.0
          %3093 = vmatprep.subr.mxu0 0.0
          %3094 = vmatpush1.msra.mxu0 0.0
          %3095 = vmatprep.subr.mxu0 0.0
          %3096 = vmatpush1.msra.mxu0 0.0
          %3097 = vmatprep.subr.mxu0 0.0
          %3098 = vmatpush1.msra.mxu0 0.0
          %3099 = vmatprep.subr.mxu0 0.0
          %3100 = vmatpush1.msra.mxu0 0.0
          %3101 = vmatprep.subr.mxu0 0.0
          %3102 = vmatpush1.msra.mxu0 0.0
          %3103 = vmatprep.subr.mxu0 0.0
          %3104 = vmatpush1.msra.mxu0 0.0
          %3105 = vmatprep.subr.mxu0 0.0
          %3106 = vmatpush1.msra.mxu0 0.0
          %3107 = vmatprep.mubr.f32.mxu0 0.0
          %3108 = vmatmul.mubr.f32.gmra.mrb[0].mxu0 %v3020
          %v3109 = vpop.f32.mrb[0].mxu0
          %v3110 = vadd.f32 %v2981, %v3109
          %v3111 = vpop.f32.mrb[0].mxu0
          %3112 = vmatprep.mubr.f32.mxu0 0.0
          %3113 = vmatmul.mubr.f32.gmra.mrb[0].mxu0 %v3023
          %v3114 = vpop.f32.mrb[0].mxu0
          %v3115 = vadd.f32 %v2986, %v3114
          %v3116 = vpop.f32.mrb[0].mxu0
          %3117 = vmatprep.mubr.f32.mxu0 0.0
          %3118 = vmatmul.mubr.f32.gmra.mrb[0].mxu0 %v3026
          %v3119 = vpop.f32.mrb[0].mxu0
          %v3120 = vadd.f32 %v2991, %v3119
          %v3121 = vpop.f32.mrb[0].mxu0
          %3122 = vmatprep.mubr.f32.mxu0 0.0
          %3123 = vmatmul.mubr.f32.gmra.mrb[0].mxu0 %v3029
          %v3124 = vpop.f32.mrb[0].mxu0
          %v3125 = vadd.f32 %v2996, %v3124
          %v3126 = vpop.f32.mrb[0].mxu0
          %3127 = vmatprep.mubr.f32.mxu0 0.0
          %3128 = vmatmul.mubr.f32.gmra.mrb[0].mxu0 %v3032
          %v3129 = vpop.f32.mrb[0].mxu0
          %v3130 = vadd.f32 %v3001, %v3129
          %v3131 = vpop.f32.mrb[0].mxu0
          %3132 = vmatprep.mubr.f32.mxu0 0.0
          %3133 = vmatmul.mubr.f32.gmra.mrb[0].mxu0 %v3035
          %v3134 = vpop.f32.mrb[0].mxu0
          %v3135 = vadd.f32 %v3006, %v3134
          %v3136 = vpop.f32.mrb[0].mxu0
          %3137 = vmatprep.mubr.f32.mxu0 0.0
          %3138 = vmatmul.mubr.f32.gmra.mrb[0].mxu0 %v3038
          %v3139 = vpop.f32.mrb[0].mxu0
          %v3140 = vadd.f32 %v3011, %v3139
          %v3141 = vpop.f32.mrb[0].mxu0
          %3142 = vmatprep.mubr.f32.mxu0 0.0
          %3143 = vmatmul.mubr.f32.gmra.mrb[0].mxu0 %v3041
          %v3144 = vpop.f32.mrb[0].mxu0
          %v3145 = vadd.f32 %v3016, %v3144
          %v3146 = vpop.f32.mrb[0].mxu0
          %3147 = vdwg.mxu0
          %s3148 = scalar_lea.vmem [#allocation16], 24
          %v3149 = vld [vmem:[%s3148] sm:$0xff]
          %s3150 = scalar_lea.vmem [#allocation18], 12
          %v3151 = vld [vmem:[%s3150] sm:$0xf]
          %v3153 = vsel %vm815, %v2860, 0
          %v3156 = vsel %vm815, %v2861, 0
          %v3159 = vsel %vm815, %v2862, 0
          %v3162 = vsel %vm815, %v2863, 0
          %v3165 = vsel %vm815, %v2864, 0
          %v3168 = vsel %vm815, %v2865, 0
          %v3171 = vsel %vm815, %v2866, 0
          %v3174 = vsel %vm815, %v2867, 0
          %v3177 = vsel %vm2910, %v3151, 0
          %3179 = vmatprep.subr.mxu0 0.0
          %3180 = vmatpush1.msra.mxu0 %v3177
          %3181 = vmatprep.subr.mxu0 0.0
          %3182 = vmatpush1.msra.mxu0 0.0
          %3183 = vmatprep.subr.mxu0 0.0
          %3184 = vmatpush1.msra.mxu0 0.0
          %3185 = vmatprep.subr.mxu0 0.0
          %3186 = vmatpush1.msra.mxu0 0.0
          %3187 = vmatprep.subr.mxu0 0.0
          %3188 = vmatpush1.msra.mxu0 0.0
          %3189 = vmatprep.subr.mxu0 0.0
          %3190 = vmatpush1.msra.mxu0 0.0
          %3191 = vmatprep.subr.mxu0 0.0
          %3192 = vmatpush1.msra.mxu0 0.0
          %3193 = vmatprep.subr.mxu0 0.0
          %3194 = vmatpush1.msra.mxu0 0.0
          %3195 = vmatprep.subr.mxu0 0.0
          %3196 = vmatpush1.msra.mxu0 0.0
          %3197 = vmatprep.subr.mxu0 0.0
          %3198 = vmatpush1.msra.mxu0 0.0
          %3199 = vmatprep.subr.mxu0 0.0
          %3200 = vmatpush1.msra.mxu0 0.0
          %3201 = vmatprep.subr.mxu0 0.0
          %3202 = vmatpush1.msra.mxu0 0.0
          %3203 = vmatprep.subr.mxu0 0.0
          %3204 = vmatpush1.msra.mxu0 0.0
          %3205 = vmatprep.subr.mxu0 0.0
          %3206 = vmatpush1.msra.mxu0 0.0
          %3207 = vmatprep.subr.mxu0 0.0
          %3208 = vmatpush1.msra.mxu0 0.0
          %3209 = vmatprep.subr.mxu0 0.0
          %3210 = vmatpush1.msra.mxu0 0.0
          %3211 = vmatprep.subr.mxu0 0.0
          %3212 = vmatpush1.msra.mxu0 0.0
          %3213 = vmatprep.subr.mxu0 0.0
          %3214 = vmatpush1.msra.mxu0 0.0
          %3215 = vmatprep.subr.mxu0 0.0
          %3216 = vmatpush1.msra.mxu0 0.0
          %3217 = vmatprep.subr.mxu0 0.0
          %3218 = vmatpush1.msra.mxu0 0.0
          %3219 = vmatprep.subr.mxu0 0.0
          %3220 = vmatpush1.msra.mxu0 0.0
          %3221 = vmatprep.subr.mxu0 0.0
          %3222 = vmatpush1.msra.mxu0 0.0
          %3223 = vmatprep.subr.mxu0 0.0
          %3224 = vmatpush1.msra.mxu0 0.0
          %3225 = vmatprep.subr.mxu0 0.0
          %3226 = vmatpush1.msra.mxu0 0.0
          %3227 = vmatprep.subr.mxu0 0.0
          %3228 = vmatpush1.msra.mxu0 0.0
          %3229 = vmatprep.subr.mxu0 0.0
          %3230 = vmatpush1.msra.mxu0 0.0
          %3231 = vmatprep.subr.mxu0 0.0
          %3232 = vmatpush1.msra.mxu0 0.0
          %3233 = vmatprep.subr.mxu0 0.0
          %3234 = vmatpush1.msra.mxu0 0.0
          %3235 = vmatprep.subr.mxu0 0.0
          %3236 = vmatpush1.msra.mxu0 0.0
          %3237 = vmatprep.subr.mxu0 0.0
          %3238 = vmatpush1.msra.mxu0 0.0
          %3239 = vmatprep.subr.mxu0 0.0
          %3240 = vmatpush1.msra.mxu0 0.0
          %3241 = vmatprep.subr.mxu0 0.0
          %3242 = vmatpush1.msra.mxu0 0.0
          %3243 = vmatprep.mubr.f32.mxu0 0.0
          %3244 = vmatmul.mubr.f32.gmra.mrb[0].mxu0 %v3153
          %v3245 = vpop.f32.mrb[0].mxu0
          %v3246 = vadd.f32 0.0, %v3245
          %v3247 = vpop.f32.mrb[0].mxu0
          %3248 = vmatprep.mubr.f32.mxu0 0.0
          %3249 = vmatmul.mubr.f32.gmra.mrb[0].mxu0 %v3156
          %v3250 = vpop.f32.mrb[0].mxu0
          %v3251 = vadd.f32 0.0, %v3250
          %v3252 = vpop.f32.mrb[0].mxu0
          %3253 = vmatprep.mubr.f32.mxu0 0.0
          %3254 = vmatmul.mubr.f32.gmra.mrb[0].mxu0 %v3159
          %v3255 = vpop.f32.mrb[0].mxu0
          %v3256 = vadd.f32 0.0, %v3255
          %v3257 = vpop.f32.mrb[0].mxu0
          %3258 = vmatprep.mubr.f32.mxu0 0.0
          %3259 = vmatmul.mubr.f32.gmra.mrb[0].mxu0 %v3162
          %v3260 = vpop.f32.mrb[0].mxu0
          %v3261 = vadd.f32 0.0, %v3260
          %v3262 = vpop.f32.mrb[0].mxu0
          %3263 = vmatprep.mubr.f32.mxu0 0.0
          %3264 = vmatmul.mubr.f32.gmra.mrb[0].mxu0 %v3165
          %v3265 = vpop.f32.mrb[0].mxu0
          %v3266 = vadd.f32 0.0, %v3265
          %v3267 = vpop.f32.mrb[0].mxu0
          %3268 = vmatprep.mubr.f32.mxu0 0.0
          %3269 = vmatmul.mubr.f32.gmra.mrb[0].mxu0 %v3168
          %v3270 = vpop.f32.mrb[0].mxu0
          %v3271 = vadd.f32 0.0, %v3270
          %v3272 = vpop.f32.mrb[0].mxu0
          %3273 = vmatprep.mubr.f32.mxu0 0.0
          %3274 = vmatmul.mubr.f32.gmra.mrb[0].mxu0 %v3171
          %v3275 = vpop.f32.mrb[0].mxu0
          %v3276 = vadd.f32 0.0, %v3275
          %v3277 = vpop.f32.mrb[0].mxu0
          %3278 = vmatprep.mubr.f32.mxu0 0.0
          %3279 = vmatmul.mubr.f32.gmra.mrb[0].mxu0 %v3174
          %v3280 = vpop.f32.mrb[0].mxu0
          %v3281 = vadd.f32 0.0, %v3280
          %v3282 = vpop.f32.mrb[0].mxu0
          %3283 = vdwg.mxu0
          %3284 = vmatprep.subr.mxu0 0.0
          %3285 = vmatpush1.msra.mxu0 %v3149
          %3286 = vmatprep.subr.mxu0 0.0
          %3287 = vmatpush1.msra.mxu0 0.0
          %3288 = vmatprep.subr.mxu0 0.0
          %3289 = vmatpush1.msra.mxu0 0.0
          %3290 = vmatprep.subr.mxu0 0.0
          %3291 = vmatpush1.msra.mxu0 0.0
          %3292 = vmatprep.subr.mxu0 0.0
          %3293 = vmatpush1.msra.mxu0 0.0
          %3294 = vmatprep.subr.mxu0 0.0
          %3295 = vmatpush1.msra.mxu0 0.0
          %3296 = vmatprep.subr.mxu0 0.0
          %3297 = vmatpush1.msra.mxu0 0.0
          %3298 = vmatprep.subr.mxu0 0.0
          %3299 = vmatpush1.msra.mxu0 0.0
          %3300 = vmatprep.subr.mxu0 0.0
          %3301 = vmatpush1.msra.mxu0 0.0
          %3302 = vmatprep.subr.mxu0 0.0
          %3303 = vmatpush1.msra.mxu0 0.0
          %3304 = vmatprep.subr.mxu0 0.0
          %3305 = vmatpush1.msra.mxu0 0.0
          %3306 = vmatprep.subr.mxu0 0.0
          %3307 = vmatpush1.msra.mxu0 0.0
          %3308 = vmatprep.subr.mxu0 0.0
          %3309 = vmatpush1.msra.mxu0 0.0
          %3310 = vmatprep.subr.mxu0 0.0
          %3311 = vmatpush1.msra.mxu0 0.0
          %3312 = vmatprep.subr.mxu0 0.0
          %3313 = vmatpush1.msra.mxu0 0.0
          %3314 = vmatprep.subr.mxu0 0.0
          %3315 = vmatpush1.msra.mxu0 0.0
          %3316 = vmatprep.subr.mxu0 0.0
          %3317 = vmatpush1.msra.mxu0 0.0
          %3318 = vmatprep.subr.mxu0 0.0
          %3319 = vmatpush1.msra.mxu0 0.0
          %3320 = vmatprep.subr.mxu0 0.0
          %3321 = vmatpush1.msra.mxu0 0.0
          %3322 = vmatprep.subr.mxu0 0.0
          %3323 = vmatpush1.msra.mxu0 0.0
          %3324 = vmatprep.subr.mxu0 0.0
          %3325 = vmatpush1.msra.mxu0 0.0
          %3326 = vmatprep.subr.mxu0 0.0
          %3327 = vmatpush1.msra.mxu0 0.0
          %3328 = vmatprep.subr.mxu0 0.0
          %3329 = vmatpush1.msra.mxu0 0.0
          %3330 = vmatprep.subr.mxu0 0.0
          %3331 = vmatpush1.msra.mxu0 0.0
          %3332 = vmatprep.subr.mxu0 0.0
          %3333 = vmatpush1.msra.mxu0 0.0
          %3334 = vmatprep.subr.mxu0 0.0
          %3335 = vmatpush1.msra.mxu0 0.0
          %3336 = vmatprep.subr.mxu0 0.0
          %3337 = vmatpush1.msra.mxu0 0.0
          %3338 = vmatprep.subr.mxu0 0.0
          %3339 = vmatpush1.msra.mxu0 0.0
          %3340 = vmatprep.subr.mxu0 0.0
          %3341 = vmatpush1.msra.mxu0 0.0
          %3342 = vmatprep.subr.mxu0 0.0
          %3343 = vmatpush1.msra.mxu0 0.0
          %3344 = vmatprep.subr.mxu0 0.0
          %3345 = vmatpush1.msra.mxu0 0.0
          %3346 = vmatprep.subr.mxu0 0.0
          %3347 = vmatpush1.msra.mxu0 0.0
          %3348 = vmatprep.mubr.f32.mxu0 0.0
          %3349 = vmatmul.mubr.f32.gmra.mrb[0].mxu0 %v3020
          %v3350 = vpop.f32.mrb[0].mxu0
          %v3351 = vadd.f32 %v3246, %v3350
          %v3352 = vpop.f32.mrb[0].mxu0
          %3353 = vmatprep.mubr.f32.mxu0 0.0
          %3354 = vmatmul.mubr.f32.gmra.mrb[0].mxu0 %v3023
          %v3355 = vpop.f32.mrb[0].mxu0
          %v3356 = vadd.f32 %v3251, %v3355
          %v3357 = vpop.f32.mrb[0].mxu0
          %3358 = vmatprep.mubr.f32.mxu0 0.0
          %3359 = vmatmul.mubr.f32.gmra.mrb[0].mxu0 %v3026
          %v3360 = vpop.f32.mrb[0].mxu0
          %v3361 = vadd.f32 %v3256, %v3360
          %v3362 = vpop.f32.mrb[0].mxu0
          %3363 = vmatprep.mubr.f32.mxu0 0.0
          %3364 = vmatmul.mubr.f32.gmra.mrb[0].mxu0 %v3029
          %v3365 = vpop.f32.mrb[0].mxu0
          %v3366 = vadd.f32 %v3261, %v3365
          %v3367 = vpop.f32.mrb[0].mxu0
          %3368 = vmatprep.mubr.f32.mxu0 0.0
          %3369 = vmatmul.mubr.f32.gmra.mrb[0].mxu0 %v3032
          %v3370 = vpop.f32.mrb[0].mxu0
          %v3371 = vadd.f32 %v3266, %v3370
          %v3372 = vpop.f32.mrb[0].mxu0
          %3373 = vmatprep.mubr.f32.mxu0 0.0
          %3374 = vmatmul.mubr.f32.gmra.mrb[0].mxu0 %v3035
          %v3375 = vpop.f32.mrb[0].mxu0
          %v3376 = vadd.f32 %v3271, %v3375
          %v3377 = vpop.f32.mrb[0].mxu0
          %3378 = vmatprep.mubr.f32.mxu0 0.0
          %3379 = vmatmul.mubr.f32.gmra.mrb[0].mxu0 %v3038
          %v3380 = vpop.f32.mrb[0].mxu0
          %v3381 = vadd.f32 %v3276, %v3380
          %v3382 = vpop.f32.mrb[0].mxu0
          %3383 = vmatprep.mubr.f32.mxu0 0.0
          %3384 = vmatmul.mubr.f32.gmra.mrb[0].mxu0 %v3041
          %v3385 = vpop.f32.mrb[0].mxu0
          %v3386 = vadd.f32 %v3281, %v3385
          %v3387 = vpop.f32.mrb[0].mxu0
          %3388 = vdwg.mxu0
          %s3389 = sadd.s32 %s2840, 1
          %s3390 = smul.u32 %s3389, 24
          %s3391 = scalar_lea.vmem [#allocation3], %s3390
          %v3392 = vld [vmem:[%s3391 + $0x8] sm:$0xff]
          %v3393 = vld [vmem:[%s3391 + $0x20] sm:$0xff]
          %v3394 = vld [vmem:[%s3391 + $0x38] sm:$0xff]
          %v3395 = vld [vmem:[%s3391 + $0x50] sm:$0xff]
          %v3396 = vld [vmem:[%s3391 + $0x68] sm:$0xff]
          %v3397 = vld [vmem:[%s3391 + $0x80] sm:$0xff]
          %v3398 = vld [vmem:[%s3391 + $0x98] sm:$0xff]
          %v3399 = vld [vmem:[%s3391 + $0xb0] sm:$0xff]
          %v3400 = vld [vmem:[%s3391 + $0x7] sm:$0xff]
          %v3401 = vld [vmem:[%s3391 + $0x1f] sm:$0xff]
          %v3402 = vld [vmem:[%s3391 + $0x37] sm:$0xff]
          %v3403 = vld [vmem:[%s3391 + $0x4f] sm:$0xff]
          %v3404 = vld [vmem:[%s3391 + $0x67] sm:$0xff]
          %v3405 = vld [vmem:[%s3391 + $0x7f] sm:$0xff]
          %v3406 = vld [vmem:[%s3391 + $0x97] sm:$0xff]
          %v3407 = vld [vmem:[%s3391 + $0xaf] sm:$0xff]
          %v3408 = vld [vmem:[%s3391 + $0x9] sm:$0xff]
          %v3409 = vld [vmem:[%s3391 + $0x21] sm:$0xff]
          %v3410 = vld [vmem:[%s3391 + $0x39] sm:$0xff]
          %v3411 = vld [vmem:[%s3391 + $0x51] sm:$0xff]
          %v3412 = vld [vmem:[%s3391 + $0x69] sm:$0xff]
          %v3413 = vld [vmem:[%s3391 + $0x81] sm:$0xff]
          %v3414 = vld [vmem:[%s3391 + $0x99] sm:$0xff]
          %v3415 = vld [vmem:[%s3391 + $0xb1] sm:$0xff]
          %s3416 = scalar_lea.vmem [#allocation16], 8
          %v3417 = vld [vmem:[%s3416] sm:$0xff]
          %v3419 = vsel %vm570, %v3392, 0
          %v3422 = vsel %vm570, %v3393, 0
          %v3425 = vsel %vm570, %v3394, 0
          %v3428 = vsel %vm570, %v3395, 0
          %v3431 = vsel %vm570, %v3396, 0
          %v3434 = vsel %vm570, %v3397, 0
          %v3437 = vsel %vm570, %v3398, 0
          %v3440 = vsel %vm570, %v3399, 0
          %3442 = vmatprep.subr.mxu0 0.0
          %3443 = vmatpush1.msra.mxu0 %v3417
          %3444 = vmatprep.subr.mxu0 0.0
          %3445 = vmatpush1.msra.mxu0 0.0
          %3446 = vmatprep.subr.mxu0 0.0
          %3447 = vmatpush1.msra.mxu0 0.0
          %3448 = vmatprep.subr.mxu0 0.0
          %3449 = vmatpush1.msra.mxu0 0.0
          %3450 = vmatprep.subr.mxu0 0.0
          %3451 = vmatpush1.msra.mxu0 0.0
          %3452 = vmatprep.subr.mxu0 0.0
          %3453 = vmatpush1.msra.mxu0 0.0
          %3454 = vmatprep.subr.mxu0 0.0
          %3455 = vmatpush1.msra.mxu0 0.0
          %3456 = vmatprep.subr.mxu0 0.0
          %3457 = vmatpush1.msra.mxu0 0.0
          %3458 = vmatprep.subr.mxu0 0.0
          %3459 = vmatpush1.msra.mxu0 0.0
          %3460 = vmatprep.subr.mxu0 0.0
          %3461 = vmatpush1.msra.mxu0 0.0
          %3462 = vmatprep.subr.mxu0 0.0
          %3463 = vmatpush1.msra.mxu0 0.0
          %3464 = vmatprep.subr.mxu0 0.0
          %3465 = vmatpush1.msra.mxu0 0.0
          %3466 = vmatprep.subr.mxu0 0.0
          %3467 = vmatpush1.msra.mxu0 0.0
          %3468 = vmatprep.subr.mxu0 0.0
          %3469 = vmatpush1.msra.mxu0 0.0
          %3470 = vmatprep.subr.mxu0 0.0
          %3471 = vmatpush1.msra.mxu0 0.0
          %3472 = vmatprep.subr.mxu0 0.0
          %3473 = vmatpush1.msra.mxu0 0.0
          %3474 = vmatprep.subr.mxu0 0.0
          %3475 = vmatpush1.msra.mxu0 0.0
          %3476 = vmatprep.subr.mxu0 0.0
          %3477 = vmatpush1.msra.mxu0 0.0
          %3478 = vmatprep.subr.mxu0 0.0
          %3479 = vmatpush1.msra.mxu0 0.0
          %3480 = vmatprep.subr.mxu0 0.0
          %3481 = vmatpush1.msra.mxu0 0.0
          %3482 = vmatprep.subr.mxu0 0.0
          %3483 = vmatpush1.msra.mxu0 0.0
          %3484 = vmatprep.subr.mxu0 0.0
          %3485 = vmatpush1.msra.mxu0 0.0
          %3486 = vmatprep.subr.mxu0 0.0
          %3487 = vmatpush1.msra.mxu0 0.0
          %3488 = vmatprep.subr.mxu0 0.0
          %3489 = vmatpush1.msra.mxu0 0.0
          %3490 = vmatprep.subr.mxu0 0.0
          %3491 = vmatpush1.msra.mxu0 0.0
          %3492 = vmatprep.subr.mxu0 0.0
          %3493 = vmatpush1.msra.mxu0 0.0
          %3494 = vmatprep.subr.mxu0 0.0
          %3495 = vmatpush1.msra.mxu0 0.0
          %3496 = vmatprep.subr.mxu0 0.0
          %3497 = vmatpush1.msra.mxu0 0.0
          %3498 = vmatprep.subr.mxu0 0.0
          %3499 = vmatpush1.msra.mxu0 0.0
          %3500 = vmatprep.subr.mxu0 0.0
          %3501 = vmatpush1.msra.mxu0 0.0
          %3502 = vmatprep.subr.mxu0 0.0
          %3503 = vmatpush1.msra.mxu0 0.0
          %3504 = vmatprep.subr.mxu0 0.0
          %3505 = vmatpush1.msra.mxu0 0.0
          %3506 = vmatprep.mubr.f32.mxu0 0.0
          %3507 = vmatmul.mubr.f32.gmra.mrb[0].mxu0 %v3419
          %v3508 = vpop.f32.mrb[0].mxu0
          %v3509 = vadd.f32 0.0, %v3508
          %v3510 = vpop.f32.mrb[0].mxu0
          %3511 = vmatprep.mubr.f32.mxu0 0.0
          %3512 = vmatmul.mubr.f32.gmra.mrb[0].mxu0 %v3422
          %v3513 = vpop.f32.mrb[0].mxu0
          %v3514 = vadd.f32 0.0, %v3513
          %v3515 = vpop.f32.mrb[0].mxu0
          %3516 = vmatprep.mubr.f32.mxu0 0.0
          %3517 = vmatmul.mubr.f32.gmra.mrb[0].mxu0 %v3425
          %v3518 = vpop.f32.mrb[0].mxu0
          %v3519 = vadd.f32 0.0, %v3518
          %v3520 = vpop.f32.mrb[0].mxu0
          %3521 = vmatprep.mubr.f32.mxu0 0.0
          %3522 = vmatmul.mubr.f32.gmra.mrb[0].mxu0 %v3428
          %v3523 = vpop.f32.mrb[0].mxu0
          %v3524 = vadd.f32 0.0, %v3523
          %v3525 = vpop.f32.mrb[0].mxu0
          %3526 = vmatprep.mubr.f32.mxu0 0.0
          %3527 = vmatmul.mubr.f32.gmra.mrb[0].mxu0 %v3431
          %v3528 = vpop.f32.mrb[0].mxu0
          %v3529 = vadd.f32 0.0, %v3528
          %v3530 = vpop.f32.mrb[0].mxu0
          %3531 = vmatprep.mubr.f32.mxu0 0.0
          %3532 = vmatmul.mubr.f32.gmra.mrb[0].mxu0 %v3434
          %v3533 = vpop.f32.mrb[0].mxu0
          %v3534 = vadd.f32 0.0, %v3533
          %v3535 = vpop.f32.mrb[0].mxu0
          %3536 = vmatprep.mubr.f32.mxu0 0.0
          %3537 = vmatmul.mubr.f32.gmra.mrb[0].mxu0 %v3437
          %v3538 = vpop.f32.mrb[0].mxu0
          %v3539 = vadd.f32 0.0, %v3538
          %v3540 = vpop.f32.mrb[0].mxu0
          %3541 = vmatprep.mubr.f32.mxu0 0.0
          %3542 = vmatmul.mubr.f32.gmra.mrb[0].mxu0 %v3440
          %v3543 = vpop.f32.mrb[0].mxu0
          %v3544 = vadd.f32 0.0, %v3543
          %v3545 = vpop.f32.mrb[0].mxu0
          %3546 = vdwg.mxu0
          %v3547 = vadd.f32 %v3110, %v3509
          %v3548 = vadd.f32 %v3115, %v3514
          %v3549 = vadd.f32 %v3120, %v3519
          %v3550 = vadd.f32 %v3125, %v3524
          %v3551 = vadd.f32 %v3130, %v3529
          %v3552 = vadd.f32 %v3135, %v3534
          %v3553 = vadd.f32 %v3140, %v3539
          %v3554 = vadd.f32 %v3145, %v3544
          %s3555 = scalar_lea.vmem [#allocation18], 4
          %v3556 = vld [vmem:[%s3555] sm:$0xf]
          %3565 = vrot.lane.b32.xlu0 %v3400, 124
          %v3566 = vpop.permute.xlu0 %3565
          %3567 = vrot.lane.b32.xlu0 %v3401, 124
          %v3568 = vpop.permute.xlu0 %3567
          %3569 = vrot.lane.b32.xlu0 %v3402, 124
          %v3570 = vpop.permute.xlu0 %3569
          %3571 = vrot.lane.b32.xlu0 %v3403, 124
          %v3572 = vpop.permute.xlu0 %3571
          %3573 = vrot.lane.b32.xlu0 %v3404, 124
          %v3574 = vpop.permute.xlu0 %3573
          %3575 = vrot.lane.b32.xlu0 %v3405, 124
          %v3576 = vpop.permute.xlu0 %3575
          %3577 = vrot.lane.b32.xlu0 %v3406, 124
          %v3578 = vpop.permute.xlu0 %3577
          %3579 = vrot.lane.b32.xlu0 %v3407, 124
          %v3580 = vpop.permute.xlu0 %3579
          %v3581 = vsel %vm815, %v3566, 0
          %v3583 = vsel %vm815, %v3568, 0
          %v3585 = vsel %vm815, %v3570, 0
          %v3587 = vsel %vm815, %v3572, 0
          %v3589 = vsel %vm815, %v3574, 0
          %v3591 = vsel %vm815, %v3576, 0
          %v3593 = vsel %vm815, %v3578, 0
          %v3595 = vsel %vm815, %v3580, 0
          %v3598 = vsel %vm2910, %v3556, 0
          %3600 = vmatprep.subr.mxu0 0.0
          %3601 = vmatpush1.msra.mxu0 %v3598
          %3602 = vmatprep.subr.mxu0 0.0
          %3603 = vmatpush1.msra.mxu0 0.0
          %3604 = vmatprep.subr.mxu0 0.0
          %3605 = vmatpush1.msra.mxu0 0.0
          %3606 = vmatprep.subr.mxu0 0.0
          %3607 = vmatpush1.msra.mxu0 0.0
          %3608 = vmatprep.subr.mxu0 0.0
          %3609 = vmatpush1.msra.mxu0 0.0
          %3610 = vmatprep.subr.mxu0 0.0
          %3611 = vmatpush1.msra.mxu0 0.0
          %3612 = vmatprep.subr.mxu0 0.0
          %3613 = vmatpush1.msra.mxu0 0.0
          %3614 = vmatprep.subr.mxu0 0.0
          %3615 = vmatpush1.msra.mxu0 0.0
          %3616 = vmatprep.subr.mxu0 0.0
          %3617 = vmatpush1.msra.mxu0 0.0
          %3618 = vmatprep.subr.mxu0 0.0
          %3619 = vmatpush1.msra.mxu0 0.0
          %3620 = vmatprep.subr.mxu0 0.0
          %3621 = vmatpush1.msra.mxu0 0.0
          %3622 = vmatprep.subr.mxu0 0.0
          %3623 = vmatpush1.msra.mxu0 0.0
          %3624 = vmatprep.subr.mxu0 0.0
          %3625 = vmatpush1.msra.mxu0 0.0
          %3626 = vmatprep.subr.mxu0 0.0
          %3627 = vmatpush1.msra.mxu0 0.0
          %3628 = vmatprep.subr.mxu0 0.0
          %3629 = vmatpush1.msra.mxu0 0.0
          %3630 = vmatprep.subr.mxu0 0.0
          %3631 = vmatpush1.msra.mxu0 0.0
          %3632 = vmatprep.subr.mxu0 0.0
          %3633 = vmatpush1.msra.mxu0 0.0
          %3634 = vmatprep.subr.mxu0 0.0
          %3635 = vmatpush1.msra.mxu0 0.0
          %3636 = vmatprep.subr.mxu0 0.0
          %3637 = vmatpush1.msra.mxu0 0.0
          %3638 = vmatprep.subr.mxu0 0.0
          %3639 = vmatpush1.msra.mxu0 0.0
          %3640 = vmatprep.subr.mxu0 0.0
          %3641 = vmatpush1.msra.mxu0 0.0
          %3642 = vmatprep.subr.mxu0 0.0
          %3643 = vmatpush1.msra.mxu0 0.0
          %3644 = vmatprep.subr.mxu0 0.0
          %3645 = vmatpush1.msra.mxu0 0.0
          %3646 = vmatprep.subr.mxu0 0.0
          %3647 = vmatpush1.msra.mxu0 0.0
          %3648 = vmatprep.subr.mxu0 0.0
          %3649 = vmatpush1.msra.mxu0 0.0
          %3650 = vmatprep.subr.mxu0 0.0
          %3651 = vmatpush1.msra.mxu0 0.0
          %3652 = vmatprep.subr.mxu0 0.0
          %3653 = vmatpush1.msra.mxu0 0.0
          %3654 = vmatprep.subr.mxu0 0.0
          %3655 = vmatpush1.msra.mxu0 0.0
          %3656 = vmatprep.subr.mxu0 0.0
          %3657 = vmatpush1.msra.mxu0 0.0
          %3658 = vmatprep.subr.mxu0 0.0
          %3659 = vmatpush1.msra.mxu0 0.0
          %3660 = vmatprep.subr.mxu0 0.0
          %3661 = vmatpush1.msra.mxu0 0.0
          %3662 = vmatprep.subr.mxu0 0.0
          %3663 = vmatpush1.msra.mxu0 0.0
          %3664 = vmatprep.mubr.f32.mxu0 0.0
          %3665 = vmatmul.mubr.f32.gmra.mrb[0].mxu0 %v3581
          %v3666 = vpop.f32.mrb[0].mxu0
          %v3667 = vadd.f32 0.0, %v3666
          %v3668 = vpop.f32.mrb[0].mxu0
          %3669 = vmatprep.mubr.f32.mxu0 0.0
          %3670 = vmatmul.mubr.f32.gmra.mrb[0].mxu0 %v3583
          %v3671 = vpop.f32.mrb[0].mxu0
          %v3672 = vadd.f32 0.0, %v3671
          %v3673 = vpop.f32.mrb[0].mxu0
          %3674 = vmatprep.mubr.f32.mxu0 0.0
          %3675 = vmatmul.mubr.f32.gmra.mrb[0].mxu0 %v3585
          %v3676 = vpop.f32.mrb[0].mxu0
          %v3677 = vadd.f32 0.0, %v3676
          %v3678 = vpop.f32.mrb[0].mxu0
          %3679 = vmatprep.mubr.f32.mxu0 0.0
          %3680 = vmatmul.mubr.f32.gmra.mrb[0].mxu0 %v3587
          %v3681 = vpop.f32.mrb[0].mxu0
          %v3682 = vadd.f32 0.0, %v3681
          %v3683 = vpop.f32.mrb[0].mxu0
          %3684 = vmatprep.mubr.f32.mxu0 0.0
          %3685 = vmatmul.mubr.f32.gmra.mrb[0].mxu0 %v3589
          %v3686 = vpop.f32.mrb[0].mxu0
          %v3687 = vadd.f32 0.0, %v3686
          %v3688 = vpop.f32.mrb[0].mxu0
          %3689 = vmatprep.mubr.f32.mxu0 0.0
          %3690 = vmatmul.mubr.f32.gmra.mrb[0].mxu0 %v3591
          %v3691 = vpop.f32.mrb[0].mxu0
          %v3692 = vadd.f32 0.0, %v3691
          %v3693 = vpop.f32.mrb[0].mxu0
          %3694 = vmatprep.mubr.f32.mxu0 0.0
          %3695 = vmatmul.mubr.f32.gmra.mrb[0].mxu0 %v3593
          %v3696 = vpop.f32.mrb[0].mxu0
          %v3697 = vadd.f32 0.0, %v3696
          %v3698 = vpop.f32.mrb[0].mxu0
          %3699 = vmatprep.mubr.f32.mxu0 0.0
          %3700 = vmatmul.mubr.f32.gmra.mrb[0].mxu0 %v3595
          %v3701 = vpop.f32.mrb[0].mxu0
          %v3702 = vadd.f32 0.0, %v3701
          %v3703 = vpop.f32.mrb[0].mxu0
          %3704 = vdwg.mxu0
          %v3705 = vadd.f32 %v3547, %v3667
          %v3706 = vadd.f32 %v3548, %v3672
          %v3707 = vadd.f32 %v3549, %v3677
          %v3708 = vadd.f32 %v3550, %v3682
          %v3709 = vadd.f32 %v3551, %v3687
          %v3710 = vadd.f32 %v3552, %v3692
          %v3711 = vadd.f32 %v3553, %v3697
          %v3712 = vadd.f32 %v3554, %v3702
          %s3713 = scalar_lea.vmem [#allocation16], 32
          %v3714 = vld [vmem:[%s3713] sm:$0xff]
          %3715 = vmatprep.subr.mxu0 0.0
          %3716 = vmatpush1.msra.mxu0 %v3714
          %3717 = vmatprep.subr.mxu0 0.0
          %3718 = vmatpush1.msra.mxu0 0.0
          %3719 = vmatprep.subr.mxu0 0.0
          %3720 = vmatpush1.msra.mxu0 0.0
          %3721 = vmatprep.subr.mxu0 0.0
          %3722 = vmatpush1.msra.mxu0 0.0
          %3723 = vmatprep.subr.mxu0 0.0
          %3724 = vmatpush1.msra.mxu0 0.0
          %3725 = vmatprep.subr.mxu0 0.0
          %3726 = vmatpush1.msra.mxu0 0.0
          %3727 = vmatprep.subr.mxu0 0.0
          %3728 = vmatpush1.msra.mxu0 0.0
          %3729 = vmatprep.subr.mxu0 0.0
          %3730 = vmatpush1.msra.mxu0 0.0
          %3731 = vmatprep.subr.mxu0 0.0
          %3732 = vmatpush1.msra.mxu0 0.0
          %3733 = vmatprep.subr.mxu0 0.0
          %3734 = vmatpush1.msra.mxu0 0.0
          %3735 = vmatprep.subr.mxu0 0.0
          %3736 = vmatpush1.msra.mxu0 0.0
          %3737 = vmatprep.subr.mxu0 0.0
          %3738 = vmatpush1.msra.mxu0 0.0
          %3739 = vmatprep.subr.mxu0 0.0
          %3740 = vmatpush1.msra.mxu0 0.0
          %3741 = vmatprep.subr.mxu0 0.0
          %3742 = vmatpush1.msra.mxu0 0.0
          %3743 = vmatprep.subr.mxu0 0.0
          %3744 = vmatpush1.msra.mxu0 0.0
          %3745 = vmatprep.subr.mxu0 0.0
          %3746 = vmatpush1.msra.mxu0 0.0
          %3747 = vmatprep.subr.mxu0 0.0
          %3748 = vmatpush1.msra.mxu0 0.0
          %3749 = vmatprep.subr.mxu0 0.0
          %3750 = vmatpush1.msra.mxu0 0.0
          %3751 = vmatprep.subr.mxu0 0.0
          %3752 = vmatpush1.msra.mxu0 0.0
          %3753 = vmatprep.subr.mxu0 0.0
          %3754 = vmatpush1.msra.mxu0 0.0
          %3755 = vmatprep.subr.mxu0 0.0
          %3756 = vmatpush1.msra.mxu0 0.0
          %3757 = vmatprep.subr.mxu0 0.0
          %3758 = vmatpush1.msra.mxu0 0.0
          %3759 = vmatprep.subr.mxu0 0.0
          %3760 = vmatpush1.msra.mxu0 0.0
          %3761 = vmatprep.subr.mxu0 0.0
          %3762 = vmatpush1.msra.mxu0 0.0
          %3763 = vmatprep.subr.mxu0 0.0
          %3764 = vmatpush1.msra.mxu0 0.0
          %3765 = vmatprep.subr.mxu0 0.0
          %3766 = vmatpush1.msra.mxu0 0.0
          %3767 = vmatprep.subr.mxu0 0.0
          %3768 = vmatpush1.msra.mxu0 0.0
          %3769 = vmatprep.subr.mxu0 0.0
          %3770 = vmatpush1.msra.mxu0 0.0
          %3771 = vmatprep.subr.mxu0 0.0
          %3772 = vmatpush1.msra.mxu0 0.0
          %3773 = vmatprep.subr.mxu0 0.0
          %3774 = vmatpush1.msra.mxu0 0.0
          %3775 = vmatprep.subr.mxu0 0.0
          %3776 = vmatpush1.msra.mxu0 0.0
          %3777 = vmatprep.subr.mxu0 0.0
          %3778 = vmatpush1.msra.mxu0 0.0
          %3779 = vmatprep.mubr.f32.mxu0 0.0
          %3780 = vmatmul.mubr.f32.gmra.mrb[0].mxu0 %v3419
          %v3781 = vpop.f32.mrb[0].mxu0
          %v3782 = vadd.f32 0.0, %v3781
          %v3783 = vpop.f32.mrb[0].mxu0
          %3784 = vmatprep.mubr.f32.mxu0 0.0
          %3785 = vmatmul.mubr.f32.gmra.mrb[0].mxu0 %v3422
          %v3786 = vpop.f32.mrb[0].mxu0
          %v3787 = vadd.f32 0.0, %v3786
          %v3788 = vpop.f32.mrb[0].mxu0
          %3789 = vmatprep.mubr.f32.mxu0 0.0
          %3790 = vmatmul.mubr.f32.gmra.mrb[0].mxu0 %v3425
          %v3791 = vpop.f32.mrb[0].mxu0
          %v3792 = vadd.f32 0.0, %v3791
          %v3793 = vpop.f32.mrb[0].mxu0
          %3794 = vmatprep.mubr.f32.mxu0 0.0
          %3795 = vmatmul.mubr.f32.gmra.mrb[0].mxu0 %v3428
          %v3796 = vpop.f32.mrb[0].mxu0
          %v3797 = vadd.f32 0.0, %v3796
          %v3798 = vpop.f32.mrb[0].mxu0
          %3799 = vmatprep.mubr.f32.mxu0 0.0
          %3800 = vmatmul.mubr.f32.gmra.mrb[0].mxu0 %v3431
          %v3801 = vpop.f32.mrb[0].mxu0
          %v3802 = vadd.f32 0.0, %v3801
          %v3803 = vpop.f32.mrb[0].mxu0
          %3804 = vmatprep.mubr.f32.mxu0 0.0
          %3805 = vmatmul.mubr.f32.gmra.mrb[0].mxu0 %v3434
          %v3806 = vpop.f32.mrb[0].mxu0
          %v3807 = vadd.f32 0.0, %v3806
          %v3808 = vpop.f32.mrb[0].mxu0
          %3809 = vmatprep.mubr.f32.mxu0 0.0
          %3810 = vmatmul.mubr.f32.gmra.mrb[0].mxu0 %v3437
          %v3811 = vpop.f32.mrb[0].mxu0
          %v3812 = vadd.f32 0.0, %v3811
          %v3813 = vpop.f32.mrb[0].mxu0
          %3814 = vmatprep.mubr.f32.mxu0 0.0
          %3815 = vmatmul.mubr.f32.gmra.mrb[0].mxu0 %v3440
          %v3816 = vpop.f32.mrb[0].mxu0
          %v3817 = vadd.f32 0.0, %v3816
          %v3818 = vpop.f32.mrb[0].mxu0
          %3819 = vdwg.mxu0
          %v3820 = vadd.f32 %v3351, %v3782
          %v3821 = vadd.f32 %v3356, %v3787
          %v3822 = vadd.f32 %v3361, %v3792
          %v3823 = vadd.f32 %v3366, %v3797
          %v3824 = vadd.f32 %v3371, %v3802
          %v3825 = vadd.f32 %v3376, %v3807
          %v3826 = vadd.f32 %v3381, %v3812
          %v3827 = vadd.f32 %v3386, %v3817
          %s3828 = scalar_lea.vmem [#allocation18], 16
          %v3829 = vld [vmem:[%s3828] sm:$0xf]
          %v3831 = vsel %vm815, %v3408, 0
          %v3834 = vsel %vm815, %v3409, 0
          %v3837 = vsel %vm815, %v3410, 0
          %v3840 = vsel %vm815, %v3411, 0
          %v3843 = vsel %vm815, %v3412, 0
          %v3846 = vsel %vm815, %v3413, 0
          %v3849 = vsel %vm815, %v3414, 0
          %v3852 = vsel %vm815, %v3415, 0
          %v3855 = vsel %vm2910, %v3829, 0
          %3857 = vmatprep.subr.mxu0 0.0
          %3858 = vmatpush1.msra.mxu0 %v3855
          %3859 = vmatprep.subr.mxu0 0.0
          %3860 = vmatpush1.msra.mxu0 0.0
          %3861 = vmatprep.subr.mxu0 0.0
          %3862 = vmatpush1.msra.mxu0 0.0
          %3863 = vmatprep.subr.mxu0 0.0
          %3864 = vmatpush1.msra.mxu0 0.0
          %3865 = vmatprep.subr.mxu0 0.0
          %3866 = vmatpush1.msra.mxu0 0.0
          %3867 = vmatprep.subr.mxu0 0.0
          %3868 = vmatpush1.msra.mxu0 0.0
          %3869 = vmatprep.subr.mxu0 0.0
          %3870 = vmatpush1.msra.mxu0 0.0
          %3871 = vmatprep.subr.mxu0 0.0
          %3872 = vmatpush1.msra.mxu0 0.0
          %3873 = vmatprep.subr.mxu0 0.0
          %3874 = vmatpush1.msra.mxu0 0.0
          %3875 = vmatprep.subr.mxu0 0.0
          %3876 = vmatpush1.msra.mxu0 0.0
          %3877 = vmatprep.subr.mxu0 0.0
          %3878 = vmatpush1.msra.mxu0 0.0
          %3879 = vmatprep.subr.mxu0 0.0
          %3880 = vmatpush1.msra.mxu0 0.0
          %3881 = vmatprep.subr.mxu0 0.0
          %3882 = vmatpush1.msra.mxu0 0.0
          %3883 = vmatprep.subr.mxu0 0.0
          %3884 = vmatpush1.msra.mxu0 0.0
          %3885 = vmatprep.subr.mxu0 0.0
          %3886 = vmatpush1.msra.mxu0 0.0
          %3887 = vmatprep.subr.mxu0 0.0
          %3888 = vmatpush1.msra.mxu0 0.0
          %3889 = vmatprep.subr.mxu0 0.0
          %3890 = vmatpush1.msra.mxu0 0.0
          %3891 = vmatprep.subr.mxu0 0.0
          %3892 = vmatpush1.msra.mxu0 0.0
          %3893 = vmatprep.subr.mxu0 0.0
          %3894 = vmatpush1.msra.mxu0 0.0
          %3895 = vmatprep.subr.mxu0 0.0
          %3896 = vmatpush1.msra.mxu0 0.0
          %3897 = vmatprep.subr.mxu0 0.0
          %3898 = vmatpush1.msra.mxu0 0.0
          %3899 = vmatprep.subr.mxu0 0.0
          %3900 = vmatpush1.msra.mxu0 0.0
          %3901 = vmatprep.subr.mxu0 0.0
          %3902 = vmatpush1.msra.mxu0 0.0
          %3903 = vmatprep.subr.mxu0 0.0
          %3904 = vmatpush1.msra.mxu0 0.0
          %3905 = vmatprep.subr.mxu0 0.0
          %3906 = vmatpush1.msra.mxu0 0.0
          %3907 = vmatprep.subr.mxu0 0.0
          %3908 = vmatpush1.msra.mxu0 0.0
          %3909 = vmatprep.subr.mxu0 0.0
          %3910 = vmatpush1.msra.mxu0 0.0
          %3911 = vmatprep.subr.mxu0 0.0
          %3912 = vmatpush1.msra.mxu0 0.0
          %3913 = vmatprep.subr.mxu0 0.0
          %3914 = vmatpush1.msra.mxu0 0.0
          %3915 = vmatprep.subr.mxu0 0.0
          %3916 = vmatpush1.msra.mxu0 0.0
          %3917 = vmatprep.subr.mxu0 0.0
          %3918 = vmatpush1.msra.mxu0 0.0
          %3919 = vmatprep.subr.mxu0 0.0
          %3920 = vmatpush1.msra.mxu0 0.0
          %3921 = vmatprep.mubr.f32.mxu0 0.0
          %3922 = vmatmul.mubr.f32.gmra.mrb[0].mxu0 %v3831
          %v3923 = vpop.f32.mrb[0].mxu0
          %v3924 = vadd.f32 0.0, %v3923
          %v3925 = vpop.f32.mrb[0].mxu0
          %3926 = vmatprep.mubr.f32.mxu0 0.0
          %3927 = vmatmul.mubr.f32.gmra.mrb[0].mxu0 %v3834
          %v3928 = vpop.f32.mrb[0].mxu0
          %v3929 = vadd.f32 0.0, %v3928
          %v3930 = vpop.f32.mrb[0].mxu0
          %3931 = vmatprep.mubr.f32.mxu0 0.0
          %3932 = vmatmul.mubr.f32.gmra.mrb[0].mxu0 %v3837
          %v3933 = vpop.f32.mrb[0].mxu0
          %v3934 = vadd.f32 0.0, %v3933
          %v3935 = vpop.f32.mrb[0].mxu0
          %3936 = vmatprep.mubr.f32.mxu0 0.0
          %3937 = vmatmul.mubr.f32.gmra.mrb[0].mxu0 %v3840
          %v3938 = vpop.f32.mrb[0].mxu0
          %v3939 = vadd.f32 0.0, %v3938
          %v3940 = vpop.f32.mrb[0].mxu0
          %3941 = vmatprep.mubr.f32.mxu0 0.0
          %3942 = vmatmul.mubr.f32.gmra.mrb[0].mxu0 %v3843
          %v3943 = vpop.f32.mrb[0].mxu0
          %v3944 = vadd.f32 0.0, %v3943
          %v3945 = vpop.f32.mrb[0].mxu0
          %3946 = vmatprep.mubr.f32.mxu0 0.0
          %3947 = vmatmul.mubr.f32.gmra.mrb[0].mxu0 %v3846
          %v3948 = vpop.f32.mrb[0].mxu0
          %v3949 = vadd.f32 0.0, %v3948
          %v3950 = vpop.f32.mrb[0].mxu0
          %3951 = vmatprep.mubr.f32.mxu0 0.0
          %3952 = vmatmul.mubr.f32.gmra.mrb[0].mxu0 %v3849
          %v3953 = vpop.f32.mrb[0].mxu0
          %v3954 = vadd.f32 0.0, %v3953
          %v3955 = vpop.f32.mrb[0].mxu0
          %3956 = vmatprep.mubr.f32.mxu0 0.0
          %3957 = vmatmul.mubr.f32.gmra.mrb[0].mxu0 %v3852
          %v3958 = vpop.f32.mrb[0].mxu0
          %v3959 = vadd.f32 0.0, %v3958
          %v3960 = vpop.f32.mrb[0].mxu0
          %3961 = vdwg.mxu0
          %v3962 = vadd.f32 %v3820, %v3924
          %v3963 = vadd.f32 %v3821, %v3929
          %v3964 = vadd.f32 %v3822, %v3934
          %v3965 = vadd.f32 %v3823, %v3939
          %v3966 = vadd.f32 %v3824, %v3944
          %v3967 = vadd.f32 %v3825, %v3949
          %v3968 = vadd.f32 %v3826, %v3954
          %v3969 = vadd.f32 %v3827, %v3959
          %s3970 = sadd.s32 %s2840, 2
          %s3971 = smul.u32 %s3970, 24
          %s3972 = scalar_lea.vmem [#allocation3], %s3971
          %v3973 = vld [vmem:[%s3972 + $0x8] sm:$0xff]
          %v3974 = vld [vmem:[%s3972 + $0x20] sm:$0xff]
          %v3975 = vld [vmem:[%s3972 + $0x38] sm:$0xff]
          %v3976 = vld [vmem:[%s3972 + $0x50] sm:$0xff]
          %v3977 = vld [vmem:[%s3972 + $0x68] sm:$0xff]
          %v3978 = vld [vmem:[%s3972 + $0x80] sm:$0xff]
          %v3979 = vld [vmem:[%s3972 + $0x98] sm:$0xff]
          %v3980 = vld [vmem:[%s3972 + $0xb0] sm:$0xff]
          %v3981 = vld [vmem:[%s3972 + $0x7] sm:$0xff]
          %v3982 = vld [vmem:[%s3972 + $0x1f] sm:$0xff]
          %v3983 = vld [vmem:[%s3972 + $0x37] sm:$0xff]
          %v3984 = vld [vmem:[%s3972 + $0x4f] sm:$0xff]
          %v3985 = vld [vmem:[%s3972 + $0x67] sm:$0xff]
          %v3986 = vld [vmem:[%s3972 + $0x7f] sm:$0xff]
          %v3987 = vld [vmem:[%s3972 + $0x97] sm:$0xff]
          %v3988 = vld [vmem:[%s3972 + $0xaf] sm:$0xff]
          %v3989 = vld [vmem:[%s3972 + $0x9] sm:$0xff]
          %v3990 = vld [vmem:[%s3972 + $0x21] sm:$0xff]
          %v3991 = vld [vmem:[%s3972 + $0x39] sm:$0xff]
          %v3992 = vld [vmem:[%s3972 + $0x51] sm:$0xff]
          %v3993 = vld [vmem:[%s3972 + $0x69] sm:$0xff]
          %v3994 = vld [vmem:[%s3972 + $0x81] sm:$0xff]
          %v3995 = vld [vmem:[%s3972 + $0x99] sm:$0xff]
          %v3996 = vld [vmem:[%s3972 + $0xb1] sm:$0xff]
          %s3997 = scalar_lea.vmem [#allocation16], 16
          %v3998 = vld [vmem:[%s3997] sm:$0xff]
          %v4000 = vsel %vm570, %v3973, 0
          %v4003 = vsel %vm570, %v3974, 0
          %v4006 = vsel %vm570, %v3975, 0
          %v4009 = vsel %vm570, %v3976, 0
          %v4012 = vsel %vm570, %v3977, 0
          %v4015 = vsel %vm570, %v3978, 0
          %v4018 = vsel %vm570, %v3979, 0
          %v4021 = vsel %vm570, %v3980, 0
          %4023 = vmatprep.subr.mxu0 0.0
          %4024 = vmatpush1.msra.mxu0 %v3998
          %4025 = vmatprep.subr.mxu0 0.0
          %4026 = vmatpush1.msra.mxu0 0.0
          %4027 = vmatprep.subr.mxu0 0.0
          %4028 = vmatpush1.msra.mxu0 0.0
          %4029 = vmatprep.subr.mxu0 0.0
          %4030 = vmatpush1.msra.mxu0 0.0
          %4031 = vmatprep.subr.mxu0 0.0
          %4032 = vmatpush1.msra.mxu0 0.0
          %4033 = vmatprep.subr.mxu0 0.0
          %4034 = vmatpush1.msra.mxu0 0.0
          %4035 = vmatprep.subr.mxu0 0.0
          %4036 = vmatpush1.msra.mxu0 0.0
          %4037 = vmatprep.subr.mxu0 0.0
          %4038 = vmatpush1.msra.mxu0 0.0
          %4039 = vmatprep.subr.mxu0 0.0
          %4040 = vmatpush1.msra.mxu0 0.0
          %4041 = vmatprep.subr.mxu0 0.0
          %4042 = vmatpush1.msra.mxu0 0.0
          %4043 = vmatprep.subr.mxu0 0.0
          %4044 = vmatpush1.msra.mxu0 0.0
          %4045 = vmatprep.subr.mxu0 0.0
          %4046 = vmatpush1.msra.mxu0 0.0
          %4047 = vmatprep.subr.mxu0 0.0
          %4048 = vmatpush1.msra.mxu0 0.0
          %4049 = vmatprep.subr.mxu0 0.0
          %4050 = vmatpush1.msra.mxu0 0.0
          %4051 = vmatprep.subr.mxu0 0.0
          %4052 = vmatpush1.msra.mxu0 0.0
          %4053 = vmatprep.subr.mxu0 0.0
          %4054 = vmatpush1.msra.mxu0 0.0
          %4055 = vmatprep.subr.mxu0 0.0
          %4056 = vmatpush1.msra.mxu0 0.0
          %4057 = vmatprep.subr.mxu0 0.0
          %4058 = vmatpush1.msra.mxu0 0.0
          %4059 = vmatprep.subr.mxu0 0.0
          %4060 = vmatpush1.msra.mxu0 0.0
          %4061 = vmatprep.subr.mxu0 0.0
          %4062 = vmatpush1.msra.mxu0 0.0
          %4063 = vmatprep.subr.mxu0 0.0
          %4064 = vmatpush1.msra.mxu0 0.0
          %4065 = vmatprep.subr.mxu0 0.0
          %4066 = vmatpush1.msra.mxu0 0.0
          %4067 = vmatprep.subr.mxu0 0.0
          %4068 = vmatpush1.msra.mxu0 0.0
          %4069 = vmatprep.subr.mxu0 0.0
          %4070 = vmatpush1.msra.mxu0 0.0
          %4071 = vmatprep.subr.mxu0 0.0
          %4072 = vmatpush1.msra.mxu0 0.0
          %4073 = vmatprep.subr.mxu0 0.0
          %4074 = vmatpush1.msra.mxu0 0.0
          %4075 = vmatprep.subr.mxu0 0.0
          %4076 = vmatpush1.msra.mxu0 0.0
          %4077 = vmatprep.subr.mxu0 0.0
          %4078 = vmatpush1.msra.mxu0 0.0
          %4079 = vmatprep.subr.mxu0 0.0
          %4080 = vmatpush1.msra.mxu0 0.0
          %4081 = vmatprep.subr.mxu0 0.0
          %4082 = vmatpush1.msra.mxu0 0.0
          %4083 = vmatprep.subr.mxu0 0.0
          %4084 = vmatpush1.msra.mxu0 0.0
          %4085 = vmatprep.subr.mxu0 0.0
          %4086 = vmatpush1.msra.mxu0 0.0
          %4087 = vmatprep.mubr.f32.mxu0 0.0
          %4088 = vmatmul.mubr.f32.gmra.mrb[0].mxu0 %v4000
          %v4089 = vpop.f32.mrb[0].mxu0
          %v4090 = vadd.f32 0.0, %v4089
          %v4091 = vpop.f32.mrb[0].mxu0
          %4092 = vmatprep.mubr.f32.mxu0 0.0
          %4093 = vmatmul.mubr.f32.gmra.mrb[0].mxu0 %v4003
          %v4094 = vpop.f32.mrb[0].mxu0
          %v4095 = vadd.f32 0.0, %v4094
          %v4096 = vpop.f32.mrb[0].mxu0
          %4097 = vmatprep.mubr.f32.mxu0 0.0
          %4098 = vmatmul.mubr.f32.gmra.mrb[0].mxu0 %v4006
          %v4099 = vpop.f32.mrb[0].mxu0
          %v4100 = vadd.f32 0.0, %v4099
          %v4101 = vpop.f32.mrb[0].mxu0
          %4102 = vmatprep.mubr.f32.mxu0 0.0
          %4103 = vmatmul.mubr.f32.gmra.mrb[0].mxu0 %v4009
          %v4104 = vpop.f32.mrb[0].mxu0
          %v4105 = vadd.f32 0.0, %v4104
          %v4106 = vpop.f32.mrb[0].mxu0
          %4107 = vmatprep.mubr.f32.mxu0 0.0
          %4108 = vmatmul.mubr.f32.gmra.mrb[0].mxu0 %v4012
          %v4109 = vpop.f32.mrb[0].mxu0
          %v4110 = vadd.f32 0.0, %v4109
          %v4111 = vpop.f32.mrb[0].mxu0
          %4112 = vmatprep.mubr.f32.mxu0 0.0
          %4113 = vmatmul.mubr.f32.gmra.mrb[0].mxu0 %v4015
          %v4114 = vpop.f32.mrb[0].mxu0
          %v4115 = vadd.f32 0.0, %v4114
          %v4116 = vpop.f32.mrb[0].mxu0
          %4117 = vmatprep.mubr.f32.mxu0 0.0
          %4118 = vmatmul.mubr.f32.gmra.mrb[0].mxu0 %v4018
          %v4119 = vpop.f32.mrb[0].mxu0
          %v4120 = vadd.f32 0.0, %v4119
          %v4121 = vpop.f32.mrb[0].mxu0
          %4122 = vmatprep.mubr.f32.mxu0 0.0
          %4123 = vmatmul.mubr.f32.gmra.mrb[0].mxu0 %v4021
          %v4124 = vpop.f32.mrb[0].mxu0
          %v4125 = vadd.f32 0.0, %v4124
          %v4126 = vpop.f32.mrb[0].mxu0
          %4127 = vdwg.mxu0
          %v4128 = vadd.f32 %v3705, %v4090
          %v4129 = vadd.f32 %v3706, %v4095
          %v4130 = vadd.f32 %v3707, %v4100
          %v4131 = vadd.f32 %v3708, %v4105
          %v4132 = vadd.f32 %v3709, %v4110
          %v4133 = vadd.f32 %v3710, %v4115
          %v4134 = vadd.f32 %v3711, %v4120
          %v4135 = vadd.f32 %v3712, %v4125
          %s4136 = scalar_lea.vmem [#allocation18], 8
          %v4137 = vld [vmem:[%s4136] sm:$0xf]
          %4146 = vrot.lane.b32.xlu0 %v3981, 124
          %v4147 = vpop.permute.xlu0 %4146
          %4148 = vrot.lane.b32.xlu0 %v3982, 124
          %v4149 = vpop.permute.xlu0 %4148
          %4150 = vrot.lane.b32.xlu0 %v3983, 124
          %v4151 = vpop.permute.xlu0 %4150
          %4152 = vrot.lane.b32.xlu0 %v3984, 124
          %v4153 = vpop.permute.xlu0 %4152
          %4154 = vrot.lane.b32.xlu0 %v3985, 124
          %v4155 = vpop.permute.xlu0 %4154
          %4156 = vrot.lane.b32.xlu0 %v3986, 124
          %v4157 = vpop.permute.xlu0 %4156
          %4158 = vrot.lane.b32.xlu0 %v3987, 124
          %v4159 = vpop.permute.xlu0 %4158
          %4160 = vrot.lane.b32.xlu0 %v3988, 124
          %v4161 = vpop.permute.xlu0 %4160
          %v4162 = vsel %vm815, %v4147, 0
          %v4164 = vsel %vm815, %v4149, 0
          %v4166 = vsel %vm815, %v4151, 0
          %v4168 = vsel %vm815, %v4153, 0
          %v4170 = vsel %vm815, %v4155, 0
          %v4172 = vsel %vm815, %v4157, 0
          %v4174 = vsel %vm815, %v4159, 0
          %v4176 = vsel %vm815, %v4161, 0
          %v4179 = vsel %vm2910, %v4137, 0
          %4181 = vmatprep.subr.mxu0 0.0
          %4182 = vmatpush1.msra.mxu0 %v4179
          %4183 = vmatprep.subr.mxu0 0.0
          %4184 = vmatpush1.msra.mxu0 0.0
          %4185 = vmatprep.subr.mxu0 0.0
          %4186 = vmatpush1.msra.mxu0 0.0
          %4187 = vmatprep.subr.mxu0 0.0
          %4188 = vmatpush1.msra.mxu0 0.0
          %4189 = vmatprep.subr.mxu0 0.0
          %4190 = vmatpush1.msra.mxu0 0.0
          %4191 = vmatprep.subr.mxu0 0.0
          %4192 = vmatpush1.msra.mxu0 0.0
          %4193 = vmatprep.subr.mxu0 0.0
          %4194 = vmatpush1.msra.mxu0 0.0
          %4195 = vmatprep.subr.mxu0 0.0
          %4196 = vmatpush1.msra.mxu0 0.0
          %4197 = vmatprep.subr.mxu0 0.0
          %4198 = vmatpush1.msra.mxu0 0.0
          %4199 = vmatprep.subr.mxu0 0.0
          %4200 = vmatpush1.msra.mxu0 0.0
          %4201 = vmatprep.subr.mxu0 0.0
          %4202 = vmatpush1.msra.mxu0 0.0
          %4203 = vmatprep.subr.mxu0 0.0
          %4204 = vmatpush1.msra.mxu0 0.0
          %4205 = vmatprep.subr.mxu0 0.0
          %4206 = vmatpush1.msra.mxu0 0.0
          %4207 = vmatprep.subr.mxu0 0.0
          %4208 = vmatpush1.msra.mxu0 0.0
          %4209 = vmatprep.subr.mxu0 0.0
          %4210 = vmatpush1.msra.mxu0 0.0
          %4211 = vmatprep.subr.mxu0 0.0
          %4212 = vmatpush1.msra.mxu0 0.0
          %4213 = vmatprep.subr.mxu0 0.0
          %4214 = vmatpush1.msra.mxu0 0.0
          %4215 = vmatprep.subr.mxu0 0.0
          %4216 = vmatpush1.msra.mxu0 0.0
          %4217 = vmatprep.subr.mxu0 0.0
          %4218 = vmatpush1.msra.mxu0 0.0
          %4219 = vmatprep.subr.mxu0 0.0
          %4220 = vmatpush1.msra.mxu0 0.0
          %4221 = vmatprep.subr.mxu0 0.0
          %4222 = vmatpush1.msra.mxu0 0.0
          %4223 = vmatprep.subr.mxu0 0.0
          %4224 = vmatpush1.msra.mxu0 0.0
          %4225 = vmatprep.subr.mxu0 0.0
          %4226 = vmatpush1.msra.mxu0 0.0
          %4227 = vmatprep.subr.mxu0 0.0
          %4228 = vmatpush1.msra.mxu0 0.0
          %4229 = vmatprep.subr.mxu0 0.0
          %4230 = vmatpush1.msra.mxu0 0.0
          %4231 = vmatprep.subr.mxu0 0.0
          %4232 = vmatpush1.msra.mxu0 0.0
          %4233 = vmatprep.subr.mxu0 0.0
          %4234 = vmatpush1.msra.mxu0 0.0
          %4235 = vmatprep.subr.mxu0 0.0
          %4236 = vmatpush1.msra.mxu0 0.0
          %4237 = vmatprep.subr.mxu0 0.0
          %4238 = vmatpush1.msra.mxu0 0.0
          %4239 = vmatprep.subr.mxu0 0.0
          %4240 = vmatpush1.msra.mxu0 0.0
          %4241 = vmatprep.subr.mxu0 0.0
          %4242 = vmatpush1.msra.mxu0 0.0
          %4243 = vmatprep.subr.mxu0 0.0
          %4244 = vmatpush1.msra.mxu0 0.0
          %4245 = vmatprep.mubr.f32.mxu0 0.0
          %4246 = vmatmul.mubr.f32.gmra.mrb[0].mxu0 %v4162
          %v4247 = vpop.f32.mrb[0].mxu0
          %v4248 = vadd.f32 0.0, %v4247
          %v4249 = vpop.f32.mrb[0].mxu0
          %4250 = vmatprep.mubr.f32.mxu0 0.0
          %4251 = vmatmul.mubr.f32.gmra.mrb[0].mxu0 %v4164
          %v4252 = vpop.f32.mrb[0].mxu0
          %v4253 = vadd.f32 0.0, %v4252
          %v4254 = vpop.f32.mrb[0].mxu0
          %4255 = vmatprep.mubr.f32.mxu0 0.0
          %4256 = vmatmul.mubr.f32.gmra.mrb[0].mxu0 %v4166
          %v4257 = vpop.f32.mrb[0].mxu0
          %v4258 = vadd.f32 0.0, %v4257
          %v4259 = vpop.f32.mrb[0].mxu0
          %4260 = vmatprep.mubr.f32.mxu0 0.0
          %4261 = vmatmul.mubr.f32.gmra.mrb[0].mxu0 %v4168
          %v4262 = vpop.f32.mrb[0].mxu0
          %v4263 = vadd.f32 0.0, %v4262
          %v4264 = vpop.f32.mrb[0].mxu0
          %4265 = vmatprep.mubr.f32.mxu0 0.0
          %4266 = vmatmul.mubr.f32.gmra.mrb[0].mxu0 %v4170
          %v4267 = vpop.f32.mrb[0].mxu0
          %v4268 = vadd.f32 0.0, %v4267
          %v4269 = vpop.f32.mrb[0].mxu0
          %4270 = vmatprep.mubr.f32.mxu0 0.0
          %4271 = vmatmul.mubr.f32.gmra.mrb[0].mxu0 %v4172
          %v4272 = vpop.f32.mrb[0].mxu0
          %v4273 = vadd.f32 0.0, %v4272
          %v4274 = vpop.f32.mrb[0].mxu0
          %4275 = vmatprep.mubr.f32.mxu0 0.0
          %4276 = vmatmul.mubr.f32.gmra.mrb[0].mxu0 %v4174
          %v4277 = vpop.f32.mrb[0].mxu0
          %v4278 = vadd.f32 0.0, %v4277
          %v4279 = vpop.f32.mrb[0].mxu0
          %4280 = vmatprep.mubr.f32.mxu0 0.0
          %4281 = vmatmul.mubr.f32.gmra.mrb[0].mxu0 %v4176
          %v4282 = vpop.f32.mrb[0].mxu0
          %v4283 = vadd.f32 0.0, %v4282
          %v4284 = vpop.f32.mrb[0].mxu0
          %4285 = vdwg.mxu0
          %v4286 = vadd.f32 %v4128, %v4248
          %v4287 = vadd.f32 %v4129, %v4253
          %v4288 = vadd.f32 %v4130, %v4258
          %v4289 = vadd.f32 %v4131, %v4263
          %v4290 = vadd.f32 %v4132, %v4268
          %v4291 = vadd.f32 %v4133, %v4273
          %v4292 = vadd.f32 %v4134, %v4278
          %v4293 = vadd.f32 %v4135, %v4283
          %s4294 = scalar_lea.vmem [#allocation16], 40
          %v4295 = vld [vmem:[%s4294] sm:$0xff]
          %4296 = vmatprep.subr.mxu0 0.0
          %4297 = vmatpush1.msra.mxu0 %v4295
          %4298 = vmatprep.subr.mxu0 0.0
          %4299 = vmatpush1.msra.mxu0 0.0
          %4300 = vmatprep.subr.mxu0 0.0
          %4301 = vmatpush1.msra.mxu0 0.0
          %4302 = vmatprep.subr.mxu0 0.0
          %4303 = vmatpush1.msra.mxu0 0.0
          %4304 = vmatprep.subr.mxu0 0.0
          %4305 = vmatpush1.msra.mxu0 0.0
          %4306 = vmatprep.subr.mxu0 0.0
          %4307 = vmatpush1.msra.mxu0 0.0
          %4308 = vmatprep.subr.mxu0 0.0
          %4309 = vmatpush1.msra.mxu0 0.0
          %4310 = vmatprep.subr.mxu0 0.0
          %4311 = vmatpush1.msra.mxu0 0.0
          %4312 = vmatprep.subr.mxu0 0.0
          %4313 = vmatpush1.msra.mxu0 0.0
          %4314 = vmatprep.subr.mxu0 0.0
          %4315 = vmatpush1.msra.mxu0 0.0
          %4316 = vmatprep.subr.mxu0 0.0
          %4317 = vmatpush1.msra.mxu0 0.0
          %4318 = vmatprep.subr.mxu0 0.0
          %4319 = vmatpush1.msra.mxu0 0.0
          %4320 = vmatprep.subr.mxu0 0.0
          %4321 = vmatpush1.msra.mxu0 0.0
          %4322 = vmatprep.subr.mxu0 0.0
          %4323 = vmatpush1.msra.mxu0 0.0
          %4324 = vmatprep.subr.mxu0 0.0
          %4325 = vmatpush1.msra.mxu0 0.0
          %4326 = vmatprep.subr.mxu0 0.0
          %4327 = vmatpush1.msra.mxu0 0.0
          %4328 = vmatprep.subr.mxu0 0.0
          %4329 = vmatpush1.msra.mxu0 0.0
          %4330 = vmatprep.subr.mxu0 0.0
          %4331 = vmatpush1.msra.mxu0 0.0
          %4332 = vmatprep.subr.mxu0 0.0
          %4333 = vmatpush1.msra.mxu0 0.0
          %4334 = vmatprep.subr.mxu0 0.0
          %4335 = vmatpush1.msra.mxu0 0.0
          %4336 = vmatprep.subr.mxu0 0.0
          %4337 = vmatpush1.msra.mxu0 0.0
          %4338 = vmatprep.subr.mxu0 0.0
          %4339 = vmatpush1.msra.mxu0 0.0
          %4340 = vmatprep.subr.mxu0 0.0
          %4341 = vmatpush1.msra.mxu0 0.0
          %4342 = vmatprep.subr.mxu0 0.0
          %4343 = vmatpush1.msra.mxu0 0.0
          %4344 = vmatprep.subr.mxu0 0.0
          %4345 = vmatpush1.msra.mxu0 0.0
          %4346 = vmatprep.subr.mxu0 0.0
          %4347 = vmatpush1.msra.mxu0 0.0
          %4348 = vmatprep.subr.mxu0 0.0
          %4349 = vmatpush1.msra.mxu0 0.0
          %4350 = vmatprep.subr.mxu0 0.0
          %4351 = vmatpush1.msra.mxu0 0.0
          %4352 = vmatprep.subr.mxu0 0.0
          %4353 = vmatpush1.msra.mxu0 0.0
          %4354 = vmatprep.subr.mxu0 0.0
          %4355 = vmatpush1.msra.mxu0 0.0
          %4356 = vmatprep.subr.mxu0 0.0
          %4357 = vmatpush1.msra.mxu0 0.0
          %4358 = vmatprep.subr.mxu0 0.0
          %4359 = vmatpush1.msra.mxu0 0.0
          %4360 = vmatprep.mubr.f32.mxu0 0.0
          %4361 = vmatmul.mubr.f32.gmra.mrb[0].mxu0 %v4000
          %v4362 = vpop.f32.mrb[0].mxu0
          %v4363 = vadd.f32 0.0, %v4362
          %v4364 = vpop.f32.mrb[0].mxu0
          %4365 = vmatprep.mubr.f32.mxu0 0.0
          %4366 = vmatmul.mubr.f32.gmra.mrb[0].mxu0 %v4003
          %v4367 = vpop.f32.mrb[0].mxu0
          %v4368 = vadd.f32 0.0, %v4367
          %v4369 = vpop.f32.mrb[0].mxu0
          %4370 = vmatprep.mubr.f32.mxu0 0.0
          %4371 = vmatmul.mubr.f32.gmra.mrb[0].mxu0 %v4006
          %v4372 = vpop.f32.mrb[0].mxu0
          %v4373 = vadd.f32 0.0, %v4372
          %v4374 = vpop.f32.mrb[0].mxu0
          %4375 = vmatprep.mubr.f32.mxu0 0.0
          %4376 = vmatmul.mubr.f32.gmra.mrb[0].mxu0 %v4009
          %v4377 = vpop.f32.mrb[0].mxu0
          %v4378 = vadd.f32 0.0, %v4377
          %v4379 = vpop.f32.mrb[0].mxu0
          %4380 = vmatprep.mubr.f32.mxu0 0.0
          %4381 = vmatmul.mubr.f32.gmra.mrb[0].mxu0 %v4012
          %v4382 = vpop.f32.mrb[0].mxu0
          %v4383 = vadd.f32 0.0, %v4382
          %v4384 = vpop.f32.mrb[0].mxu0
          %4385 = vmatprep.mubr.f32.mxu0 0.0
          %4386 = vmatmul.mubr.f32.gmra.mrb[0].mxu0 %v4015
          %v4387 = vpop.f32.mrb[0].mxu0
          %v4388 = vadd.f32 0.0, %v4387
          %v4389 = vpop.f32.mrb[0].mxu0
          %4390 = vmatprep.mubr.f32.mxu0 0.0
          %4391 = vmatmul.mubr.f32.gmra.mrb[0].mxu0 %v4018
          %v4392 = vpop.f32.mrb[0].mxu0
          %v4393 = vadd.f32 0.0, %v4392
          %v4394 = vpop.f32.mrb[0].mxu0
          %4395 = vmatprep.mubr.f32.mxu0 0.0
          %4396 = vmatmul.mubr.f32.gmra.mrb[0].mxu0 %v4021
          %v4397 = vpop.f32.mrb[0].mxu0
          %v4398 = vadd.f32 0.0, %v4397
          %v4399 = vpop.f32.mrb[0].mxu0
          %4400 = vdwg.mxu0
          %v4401 = vadd.f32 %v3962, %v4363
          %v4402 = vadd.f32 %v3963, %v4368
          %v4403 = vadd.f32 %v3964, %v4373
          %v4404 = vadd.f32 %v3965, %v4378
          %v4405 = vadd.f32 %v3966, %v4383
          %v4406 = vadd.f32 %v3967, %v4388
          %v4407 = vadd.f32 %v3968, %v4393
          %v4408 = vadd.f32 %v3969, %v4398
          %s4409 = scalar_lea.vmem [#allocation18], 20
          %v4410 = vld [vmem:[%s4409] sm:$0xf]
          %v4412 = vsel %vm815, %v3989, 0
          %v4415 = vsel %vm815, %v3990, 0
          %v4418 = vsel %vm815, %v3991, 0
          %v4421 = vsel %vm815, %v3992, 0
          %v4424 = vsel %vm815, %v3993, 0
          %v4427 = vsel %vm815, %v3994, 0
          %v4430 = vsel %vm815, %v3995, 0
          %v4433 = vsel %vm815, %v3996, 0
          %v4436 = vsel %vm2910, %v4410, 0
          %4438 = vmatprep.subr.mxu0 0.0
          %4439 = vmatpush1.msra.mxu0 %v4436
          %4440 = vmatprep.subr.mxu0 0.0
          %4441 = vmatpush1.msra.mxu0 0.0
          %4442 = vmatprep.subr.mxu0 0.0
          %4443 = vmatpush1.msra.mxu0 0.0
          %4444 = vmatprep.subr.mxu0 0.0
          %4445 = vmatpush1.msra.mxu0 0.0
          %4446 = vmatprep.subr.mxu0 0.0
          %4447 = vmatpush1.msra.mxu0 0.0
          %4448 = vmatprep.subr.mxu0 0.0
          %4449 = vmatpush1.msra.mxu0 0.0
          %4450 = vmatprep.subr.mxu0 0.0
          %4451 = vmatpush1.msra.mxu0 0.0
          %4452 = vmatprep.subr.mxu0 0.0
          %4453 = vmatpush1.msra.mxu0 0.0
          %4454 = vmatprep.subr.mxu0 0.0
          %4455 = vmatpush1.msra.mxu0 0.0
          %4456 = vmatprep.subr.mxu0 0.0
          %4457 = vmatpush1.msra.mxu0 0.0
          %4458 = vmatprep.subr.mxu0 0.0
          %4459 = vmatpush1.msra.mxu0 0.0
          %4460 = vmatprep.subr.mxu0 0.0
          %4461 = vmatpush1.msra.mxu0 0.0
          %4462 = vmatprep.subr.mxu0 0.0
          %4463 = vmatpush1.msra.mxu0 0.0
          %4464 = vmatprep.subr.mxu0 0.0
          %4465 = vmatpush1.msra.mxu0 0.0
          %4466 = vmatprep.subr.mxu0 0.0
          %4467 = vmatpush1.msra.mxu0 0.0
          %4468 = vmatprep.subr.mxu0 0.0
          %4469 = vmatpush1.msra.mxu0 0.0
          %4470 = vmatprep.subr.mxu0 0.0
          %4471 = vmatpush1.msra.mxu0 0.0
          %4472 = vmatprep.subr.mxu0 0.0
          %4473 = vmatpush1.msra.mxu0 0.0
          %4474 = vmatprep.subr.mxu0 0.0
          %4475 = vmatpush1.msra.mxu0 0.0
          %4476 = vmatprep.subr.mxu0 0.0
          %4477 = vmatpush1.msra.mxu0 0.0
          %4478 = vmatprep.subr.mxu0 0.0
          %4479 = vmatpush1.msra.mxu0 0.0
          %4480 = vmatprep.subr.mxu0 0.0
          %4481 = vmatpush1.msra.mxu0 0.0
          %4482 = vmatprep.subr.mxu0 0.0
          %4483 = vmatpush1.msra.mxu0 0.0
          %4484 = vmatprep.subr.mxu0 0.0
          %4485 = vmatpush1.msra.mxu0 0.0
          %4486 = vmatprep.subr.mxu0 0.0
          %4487 = vmatpush1.msra.mxu0 0.0
          %4488 = vmatprep.subr.mxu0 0.0
          %4489 = vmatpush1.msra.mxu0 0.0
          %4490 = vmatprep.subr.mxu0 0.0
          %4491 = vmatpush1.msra.mxu0 0.0
          %4492 = vmatprep.subr.mxu0 0.0
          %4493 = vmatpush1.msra.mxu0 0.0
          %4494 = vmatprep.subr.mxu0 0.0
          %4495 = vmatpush1.msra.mxu0 0.0
          %4496 = vmatprep.subr.mxu0 0.0
          %4497 = vmatpush1.msra.mxu0 0.0
          %4498 = vmatprep.subr.mxu0 0.0
          %4499 = vmatpush1.msra.mxu0 0.0
          %4500 = vmatprep.subr.mxu0 0.0
          %4501 = vmatpush1.msra.mxu0 0.0
          %4502 = vmatprep.mubr.f32.mxu0 0.0
          %4503 = vmatmul.mubr.f32.gmra.mrb[0].mxu0 %v4412
          %v4504 = vpop.f32.mrb[0].mxu0
          %v4505 = vadd.f32 0.0, %v4504
          %v4506 = vpop.f32.mrb[0].mxu0
          %4507 = vmatprep.mubr.f32.mxu0 0.0
          %4508 = vmatmul.mubr.f32.gmra.mrb[0].mxu0 %v4415
          %v4509 = vpop.f32.mrb[0].mxu0
          %v4510 = vadd.f32 0.0, %v4509
          %v4511 = vpop.f32.mrb[0].mxu0
          %4512 = vmatprep.mubr.f32.mxu0 0.0
          %4513 = vmatmul.mubr.f32.gmra.mrb[0].mxu0 %v4418
          %v4514 = vpop.f32.mrb[0].mxu0
          %v4515 = vadd.f32 0.0, %v4514
          %v4516 = vpop.f32.mrb[0].mxu0
          %4517 = vmatprep.mubr.f32.mxu0 0.0
          %4518 = vmatmul.mubr.f32.gmra.mrb[0].mxu0 %v4421
          %v4519 = vpop.f32.mrb[0].mxu0
          %v4520 = vadd.f32 0.0, %v4519
          %v4521 = vpop.f32.mrb[0].mxu0
          %4522 = vmatprep.mubr.f32.mxu0 0.0
          %4523 = vmatmul.mubr.f32.gmra.mrb[0].mxu0 %v4424
          %v4524 = vpop.f32.mrb[0].mxu0
          %v4525 = vadd.f32 0.0, %v4524
          %v4526 = vpop.f32.mrb[0].mxu0
          %4527 = vmatprep.mubr.f32.mxu0 0.0
          %4528 = vmatmul.mubr.f32.gmra.mrb[0].mxu0 %v4427
          %v4529 = vpop.f32.mrb[0].mxu0
          %v4530 = vadd.f32 0.0, %v4529
          %v4531 = vpop.f32.mrb[0].mxu0
          %4532 = vmatprep.mubr.f32.mxu0 0.0
          %4533 = vmatmul.mubr.f32.gmra.mrb[0].mxu0 %v4430
          %v4534 = vpop.f32.mrb[0].mxu0
          %v4535 = vadd.f32 0.0, %v4534
          %v4536 = vpop.f32.mrb[0].mxu0
          %4537 = vmatprep.mubr.f32.mxu0 0.0
          %4538 = vmatmul.mubr.f32.gmra.mrb[0].mxu0 %v4433
          %v4539 = vpop.f32.mrb[0].mxu0
          %v4540 = vadd.f32 0.0, %v4539
          %v4541 = vpop.f32.mrb[0].mxu0
          %4542 = vdwg.mxu0
          %v4543 = vadd.f32 %v4401, %v4505
          %v4544 = vadd.f32 %v4402, %v4510
          %v4545 = vadd.f32 %v4403, %v4515
          %v4546 = vadd.f32 %v4404, %v4520
          %v4547 = vadd.f32 %v4405, %v4525
          %v4548 = vadd.f32 %v4406, %v4530
          %v4549 = vadd.f32 %v4407, %v4535
          %v4550 = vadd.f32 %v4408, %v4540
          %v4552 = vlaneseq
          %v4553 = vshrl.u32 %v4552, 7
          %v4554 = vsub.s32 0, %v4553
          %v4555 = vrot.slane %v2841, %v4554
          %v4557 = vadd.f32 %v4286, %v4555
          %v4558 = vadd.f32 %v4287, %v4555
          %v4559 = vadd.f32 %v4288, %v4555
          %v4560 = vadd.f32 %v4289, %v4555
          %v4561 = vadd.f32 %v4290, %v4555
          %v4562 = vadd.f32 %v4291, %v4555
          %v4563 = vadd.f32 %v4292, %v4555
          %v4564 = vadd.f32 %v4293, %v4555
          %v4565 = vmax.f32 %v4557, 0.0
          %v4566 = vmax.f32 %v4558, 0.0
          %v4567 = vmax.f32 %v4559, 0.0
          %v4568 = vmax.f32 %v4560, 0.0
          %v4569 = vmax.f32 %v4561, 0.0
          %v4570 = vmax.f32 %v4562, 0.0
          %v4571 = vmax.f32 %v4563, 0.0
          %v4572 = vmax.f32 %v4564, 0.0
          %v4573 = vadd.f32 %v4543, %v4555
          %v4574 = vadd.f32 %v4544, %v4555
          %v4575 = vadd.f32 %v4545, %v4555
          %v4576 = vadd.f32 %v4546, %v4555
          %v4577 = vadd.f32 %v4547, %v4555
          %v4578 = vadd.f32 %v4548, %v4555
          %v4579 = vadd.f32 %v4549, %v4555
          %v4580 = vadd.f32 %v4550, %v4555
          %v4581 = vmax.f32 %v4573, 0.0
          %v4582 = vmax.f32 %v4574, 0.0
          %v4583 = vmax.f32 %v4575, 0.0
          %v4584 = vmax.f32 %v4576, 0.0
          %v4585 = vmax.f32 %v4577, 0.0
          %v4586 = vmax.f32 %v4578, 0.0
          %v4587 = vmax.f32 %v4579, 0.0
          %v4588 = vmax.f32 %v4580, 0.0
          %s4589 = smul.u32 %s2840, 8
          %s4590 = scalar_lea.vmem %s525, %s4589 [#allocation21]
          %4591 = vst.msk [vmem:[%s4590] sm:$0xff] %vm815, %v4565
          %4592 = vst.msk [vmem:[%s4590 + $0x8] sm:$0xff] %vm815, %v4566
          %4593 = vst.msk [vmem:[%s4590 + $0x10] sm:$0xff] %vm815, %v4567
          %4594 = vst.msk [vmem:[%s4590 + $0x18] sm:$0xff] %vm815, %v4568
          %4595 = vst.msk [vmem:[%s4590 + $0x20] sm:$0xff] %vm815, %v4569
          %4596 = vst.msk [vmem:[%s4590 + $0x28] sm:$0xff] %vm815, %v4570
          %4597 = vst.msk [vmem:[%s4590 + $0x30] sm:$0xff] %vm815, %v4571
          %4598 = vst.msk [vmem:[%s4590 + $0x38] sm:$0xff] %vm815, %v4572
          %4607 = vrot.lane.b32.xlu0 %v4581, 4
          %v4608 = vpop.permute.xlu0 %4607
          %4609 = vrot.lane.b32.xlu0 %v4582, 4
          %v4610 = vpop.permute.xlu0 %4609
          %4611 = vrot.lane.b32.xlu0 %v4583, 4
          %v4612 = vpop.permute.xlu0 %4611
          %4613 = vrot.lane.b32.xlu0 %v4584, 4
          %v4614 = vpop.permute.xlu0 %4613
          %4615 = vrot.lane.b32.xlu0 %v4585, 4
          %v4616 = vpop.permute.xlu0 %4615
          %4617 = vrot.lane.b32.xlu0 %v4586, 4
          %v4618 = vpop.permute.xlu0 %4617
          %4619 = vrot.lane.b32.xlu0 %v4587, 4
          %v4620 = vpop.permute.xlu0 %4619
          %4621 = vrot.lane.b32.xlu0 %v4588, 4
          %v4622 = vpop.permute.xlu0 %4621
          %4631 = vst.msk [vmem:[%s4590] sm:$0xff] %vm896, %v4608
          %4632 = vst.msk [vmem:[%s4590 + $0x8] sm:$0xff] %vm896, %v4610
          %4633 = vst.msk [vmem:[%s4590 + $0x10] sm:$0xff] %vm896, %v4612
          %4634 = vst.msk [vmem:[%s4590 + $0x18] sm:$0xff] %vm896, %v4614
          %4635 = vst.msk [vmem:[%s4590 + $0x20] sm:$0xff] %vm896, %v4616
          %4636 = vst.msk [vmem:[%s4590 + $0x28] sm:$0xff] %vm896, %v4618
          %4637 = vst.msk [vmem:[%s4590 + $0x30] sm:$0xff] %vm896, %v4620
          %4638 = vst.msk [vmem:[%s4590 + $0x38] sm:$0xff] %vm896, %v4622
        $region112: #{unet_up_block_forward.1} parent=59 // loop_footer
          %s2839 = sadd.s32 1, %s2835
        $region113: #{unet_up_block_forward.1} parent=59 // loop_footer_branch
          %2834 = sbr.rel target = $region109
        $region114: #{unet_up_block_forward.1} parent=59 // loop_exit
          _
        %s4639 = sand.u32 %s262, 1
        %s4640 = scalar_lea.sflag [#allocation6], %s4639
        %s4641 = sand.u32 %s262, 1
        %s4642 = smul.addr %s4641, 128
        %s4643 = scalar_lea.vmem [#allocation21], %s4642
        // Predicated region
        $region115: #{unet_up_block_forward.1} parent=59 // pred_check
          %p4644 = pneg %p272
        $region116: #{unet_up_block_forward.1} parent=59 // pred_check_branch
          %4646 = sbr.rel (%p4644) target = $region118
        $region117: #{unet_up_block_forward.1} parent=59 // pred_region
          %s4648 = ssub.s32 2048, 2048
          %4649 = vsyncadd %s4640, %s4648
          %s4650 = smul.addr %s34, 16
          %s4651 = smul.addr %s4650, 128
          %s4652 = scalar_lea.hbm %s10, %s4651
          %s4653 = sshll.u32 %s4643, 4
          %s4654 = int_to_ptr.vmem [resolvable:$true] %s4653
          %4659 = dma.vmem_to_hbm [thread:$0]  %s4654, 2048, %s4652, %s4640, 128, 128, 8
        $region118: #{unet_up_block_forward.1} parent=59 // pred_fallthru
          _
      $region60: #{unet_up_block_forward.1} parent=5 // pred_fallthru
        _
      %p4660 = scmp.le.s32.totalorder 2, %s29
      // Predicated region
      $region119: #{unet_up_block_forward.1} parent=5 // pred_check
        %p4661 = pneg %p4660
      $region120: #{unet_up_block_forward.1} parent=5 // pred_check_branch
        %4663 = sbr.rel (%p4661) target = $region122
      $region121: #{unet_up_block_forward.1} parent=5 // pred_region
        %s4664 = ssub.s32 %s29, 2
        // Predicated region
        $region123: #{unet_up_block_forward.1} parent=121 // pred_check
          %p4665 = pneg %p278
        $region124: #{unet_up_block_forward.1} parent=121 // pred_check_branch
          %4667 = sbr.rel (%p4665) target = $region126
        $region125: #{unet_up_block_forward.1} parent=121 // pred_region
          %s4668 = sand.u32 %s263, 1
          %s4669 = scalar_lea.sflag [#allocation6], %s4668
          %s4670 = sand.u32 %s263, 1
          %s4671 = smul.addr %s4670, 128
          %s4672 = scalar_lea.vmem [#allocation21], %s4671
          %4673 = dma.done %s4669, 2048
        $region126: #{unet_up_block_forward.1} parent=121 // pred_fallthru
          _
      $region122: #{unet_up_block_forward.1} parent=5 // pred_fallthru
        _
    $region6: #{unet_up_block_forward.1} parent=1 // loop_footer
      %s33 = sadd.s32 1, %s29
    $region7: #{unet_up_block_forward.1} parent=1 // loop_footer_branch
      %28 = sbr.rel target = $region3
    $region8: #{unet_up_block_forward.1} parent=1 // loop_exit
      _
    %4674 = vsyncpa [#allocation5], 1
    %s4675 = scalar_lea.sflag [#allocation5], 1
    %4676 = vsyncpa %s4675, 1
    %4677 = vsyncpa [#allocation8], 1
    %s4678 = scalar_lea.sflag [#allocation8], 1
    %4679 = vsyncpa %s4678, 1
    %4680 = vsyncpa [#allocation11], 1
    %4681 = vsyncpa [#allocation14], 1
    %4682 = vsyncpa [#allocation17], 1
    %4683 = vsyncpa [#allocation20], 1
    %4684 = vsyncpa [#allocation6], 1
    %s4685 = scalar_lea.sflag [#allocation6], 1
    %4686 = vsyncpa %s4685, 1

</llo_original>
